<compile_context>
chip_gen: v6e
topology: v6e:2x2x1
jax: 0.10.0
libtpu: 0.0.40
codegen_flags: <defaults>
</compile_context>

<pallas_src>
import jax
import jax.numpy as jnp
from jax.experimental import pallas as pl
from jax.experimental.pallas import tpu as pltpu


# ----------------------------------------------------------------------------
# Fused Pallas kernel
# ----------------------------------------------------------------------------
def fused_lstm_classifier_kernel(
    x_ref,       # (B, T, D)    batch-first input
    w1x_ref,     # (D,  8H)     layer-1 [fwd Wih^T | bwd Wih^T]
    w1h_ref,     # (2H, 8H)     layer-1 block-diag(fwd Whh^T, bwd Whh^T)
    b1_ref,      # (1,  8H)     layer-1 [b_fwd | b_bwd]  (bih + bhh)
    w2x_ref,     # (2H, 8H)     layer-2 [fwd Wih^T | bwd Wih^T]
    w2h_ref,     # (2H, 8H)     layer-2 block-diag(fwd Whh^T, bwd Whh^T)
    b2_ref,      # (1,  8H)
    whead_ref,   # (2H, C)      BatchNorm folded into the FC weight
    bhead_ref,   # (1,  C)
    out_ref,     # (B,  C)
):
    B, T, D = x_ref.shape
    H8 = w1x_ref.shape[1]
    H4 = H8 // 2
    H = H4 // 4

    def cell(gates, c_prev):
        # Full-width activations (EUP), then slice i/f/g/o (PyTorch gate order).
        s = jax.nn.sigmoid(gates)
        th = jnp.tanh(gates)
        i = s[:, 0 * H:1 * H]
        f = s[:, 1 * H:2 * H]
        g = th[:, 2 * H:3 * H]
        o = s[:, 3 * H:4 * H]
        c = f * c_prev + i * g
        h = o * jnp.tanh(c)
        return h, c

    def bilstm(xp_f, xp_b, whh_bd):
        """Run one bidirectional layer.

        xp_f[t] / xp_b[t]: (B, 4H) input-projection pre-activations (bias included)
        for original time index t, forward / backward direction.
        """
        h_f = jnp.zeros((B, H), jnp.float32)
        c_f = jnp.zeros((B, H), jnp.float32)
        h_b = jnp.zeros((B, H), jnp.float32)
        c_b = jnp.zeros((B, H), jnp.float32)
        out_f = [None] * T
        out_b = [None] * T
        for t in range(T):  # fully unrolled; T is small and static
            # Both directions' recurrent matmuls fused via block-diagonal weight.
            rec = jnp.dot(jnp.concatenate([h_f, h_b], axis=-1), whh_bd,
                          preferred_element_type=jnp.float32)        # (B, 8H)
            h_f, c_f = cell(xp_f[t] + rec[:, :H4], c_f)
            h_b, c_b = cell(xp_b[T - 1 - t] + rec[:, H4:], c_b)
            out_f[t] = h_f
            out_b[T - 1 - t] = h_b
        # h_f: final forward hidden (time T-1); h_b: final backward hidden (time 0).
        return out_f, out_b, h_f, h_b

    # ---- Layer 1: one big input-projection matmul for both directions, all steps.
    x = x_ref[...]
    xp1 = jnp.dot(x.reshape(B * T, D), w1x_ref[...],
                  preferred_element_type=jnp.float32) + b1_ref[...]   # (B*T, 8H)
    xp1 = xp1.reshape(B, T, H8)
    xp1_f = [xp1[:, t, :H4] for t in range(T)]
    xp1_b = [xp1[:, t, H4:] for t in range(T)]
    o1_f, o1_b, _, _ = bilstm(xp1_f, xp1_b, w1h_ref[...])

    # ---- Layer 2 input = per-time concat of both directions' layer-1 outputs.
    # TODO(synk): inter-layer nn.LSTM dropout (p=0.3) is a training-time stochastic op;
    # identity at inference.
    l1 = jnp.stack([jnp.concatenate([o1_f[t], o1_b[t]], axis=-1)
                    for t in range(T)], axis=1)                        # (B, T, 2H)
    xp2 = jnp.dot(l1.reshape(B * T, 2 * H), w2x_ref[...],
                  preferred_element_type=jnp.float32) + b2_ref[...]    # (B*T, 8H)
    xp2 = xp2.reshape(B, T, H8)
    xp2_f = [xp2[:, t, :H4] for t in range(T)]
    xp2_b = [xp2[:, t, H4:] for t in range(T)]
    _, _, hf2, hb2 = bilstm(xp2_f, xp2_b, w2h_ref[...])

    # ---- Head: hidden = cat(hidden[-2], hidden[-1]); BatchNorm folded into FC.
    # TODO(synk): nn.Dropout(0.3) before fc is identity at inference.
    hidden = jnp.concatenate([hf2, hb2], axis=-1)                      # (B, 2H)
    out_ref[...] = (jnp.dot(hidden, whead_ref[...],
                            preferred_element_type=jnp.float32) + bhead_ref[...])


# ----------------------------------------------------------------------------
# Wrappers
# ----------------------------------------------------------------------------
def _pack_layer(layer_params):
    """Pack a bidirectional layer: concat input weights, block-diag recurrent weights."""
    fwd, bwd = layer_params
    wx = jnp.concatenate([fwd["wih_t"], bwd["wih_t"]], axis=1)          # (Din, 8H)
    H = fwd["whh_t"].shape[0]
    z = jnp.zeros((H, 4 * H), jnp.float32)
    wh = jnp.concatenate(
        [jnp.concatenate([fwd["whh_t"], z], axis=1),
         jnp.concatenate([z, bwd["whh_t"]], axis=1)], axis=0)           # (2H, 8H)
    b = jnp.concatenate([fwd["b"], bwd["b"]]).reshape(1, -1)            # (1, 8H)
    return wx, wh, b


def prepare_kernel_params(params, eps=1e-5):
    w1x, w1h, b1 = _pack_layer(params["lstm"][0])
    w2x, w2h, b2 = _pack_layer(params["lstm"][1])
    # Fold BatchNorm1d (eval, running stats) into the Linear head:
    #   bn(h) = h*scale + shift,  scale = gamma*rsqrt(var+eps), shift = beta - mean*scale
    #   fc(bn(h)) = h @ (scale[:,None] * W^T) + (shift @ W^T + b)
    scale = params["bn_gamma"] * jax.lax.rsqrt(params["bn_var"] + eps)
    shift = params["bn_beta"] - params["bn_mean"] * scale
    w_head = scale[:, None] * params["fc_w_t"]                          # (2H, C)
    b_head = (params["fc_b"] + shift @ params["fc_w_t"]).reshape(1, -1)  # (1, C)
    return (w1x, w1h, b1, w2x, w2h, b2, w_head, b_head)


@jax.jit
def lstm_classifier_forward(x, params):
    """x: (B, T, input_size), batch_first, matching the PyTorch module."""
    x = x.astype(jnp.float32)
    packed = prepare_kernel_params(params)
    B = x.shape[0]
    C = packed[-1].shape[1]
    return pl.pallas_call(
        fused_lstm_classifier_kernel,
        out_shape=jax.ShapeDtypeStruct((B, C), jnp.float32),
    )(x, *packed)


def init_params(key, input_size, hidden_size, num_classes, num_layers):
    """Deterministic parameter init mimicking PyTorch's U(-1/sqrt(H), 1/sqrt(H))."""
    k = 1.0 / (hidden_size ** 0.5)
    num_dirs = 2
    params = {"lstm": []}
    for layer in range(num_layers):
        d_in = input_size if layer == 0 else hidden_size * num_dirs
        dirs = []
        for _ in range(num_dirs):
            key, k1, k2, k3, k4 = jax.random.split(key, 5)
            wih = jax.random.uniform(k1, (4 * hidden_size, d_in), jnp.float32, -k, k)
            whh = jax.random.uniform(k2, (4 * hidden_size, hidden_size), jnp.float32, -k, k)
            bih = jax.random.uniform(k3, (4 * hidden_size,), jnp.float32, -k, k)
            bhh = jax.random.uniform(k4, (4 * hidden_size,), jnp.float32, -k, k)
            dirs.append({
                "wih_t": wih.T,              # (Din, 4H)
                "whh_t": whh.T,              # (H, 4H)
                "b": bih + bhh,              # (4H,)
            })
        params["lstm"].append(dirs)

    feat = hidden_size * num_dirs
    key, kw, kb = jax.random.split(key, 3)
    kf = 1.0 / (feat ** 0.5)
    params["fc_w_t"] = jax.random.uniform(kw, (num_classes, feat), jnp.float32, -kf, kf).T
    params["fc_b"] = jax.random.uniform(kb, (num_classes,), jnp.float32, -kf, kf)
    params["bn_gamma"] = jnp.ones((feat,), jnp.float32)
    params["bn_beta"] = jnp.zeros((feat,), jnp.float32)
    params["bn_mean"] = jnp.zeros((feat,), jnp.float32)
    params["bn_var"] = jnp.ones((feat,), jnp.float32)
    return params


# ----------------------------------------------------------------------------
# Pure-JAX reference (for correctness verification)
# ----------------------------------------------------------------------------
def _ref_cell(x_t, h, c, wih_t, whh_t, b):
    gates = x_t @ wih_t + h @ whh_t + b
    H = h.shape[-1]
    i = jax.nn.sigmoid(gates[:, :H])
    f = jax.nn.sigmoid(gates[:, H:2 * H])
    g = jnp.tanh(gates[:, 2 * H:3 * H])
    o = jax.nn.sigmoid(gates[:, 3 * H:])
    c = f * c + i * g
    h = o * jnp.tanh(c)
    return h, c


def reference_forward(x, params):
    B, T, _ = x.shape
    H = params["lstm"][0][0]["whh_t"].shape[0]
    layer_in = x
    finals = None
    for layer in range(len(params["lstm"])):
        outs, finals = [], []
        for d in range(2):
            p = params["lstm"][layer][d]
            h = jnp.zeros((B, H), jnp.float32)
            c = jnp.zeros((B, H), jnp.float32)
            seq = [None] * T
            trange = range(T) if d == 0 else range(T - 1, -1, -1)
            for t in trange:
                h, c = _ref_cell(layer_in[:, t, :], h, c, p["wih_t"], p["whh_t"], p["b"])
                seq[t] = h
            outs.append(jnp.stack(seq, axis=1))
            finals.append(h)
        layer_in = jnp.concatenate(outs, axis=-1)
    hidden = jnp.concatenate(finals, axis=-1)
    scale = params["bn_gamma"] * jax.lax.rsqrt(params["bn_var"] + 1e-5)
    xn = (hidden - params["bn_mean"]) * scale + params["bn_beta"]
    return xn @ params["fc_w_t"] + params["fc_b"]


if __name__ == "__main__":
    INPUT_SIZE = 8
    HIDDEN_SIZE = 32
    NUM_CLASSES = 5
    NUM_LAYERS = 2
    B, T = 2, 8

    key = jax.random.PRNGKey(0)
    key, kx, kp = jax.random.split(key, 3)
    x = jax.random.normal(kx, (B, T, INPUT_SIZE), jnp.float32)
    params = init_params(kp, INPUT_SIZE, HIDDEN_SIZE, NUM_CLASSES, NUM_LAYERS)

    out = lstm_classifier_forward(x, params)
    out = jax.block_until_ready(out)
    assert out.shape == (B, NUM_CLASSES), out.shape
    assert bool(jnp.all(jnp.isfinite(out)))

    ref = reference_forward(x, params)
    assert bool(jnp.allclose(out, ref, atol=1e-4, rtol=1e-4)), float(jnp.max(jnp.abs(out - ref)))
    print("KERNEL_OK")
</pallas_src>

<mosaic_0001>
module attributes {stable_mosaic.version = 11 : i64} {
  func.func @fused_lstm_classifier_kernel(%arg0: memref<2x8x8xf32, #tpu.memory_space<vmem>>, %arg1: memref<8x256xf32, #tpu.memory_space<vmem>>, %arg2: memref<64x256xf32, #tpu.memory_space<vmem>>, %arg3: memref<1x256xf32, #tpu.memory_space<vmem>>, %arg4: memref<64x256xf32, #tpu.memory_space<vmem>>, %arg5: memref<64x256xf32, #tpu.memory_space<vmem>>, %arg6: memref<1x256xf32, #tpu.memory_space<vmem>>, %arg7: memref<64x5xf32, #tpu.memory_space<vmem>>, %arg8: memref<1x5xf32, #tpu.memory_space<vmem>>, %arg9: memref<2x5xf32, #tpu.memory_space<vmem>>) attributes {dimension_semantics = [], scalar_prefetch = 0 : i64, scratch_operands = 0 : i64, tpu.core_type = #tpu.core_type<tc>} {
    %c0 = arith.constant 0 : index
    %c0_0 = arith.constant 0 : index
    %c0_1 = arith.constant 0 : index
    %0 = vector.load %arg0[%c0, %c0_0, %c0_1] : memref<2x8x8xf32, #tpu.memory_space<vmem>>, vector<2x8x8xf32>
    %1 = vector.shape_cast %0 : vector<2x8x8xf32> to vector<16x8xf32>
    %c0_2 = arith.constant 0 : index
    %c0_3 = arith.constant 0 : index
    %2 = vector.load %arg1[%c0_2, %c0_3] : memref<8x256xf32, #tpu.memory_space<vmem>>, vector<8x256xf32>
    %cst = arith.constant dense<0.000000e+00> : vector<16x256xf32>
    %3 = tpu.matmul %1, %2, %cst {dimension_numbers = #tpu.dot_dimension_numbers<[1], [0], [0], [1], [0, 0, 1, 1], [], []>} : vector<16x8xf32>, vector<8x256xf32>, vector<16x256xf32> -> vector<16x256xf32>
    %c0_4 = arith.constant 0 : index
    %c0_5 = arith.constant 0 : index
    %4 = vector.load %arg3[%c0_4, %c0_5] : memref<1x256xf32, #tpu.memory_space<vmem>>, vector<1x256xf32>
    %5 = vector.broadcast %4 : vector<1x256xf32> to vector<16x256xf32>
    %6 = arith.addf %3, %5 : vector<16x256xf32>
    %7 = vector.shape_cast %6 : vector<16x256xf32> to vector<2x8x256xf32>
    %8 = vector.extract_strided_slice %7 {offsets = [0, 0, 0], sizes = [2, 1, 128], strides = [1, 1, 1]} : vector<2x8x256xf32> to vector<2x1x128xf32>
    %9 = vector.shape_cast %8 : vector<2x1x128xf32> to vector<2x128xf32>
    %10 = vector.extract_strided_slice %7 {offsets = [0, 1, 0], sizes = [2, 1, 128], strides = [1, 1, 1]} : vector<2x8x256xf32> to vector<2x1x128xf32>
    %11 = vector.shape_cast %10 : vector<2x1x128xf32> to vector<2x128xf32>
    %12 = vector.extract_strided_slice %7 {offsets = [0, 2, 0], sizes = [2, 1, 128], strides = [1, 1, 1]} : vector<2x8x256xf32> to vector<2x1x128xf32>
    %13 = vector.shape_cast %12 : vector<2x1x128xf32> to vector<2x128xf32>
    %14 = vector.extract_strided_slice %7 {offsets = [0, 3, 0], sizes = [2, 1, 128], strides = [1, 1, 1]} : vector<2x8x256xf32> to vector<2x1x128xf32>
    %15 = vector.shape_cast %14 : vector<2x1x128xf32> to vector<2x128xf32>
    %16 = vector.extract_strided_slice %7 {offsets = [0, 4, 0], sizes = [2, 1, 128], strides = [1, 1, 1]} : vector<2x8x256xf32> to vector<2x1x128xf32>
    %17 = vector.shape_cast %16 : vector<2x1x128xf32> to vector<2x128xf32>
    %18 = vector.extract_strided_slice %7 {offsets = [0, 5, 0], sizes = [2, 1, 128], strides = [1, 1, 1]} : vector<2x8x256xf32> to vector<2x1x128xf32>
    %19 = vector.shape_cast %18 : vector<2x1x128xf32> to vector<2x128xf32>
    %20 = vector.extract_strided_slice %7 {offsets = [0, 6, 0], sizes = [2, 1, 128], strides = [1, 1, 1]} : vector<2x8x256xf32> to vector<2x1x128xf32>
    %21 = vector.shape_cast %20 : vector<2x1x128xf32> to vector<2x128xf32>
    %22 = vector.extract_strided_slice %7 {offsets = [0, 7, 0], sizes = [2, 1, 128], strides = [1, 1, 1]} : vector<2x8x256xf32> to vector<2x1x128xf32>
    %23 = vector.shape_cast %22 : vector<2x1x128xf32> to vector<2x128xf32>
    %24 = vector.extract_strided_slice %7 {offsets = [0, 0, 128], sizes = [2, 1, 128], strides = [1, 1, 1]} : vector<2x8x256xf32> to vector<2x1x128xf32>
    %25 = vector.shape_cast %24 : vector<2x1x128xf32> to vector<2x128xf32>
    %26 = vector.extract_strided_slice %7 {offsets = [0, 1, 128], sizes = [2, 1, 128], strides = [1, 1, 1]} : vector<2x8x256xf32> to vector<2x1x128xf32>
    %27 = vector.shape_cast %26 : vector<2x1x128xf32> to vector<2x128xf32>
    %28 = vector.extract_strided_slice %7 {offsets = [0, 2, 128], sizes = [2, 1, 128], strides = [1, 1, 1]} : vector<2x8x256xf32> to vector<2x1x128xf32>
    %29 = vector.shape_cast %28 : vector<2x1x128xf32> to vector<2x128xf32>
    %30 = vector.extract_strided_slice %7 {offsets = [0, 3, 128], sizes = [2, 1, 128], strides = [1, 1, 1]} : vector<2x8x256xf32> to vector<2x1x128xf32>
    %31 = vector.shape_cast %30 : vector<2x1x128xf32> to vector<2x128xf32>
    %32 = vector.extract_strided_slice %7 {offsets = [0, 4, 128], sizes = [2, 1, 128], strides = [1, 1, 1]} : vector<2x8x256xf32> to vector<2x1x128xf32>
    %33 = vector.shape_cast %32 : vector<2x1x128xf32> to vector<2x128xf32>
    %34 = vector.extract_strided_slice %7 {offsets = [0, 5, 128], sizes = [2, 1, 128], strides = [1, 1, 1]} : vector<2x8x256xf32> to vector<2x1x128xf32>
    %35 = vector.shape_cast %34 : vector<2x1x128xf32> to vector<2x128xf32>
    %36 = vector.extract_strided_slice %7 {offsets = [0, 6, 128], sizes = [2, 1, 128], strides = [1, 1, 1]} : vector<2x8x256xf32> to vector<2x1x128xf32>
    %37 = vector.shape_cast %36 : vector<2x1x128xf32> to vector<2x128xf32>
    %38 = vector.extract_strided_slice %7 {offsets = [0, 7, 128], sizes = [2, 1, 128], strides = [1, 1, 1]} : vector<2x8x256xf32> to vector<2x1x128xf32>
    %39 = vector.shape_cast %38 : vector<2x1x128xf32> to vector<2x128xf32>
    %c0_6 = arith.constant 0 : index
    %c0_7 = arith.constant 0 : index
    %40 = vector.load %arg2[%c0_6, %c0_7] : memref<64x256xf32, #tpu.memory_space<vmem>>, vector<64x256xf32>
    %cst_8 = arith.constant 0.000000e+00 : f32
    %41 = vector.broadcast %cst_8 : f32 to vector<2x32xf32>
    %cst_9 = arith.constant 0.000000e+00 : f32
    %42 = vector.broadcast %cst_9 : f32 to vector<2x32xf32>
    %cst_10 = arith.constant 0.000000e+00 : f32
    %43 = vector.broadcast %cst_10 : f32 to vector<2x32xf32>
    %cst_11 = arith.constant 0.000000e+00 : f32
    %44 = vector.broadcast %cst_11 : f32 to vector<2x32xf32>
    %45 = tpu.concatenate %41, %43 in 1 : vector<2x32xf32>, vector<2x32xf32> -> vector<2x64xf32>
    %cst_12 = arith.constant dense<0.000000e+00> : vector<2x256xf32>
    %46 = tpu.matmul %45, %40, %cst_12 {dimension_numbers = #tpu.dot_dimension_numbers<[1], [0], [0], [1], [0, 0, 1, 1], [], []>} : vector<2x64xf32>, vector<64x256xf32>, vector<2x256xf32> -> vector<2x256xf32>
    %47 = vector.extract_strided_slice %46 {offsets = [0, 0], sizes = [2, 128], strides = [1, 1]} : vector<2x256xf32> to vector<2x128xf32>
    %48 = arith.addf %9, %47 : vector<2x128xf32>
    %49 = arith.negf %48 : vector<2x128xf32>
    %50 = math.exp %49 : vector<2x128xf32>
    %cst_13 = arith.constant 1.000000e+00 : f32
    %51 = vector.broadcast %cst_13 : f32 to vector<2x128xf32>
    %52 = arith.addf %51, %50 : vector<2x128xf32>
    %53 = arith.divf %51, %52 : vector<2x128xf32>
    %54 = math.tanh %48 : vector<2x128xf32>
    %55 = vector.extract_strided_slice %53 {offsets = [0, 0], sizes = [2, 32], strides = [1, 1]} : vector<2x128xf32> to vector<2x32xf32>
    %56 = vector.extract_strided_slice %53 {offsets = [0, 32], sizes = [2, 32], strides = [1, 1]} : vector<2x128xf32> to vector<2x32xf32>
    %57 = vector.extract_strided_slice %54 {offsets = [0, 64], sizes = [2, 32], strides = [1, 1]} : vector<2x128xf32> to vector<2x32xf32>
    %58 = vector.extract_strided_slice %53 {offsets = [0, 96], sizes = [2, 32], strides = [1, 1]} : vector<2x128xf32> to vector<2x32xf32>
    %59 = arith.mulf %56, %42 : vector<2x32xf32>
    %60 = arith.mulf %55, %57 : vector<2x32xf32>
    %61 = arith.addf %59, %60 : vector<2x32xf32>
    %62 = math.tanh %61 : vector<2x32xf32>
    %63 = arith.mulf %58, %62 : vector<2x32xf32>
    %64 = vector.extract_strided_slice %46 {offsets = [0, 128], sizes = [2, 128], strides = [1, 1]} : vector<2x256xf32> to vector<2x128xf32>
    %65 = arith.addf %39, %64 : vector<2x128xf32>
    %66 = arith.negf %65 : vector<2x128xf32>
    %67 = math.exp %66 : vector<2x128xf32>
    %cst_14 = arith.constant 1.000000e+00 : f32
    %68 = vector.broadcast %cst_14 : f32 to vector<2x128xf32>
    %69 = arith.addf %68, %67 : vector<2x128xf32>
    %70 = arith.divf %68, %69 : vector<2x128xf32>
    %71 = math.tanh %65 : vector<2x128xf32>
    %72 = vector.extract_strided_slice %70 {offsets = [0, 0], sizes = [2, 32], strides = [1, 1]} : vector<2x128xf32> to vector<2x32xf32>
    %73 = vector.extract_strided_slice %70 {offsets = [0, 32], sizes = [2, 32], strides = [1, 1]} : vector<2x128xf32> to vector<2x32xf32>
    %74 = vector.extract_strided_slice %71 {offsets = [0, 64], sizes = [2, 32], strides = [1, 1]} : vector<2x128xf32> to vector<2x32xf32>
    %75 = vector.extract_strided_slice %70 {offsets = [0, 96], sizes = [2, 32], strides = [1, 1]} : vector<2x128xf32> to vector<2x32xf32>
    %76 = arith.mulf %73, %44 : vector<2x32xf32>
    %77 = arith.mulf %72, %74 : vector<2x32xf32>
    %78 = arith.addf %76, %77 : vector<2x32xf32>
    %79 = math.tanh %78 : vector<2x32xf32>
    %80 = arith.mulf %75, %79 : vector<2x32xf32>
    %81 = tpu.concatenate %63, %80 in 1 : vector<2x32xf32>, vector<2x32xf32> -> vector<2x64xf32>
    %cst_15 = arith.constant dense<0.000000e+00> : vector<2x256xf32>
    %82 = tpu.matmul %81, %40, %cst_15 {dimension_numbers = #tpu.dot_dimension_numbers<[1], [0], [0], [1], [0, 0, 1, 1], [], []>} : vector<2x64xf32>, vector<64x256xf32>, vector<2x256xf32> -> vector<2x256xf32>
    %83 = vector.extract_strided_slice %82 {offsets = [0, 0], sizes = [2, 128], strides = [1, 1]} : vector<2x256xf32> to vector<2x128xf32>
    %84 = arith.addf %11, %83 : vector<2x128xf32>
    %85 = arith.negf %84 : vector<2x128xf32>
    %86 = math.exp %85 : vector<2x128xf32>
    %cst_16 = arith.constant 1.000000e+00 : f32
    %87 = vector.broadcast %cst_16 : f32 to vector<2x128xf32>
    %88 = arith.addf %87, %86 : vector<2x128xf32>
    %89 = arith.divf %87, %88 : vector<2x128xf32>
    %90 = math.tanh %84 : vector<2x128xf32>
    %91 = vector.extract_strided_slice %89 {offsets = [0, 0], sizes = [2, 32], strides = [1, 1]} : vector<2x128xf32> to vector<2x32xf32>
    %92 = vector.extract_strided_slice %89 {offsets = [0, 32], sizes = [2, 32], strides = [1, 1]} : vector<2x128xf32> to vector<2x32xf32>
    %93 = vector.extract_strided_slice %90 {offsets = [0, 64], sizes = [2, 32], strides = [1, 1]} : vector<2x128xf32> to vector<2x32xf32>
    %94 = vector.extract_strided_slice %89 {offsets = [0, 96], sizes = [2, 32], strides = [1, 1]} : vector<2x128xf32> to vector<2x32xf32>
    %95 = arith.mulf %92, %61 : vector<2x32xf32>
    %96 = arith.mulf %91, %93 : vector<2x32xf32>
    %97 = arith.addf %95, %96 : vector<2x32xf32>
    %98 = math.tanh %97 : vector<2x32xf32>
    %99 = arith.mulf %94, %98 : vector<2x32xf32>
    %100 = vector.extract_strided_slice %82 {offsets = [0, 128], sizes = [2, 128], strides = [1, 1]} : vector<2x256xf32> to vector<2x128xf32>
    %101 = arith.addf %37, %100 : vector<2x128xf32>
    %102 = arith.negf %101 : vector<2x128xf32>
    %103 = math.exp %102 : vector<2x128xf32>
    %cst_17 = arith.constant 1.000000e+00 : f32
    %104 = vector.broadcast %cst_17 : f32 to vector<2x128xf32>
    %105 = arith.addf %104, %103 : vector<2x128xf32>
    %106 = arith.divf %104, %105 : vector<2x128xf32>
    %107 = math.tanh %101 : vector<2x128xf32>
    %108 = vector.extract_strided_slice %106 {offsets = [0, 0], sizes = [2, 32], strides = [1, 1]} : vector<2x128xf32> to vector<2x32xf32>
    %109 = vector.extract_strided_slice %106 {offsets = [0, 32], sizes = [2, 32], strides = [1, 1]} : vector<2x128xf32> to vector<2x32xf32>
    %110 = vector.extract_strided_slice %107 {offsets = [0, 64], sizes = [2, 32], strides = [1, 1]} : vector<2x128xf32> to vector<2x32xf32>
    %111 = vector.extract_strided_slice %106 {offsets = [0, 96], sizes = [2, 32], strides = [1, 1]} : vector<2x128xf32> to vector<2x32xf32>
    %112 = arith.mulf %109, %78 : vector<2x32xf32>
    %113 = arith.mulf %108, %110 : vector<2x32xf32>
    %114 = arith.addf %112, %113 : vector<2x32xf32>
    %115 = math.tanh %114 : vector<2x32xf32>
    %116 = arith.mulf %111, %115 : vector<2x32xf32>
    %117 = tpu.concatenate %99, %116 in 1 : vector<2x32xf32>, vector<2x32xf32> -> vector<2x64xf32>
    %cst_18 = arith.constant dense<0.000000e+00> : vector<2x256xf32>
    %118 = tpu.matmul %117, %40, %cst_18 {dimension_numbers = #tpu.dot_dimension_numbers<[1], [0], [0], [1], [0, 0, 1, 1], [], []>} : vector<2x64xf32>, vector<64x256xf32>, vector<2x256xf32> -> vector<2x256xf32>
    %119 = vector.extract_strided_slice %118 {offsets = [0, 0], sizes = [2, 128], strides = [1, 1]} : vector<2x256xf32> to vector<2x128xf32>
    %120 = arith.addf %13, %119 : vector<2x128xf32>
    %121 = arith.negf %120 : vector<2x128xf32>
    %122 = math.exp %121 : vector<2x128xf32>
    %cst_19 = arith.constant 1.000000e+00 : f32
    %123 = vector.broadcast %cst_19 : f32 to vector<2x128xf32>
    %124 = arith.addf %123, %122 : vector<2x128xf32>
    %125 = arith.divf %123, %124 : vector<2x128xf32>
    %126 = math.tanh %120 : vector<2x128xf32>
    %127 = vector.extract_strided_slice %125 {offsets = [0, 0], sizes = [2, 32], strides = [1, 1]} : vector<2x128xf32> to vector<2x32xf32>
    %128 = vector.extract_strided_slice %125 {offsets = [0, 32], sizes = [2, 32], strides = [1, 1]} : vector<2x128xf32> to vector<2x32xf32>
    %129 = vector.extract_strided_slice %126 {offsets = [0, 64], sizes = [2, 32], strides = [1, 1]} : vector<2x128xf32> to vector<2x32xf32>
    %130 = vector.extract_strided_slice %125 {offsets = [0, 96], sizes = [2, 32], strides = [1, 1]} : vector<2x128xf32> to vector<2x32xf32>
    %131 = arith.mulf %128, %97 : vector<2x32xf32>
    %132 = arith.mulf %127, %129 : vector<2x32xf32>
    %133 = arith.addf %131, %132 : vector<2x32xf32>
    %134 = math.tanh %133 : vector<2x32xf32>
    %135 = arith.mulf %130, %134 : vector<2x32xf32>
    %136 = vector.extract_strided_slice %118 {offsets = [0, 128], sizes = [2, 128], strides = [1, 1]} : vector<2x256xf32> to vector<2x128xf32>
    %137 = arith.addf %35, %136 : vector<2x128xf32>
    %138 = arith.negf %137 : vector<2x128xf32>
    %139 = math.exp %138 : vector<2x128xf32>
    %cst_20 = arith.constant 1.000000e+00 : f32
    %140 = vector.broadcast %cst_20 : f32 to vector<2x128xf32>
    %141 = arith.addf %140, %139 : vector<2x128xf32>
    %142 = arith.divf %140, %141 : vector<2x128xf32>
    %143 = math.tanh %137 : vector<2x128xf32>
    %144 = vector.extract_strided_slice %142 {offsets = [0, 0], sizes = [2, 32], strides = [1, 1]} : vector<2x128xf32> to vector<2x32xf32>
    %145 = vector.extract_strided_slice %142 {offsets = [0, 32], sizes = [2, 32], strides = [1, 1]} : vector<2x128xf32> to vector<2x32xf32>
    %146 = vector.extract_strided_slice %143 {offsets = [0, 64], sizes = [2, 32], strides = [1, 1]} : vector<2x128xf32> to vector<2x32xf32>
    %147 = vector.extract_strided_slice %142 {offsets = [0, 96], sizes = [2, 32], strides = [1, 1]} : vector<2x128xf32> to vector<2x32xf32>
    %148 = arith.mulf %145, %114 : vector<2x32xf32>
    %149 = arith.mulf %144, %146 : vector<2x32xf32>
    %150 = arith.addf %148, %149 : vector<2x32xf32>
    %151 = math.tanh %150 : vector<2x32xf32>
    %152 = arith.mulf %147, %151 : vector<2x32xf32>
    %153 = tpu.concatenate %135, %152 in 1 : vector<2x32xf32>, vector<2x32xf32> -> vector<2x64xf32>
    %cst_21 = arith.constant dense<0.000000e+00> : vector<2x256xf32>
    %154 = tpu.matmul %153, %40, %cst_21 {dimension_numbers = #tpu.dot_dimension_numbers<[1], [0], [0], [1], [0, 0, 1, 1], [], []>} : vector<2x64xf32>, vector<64x256xf32>, vector<2x256xf32> -> vector<2x256xf32>
    %155 = vector.extract_strided_slice %154 {offsets = [0, 0], sizes = [2, 128], strides = [1, 1]} : vector<2x256xf32> to vector<2x128xf32>
    %156 = arith.addf %15, %155 : vector<2x128xf32>
    %157 = arith.negf %156 : vector<2x128xf32>
    %158 = math.exp %157 : vector<2x128xf32>
    %cst_22 = arith.constant 1.000000e+00 : f32
    %159 = vector.broadcast %cst_22 : f32 to vector<2x128xf32>
    %160 = arith.addf %159, %158 : vector<2x128xf32>
    %161 = arith.divf %159, %160 : vector<2x128xf32>
    %162 = math.tanh %156 : vector<2x128xf32>
    %163 = vector.extract_strided_slice %161 {offsets = [0, 0], sizes = [2, 32], strides = [1, 1]} : vector<2x128xf32> to vector<2x32xf32>
    %164 = vector.extract_strided_slice %161 {offsets = [0, 32], sizes = [2, 32], strides = [1, 1]} : vector<2x128xf32> to vector<2x32xf32>
    %165 = vector.extract_strided_slice %162 {offsets = [0, 64], sizes = [2, 32], strides = [1, 1]} : vector<2x128xf32> to vector<2x32xf32>
    %166 = vector.extract_strided_slice %161 {offsets = [0, 96], sizes = [2, 32], strides = [1, 1]} : vector<2x128xf32> to vector<2x32xf32>
    %167 = arith.mulf %164, %133 : vector<2x32xf32>
    %168 = arith.mulf %163, %165 : vector<2x32xf32>
    %169 = arith.addf %167, %168 : vector<2x32xf32>
    %170 = math.tanh %169 : vector<2x32xf32>
    %171 = arith.mulf %166, %170 : vector<2x32xf32>
    %172 = vector.extract_strided_slice %154 {offsets = [0, 128], sizes = [2, 128], strides = [1, 1]} : vector<2x256xf32> to vector<2x128xf32>
    %173 = arith.addf %33, %172 : vector<2x128xf32>
    %174 = arith.negf %173 : vector<2x128xf32>
    %175 = math.exp %174 : vector<2x128xf32>
    %cst_23 = arith.constant 1.000000e+00 : f32
    %176 = vector.broadcast %cst_23 : f32 to vector<2x128xf32>
    %177 = arith.addf %176, %175 : vector<2x128xf32>
    %178 = arith.divf %176, %177 : vector<2x128xf32>
    %179 = math.tanh %173 : vector<2x128xf32>
    %180 = vector.extract_strided_slice %178 {offsets = [0, 0], sizes = [2, 32], strides = [1, 1]} : vector<2x128xf32> to vector<2x32xf32>
    %181 = vector.extract_strided_slice %178 {offsets = [0, 32], sizes = [2, 32], strides = [1, 1]} : vector<2x128xf32> to vector<2x32xf32>
    %182 = vector.extract_strided_slice %179 {offsets = [0, 64], sizes = [2, 32], strides = [1, 1]} : vector<2x128xf32> to vector<2x32xf32>
    %183 = vector.extract_strided_slice %178 {offsets = [0, 96], sizes = [2, 32], strides = [1, 1]} : vector<2x128xf32> to vector<2x32xf32>
    %184 = arith.mulf %181, %150 : vector<2x32xf32>
    %185 = arith.mulf %180, %182 : vector<2x32xf32>
    %186 = arith.addf %184, %185 : vector<2x32xf32>
    %187 = math.tanh %186 : vector<2x32xf32>
    %188 = arith.mulf %183, %187 : vector<2x32xf32>
    %189 = tpu.concatenate %171, %188 in 1 : vector<2x32xf32>, vector<2x32xf32> -> vector<2x64xf32>
    %cst_24 = arith.constant dense<0.000000e+00> : vector<2x256xf32>
    %190 = tpu.matmul %189, %40, %cst_24 {dimension_numbers = #tpu.dot_dimension_numbers<[1], [0], [0], [1], [0, 0, 1, 1], [], []>} : vector<2x64xf32>, vector<64x256xf32>, vector<2x256xf32> -> vector<2x256xf32>
    %191 = vector.extract_strided_slice %190 {offsets = [0, 0], sizes = [2, 128], strides = [1, 1]} : vector<2x256xf32> to vector<2x128xf32>
    %192 = arith.addf %17, %191 : vector<2x128xf32>
    %193 = arith.negf %192 : vector<2x128xf32>
    %194 = math.exp %193 : vector<2x128xf32>
    %cst_25 = arith.constant 1.000000e+00 : f32
    %195 = vector.broadcast %cst_25 : f32 to vector<2x128xf32>
    %196 = arith.addf %195, %194 : vector<2x128xf32>
    %197 = arith.divf %195, %196 : vector<2x128xf32>
    %198 = math.tanh %192 : vector<2x128xf32>
    %199 = vector.extract_strided_slice %197 {offsets = [0, 0], sizes = [2, 32], strides = [1, 1]} : vector<2x128xf32> to vector<2x32xf32>
    %200 = vector.extract_strided_slice %197 {offsets = [0, 32], sizes = [2, 32], strides = [1, 1]} : vector<2x128xf32> to vector<2x32xf32>
    %201 = vector.extract_strided_slice %198 {offsets = [0, 64], sizes = [2, 32], strides = [1, 1]} : vector<2x128xf32> to vector<2x32xf32>
    %202 = vector.extract_strided_slice %197 {offsets = [0, 96], sizes = [2, 32], strides = [1, 1]} : vector<2x128xf32> to vector<2x32xf32>
    %203 = arith.mulf %200, %169 : vector<2x32xf32>
    %204 = arith.mulf %199, %201 : vector<2x32xf32>
    %205 = arith.addf %203, %204 : vector<2x32xf32>
    %206 = math.tanh %205 : vector<2x32xf32>
    %207 = arith.mulf %202, %206 : vector<2x32xf32>
    %208 = vector.extract_strided_slice %190 {offsets = [0, 128], sizes = [2, 128], strides = [1, 1]} : vector<2x256xf32> to vector<2x128xf32>
    %209 = arith.addf %31, %208 : vector<2x128xf32>
    %210 = arith.negf %209 : vector<2x128xf32>
    %211 = math.exp %210 : vector<2x128xf32>
    %cst_26 = arith.constant 1.000000e+00 : f32
    %212 = vector.broadcast %cst_26 : f32 to vector<2x128xf32>
    %213 = arith.addf %212, %211 : vector<2x128xf32>
    %214 = arith.divf %212, %213 : vector<2x128xf32>
    %215 = math.tanh %209 : vector<2x128xf32>
    %216 = vector.extract_strided_slice %214 {offsets = [0, 0], sizes = [2, 32], strides = [1, 1]} : vector<2x128xf32> to vector<2x32xf32>
    %217 = vector.extract_strided_slice %214 {offsets = [0, 32], sizes = [2, 32], strides = [1, 1]} : vector<2x128xf32> to vector<2x32xf32>
    %218 = vector.extract_strided_slice %215 {offsets = [0, 64], sizes = [2, 32], strides = [1, 1]} : vector<2x128xf32> to vector<2x32xf32>
    %219 = vector.extract_strided_slice %214 {offsets = [0, 96], sizes = [2, 32], strides = [1, 1]} : vector<2x128xf32> to vector<2x32xf32>
    %220 = arith.mulf %217, %186 : vector<2x32xf32>
    %221 = arith.mulf %216, %218 : vector<2x32xf32>
    %222 = arith.addf %220, %221 : vector<2x32xf32>
    %223 = math.tanh %222 : vector<2x32xf32>
    %224 = arith.mulf %219, %223 : vector<2x32xf32>
    %225 = tpu.concatenate %207, %224 in 1 : vector<2x32xf32>, vector<2x32xf32> -> vector<2x64xf32>
    %cst_27 = arith.constant dense<0.000000e+00> : vector<2x256xf32>
    %226 = tpu.matmul %225, %40, %cst_27 {dimension_numbers = #tpu.dot_dimension_numbers<[1], [0], [0], [1], [0, 0, 1, 1], [], []>} : vector<2x64xf32>, vector<64x256xf32>, vector<2x256xf32> -> vector<2x256xf32>
    %227 = vector.extract_strided_slice %226 {offsets = [0, 0], sizes = [2, 128], strides = [1, 1]} : vector<2x256xf32> to vector<2x128xf32>
    %228 = arith.addf %19, %227 : vector<2x128xf32>
    %229 = arith.negf %228 : vector<2x128xf32>
    %230 = math.exp %229 : vector<2x128xf32>
    %cst_28 = arith.constant 1.000000e+00 : f32
    %231 = vector.broadcast %cst_28 : f32 to vector<2x128xf32>
    %232 = arith.addf %231, %230 : vector<2x128xf32>
    %233 = arith.divf %231, %232 : vector<2x128xf32>
    %234 = math.tanh %228 : vector<2x128xf32>
    %235 = vector.extract_strided_slice %233 {offsets = [0, 0], sizes = [2, 32], strides = [1, 1]} : vector<2x128xf32> to vector<2x32xf32>
    %236 = vector.extract_strided_slice %233 {offsets = [0, 32], sizes = [2, 32], strides = [1, 1]} : vector<2x128xf32> to vector<2x32xf32>
    %237 = vector.extract_strided_slice %234 {offsets = [0, 64], sizes = [2, 32], strides = [1, 1]} : vector<2x128xf32> to vector<2x32xf32>
    %238 = vector.extract_strided_slice %233 {offsets = [0, 96], sizes = [2, 32], strides = [1, 1]} : vector<2x128xf32> to vector<2x32xf32>
    %239 = arith.mulf %236, %205 : vector<2x32xf32>
    %240 = arith.mulf %235, %237 : vector<2x32xf32>
    %241 = arith.addf %239, %240 : vector<2x32xf32>
    %242 = math.tanh %241 : vector<2x32xf32>
    %243 = arith.mulf %238, %242 : vector<2x32xf32>
    %244 = vector.extract_strided_slice %226 {offsets = [0, 128], sizes = [2, 128], strides = [1, 1]} : vector<2x256xf32> to vector<2x128xf32>
    %245 = arith.addf %29, %244 : vector<2x128xf32>
    %246 = arith.negf %245 : vector<2x128xf32>
    %247 = math.exp %246 : vector<2x128xf32>
    %cst_29 = arith.constant 1.000000e+00 : f32
    %248 = vector.broadcast %cst_29 : f32 to vector<2x128xf32>
    %249 = arith.addf %248, %247 : vector<2x128xf32>
    %250 = arith.divf %248, %249 : vector<2x128xf32>
    %251 = math.tanh %245 : vector<2x128xf32>
    %252 = vector.extract_strided_slice %250 {offsets = [0, 0], sizes = [2, 32], strides = [1, 1]} : vector<2x128xf32> to vector<2x32xf32>
    %253 = vector.extract_strided_slice %250 {offsets = [0, 32], sizes = [2, 32], strides = [1, 1]} : vector<2x128xf32> to vector<2x32xf32>
    %254 = vector.extract_strided_slice %251 {offsets = [0, 64], sizes = [2, 32], strides = [1, 1]} : vector<2x128xf32> to vector<2x32xf32>
    %255 = vector.extract_strided_slice %250 {offsets = [0, 96], sizes = [2, 32], strides = [1, 1]} : vector<2x128xf32> to vector<2x32xf32>
    %256 = arith.mulf %253, %222 : vector<2x32xf32>
    %257 = arith.mulf %252, %254 : vector<2x32xf32>
    %258 = arith.addf %256, %257 : vector<2x32xf32>
    %259 = math.tanh %258 : vector<2x32xf32>
    %260 = arith.mulf %255, %259 : vector<2x32xf32>
    %261 = tpu.concatenate %243, %260 in 1 : vector<2x32xf32>, vector<2x32xf32> -> vector<2x64xf32>
    %cst_30 = arith.constant dense<0.000000e+00> : vector<2x256xf32>
    %262 = tpu.matmul %261, %40, %cst_30 {dimension_numbers = #tpu.dot_dimension_numbers<[1], [0], [0], [1], [0, 0, 1, 1], [], []>} : vector<2x64xf32>, vector<64x256xf32>, vector<2x256xf32> -> vector<2x256xf32>
    %263 = vector.extract_strided_slice %262 {offsets = [0, 0], sizes = [2, 128], strides = [1, 1]} : vector<2x256xf32> to vector<2x128xf32>
    %264 = arith.addf %21, %263 : vector<2x128xf32>
    %265 = arith.negf %264 : vector<2x128xf32>
    %266 = math.exp %265 : vector<2x128xf32>
    %cst_31 = arith.constant 1.000000e+00 : f32
    %267 = vector.broadcast %cst_31 : f32 to vector<2x128xf32>
    %268 = arith.addf %267, %266 : vector<2x128xf32>
    %269 = arith.divf %267, %268 : vector<2x128xf32>
    %270 = math.tanh %264 : vector<2x128xf32>
    %271 = vector.extract_strided_slice %269 {offsets = [0, 0], sizes = [2, 32], strides = [1, 1]} : vector<2x128xf32> to vector<2x32xf32>
    %272 = vector.extract_strided_slice %269 {offsets = [0, 32], sizes = [2, 32], strides = [1, 1]} : vector<2x128xf32> to vector<2x32xf32>
    %273 = vector.extract_strided_slice %270 {offsets = [0, 64], sizes = [2, 32], strides = [1, 1]} : vector<2x128xf32> to vector<2x32xf32>
    %274 = vector.extract_strided_slice %269 {offsets = [0, 96], sizes = [2, 32], strides = [1, 1]} : vector<2x128xf32> to vector<2x32xf32>
    %275 = arith.mulf %272, %241 : vector<2x32xf32>
    %276 = arith.mulf %271, %273 : vector<2x32xf32>
    %277 = arith.addf %275, %276 : vector<2x32xf32>
    %278 = math.tanh %277 : vector<2x32xf32>
    %279 = arith.mulf %274, %278 : vector<2x32xf32>
    %280 = vector.extract_strided_slice %262 {offsets = [0, 128], sizes = [2, 128], strides = [1, 1]} : vector<2x256xf32> to vector<2x128xf32>
    %281 = arith.addf %27, %280 : vector<2x128xf32>
    %282 = arith.negf %281 : vector<2x128xf32>
    %283 = math.exp %282 : vector<2x128xf32>
    %cst_32 = arith.constant 1.000000e+00 : f32
    %284 = vector.broadcast %cst_32 : f32 to vector<2x128xf32>
    %285 = arith.addf %284, %283 : vector<2x128xf32>
    %286 = arith.divf %284, %285 : vector<2x128xf32>
    %287 = math.tanh %281 : vector<2x128xf32>
    %288 = vector.extract_strided_slice %286 {offsets = [0, 0], sizes = [2, 32], strides = [1, 1]} : vector<2x128xf32> to vector<2x32xf32>
    %289 = vector.extract_strided_slice %286 {offsets = [0, 32], sizes = [2, 32], strides = [1, 1]} : vector<2x128xf32> to vector<2x32xf32>
    %290 = vector.extract_strided_slice %287 {offsets = [0, 64], sizes = [2, 32], strides = [1, 1]} : vector<2x128xf32> to vector<2x32xf32>
    %291 = vector.extract_strided_slice %286 {offsets = [0, 96], sizes = [2, 32], strides = [1, 1]} : vector<2x128xf32> to vector<2x32xf32>
    %292 = arith.mulf %289, %258 : vector<2x32xf32>
    %293 = arith.mulf %288, %290 : vector<2x32xf32>
    %294 = arith.addf %292, %293 : vector<2x32xf32>
    %295 = math.tanh %294 : vector<2x32xf32>
    %296 = arith.mulf %291, %295 : vector<2x32xf32>
    %297 = tpu.concatenate %279, %296 in 1 : vector<2x32xf32>, vector<2x32xf32> -> vector<2x64xf32>
    %cst_33 = arith.constant dense<0.000000e+00> : vector<2x256xf32>
    %298 = tpu.matmul %297, %40, %cst_33 {dimension_numbers = #tpu.dot_dimension_numbers<[1], [0], [0], [1], [0, 0, 1, 1], [], []>} : vector<2x64xf32>, vector<64x256xf32>, vector<2x256xf32> -> vector<2x256xf32>
    %299 = vector.extract_strided_slice %298 {offsets = [0, 0], sizes = [2, 128], strides = [1, 1]} : vector<2x256xf32> to vector<2x128xf32>
    %300 = arith.addf %23, %299 : vector<2x128xf32>
    %301 = arith.negf %300 : vector<2x128xf32>
    %302 = math.exp %301 : vector<2x128xf32>
    %cst_34 = arith.constant 1.000000e+00 : f32
    %303 = vector.broadcast %cst_34 : f32 to vector<2x128xf32>
    %304 = arith.addf %303, %302 : vector<2x128xf32>
    %305 = arith.divf %303, %304 : vector<2x128xf32>
    %306 = math.tanh %300 : vector<2x128xf32>
    %307 = vector.extract_strided_slice %305 {offsets = [0, 0], sizes = [2, 32], strides = [1, 1]} : vector<2x128xf32> to vector<2x32xf32>
    %308 = vector.extract_strided_slice %305 {offsets = [0, 32], sizes = [2, 32], strides = [1, 1]} : vector<2x128xf32> to vector<2x32xf32>
    %309 = vector.extract_strided_slice %306 {offsets = [0, 64], sizes = [2, 32], strides = [1, 1]} : vector<2x128xf32> to vector<2x32xf32>
    %310 = vector.extract_strided_slice %305 {offsets = [0, 96], sizes = [2, 32], strides = [1, 1]} : vector<2x128xf32> to vector<2x32xf32>
    %311 = arith.mulf %308, %277 : vector<2x32xf32>
    %312 = arith.mulf %307, %309 : vector<2x32xf32>
    %313 = arith.addf %311, %312 : vector<2x32xf32>
    %314 = math.tanh %313 : vector<2x32xf32>
    %315 = arith.mulf %310, %314 : vector<2x32xf32>
    %316 = vector.extract_strided_slice %298 {offsets = [0, 128], sizes = [2, 128], strides = [1, 1]} : vector<2x256xf32> to vector<2x128xf32>
    %317 = arith.addf %25, %316 : vector<2x128xf32>
    %318 = arith.negf %317 : vector<2x128xf32>
    %319 = math.exp %318 : vector<2x128xf32>
    %cst_35 = arith.constant 1.000000e+00 : f32
    %320 = vector.broadcast %cst_35 : f32 to vector<2x128xf32>
    %321 = arith.addf %320, %319 : vector<2x128xf32>
    %322 = arith.divf %320, %321 : vector<2x128xf32>
    %323 = math.tanh %317 : vector<2x128xf32>
    %324 = vector.extract_strided_slice %322 {offsets = [0, 0], sizes = [2, 32], strides = [1, 1]} : vector<2x128xf32> to vector<2x32xf32>
    %325 = vector.extract_strided_slice %322 {offsets = [0, 32], sizes = [2, 32], strides = [1, 1]} : vector<2x128xf32> to vector<2x32xf32>
    %326 = vector.extract_strided_slice %323 {offsets = [0, 64], sizes = [2, 32], strides = [1, 1]} : vector<2x128xf32> to vector<2x32xf32>
    %327 = vector.extract_strided_slice %322 {offsets = [0, 96], sizes = [2, 32], strides = [1, 1]} : vector<2x128xf32> to vector<2x32xf32>
    %328 = arith.mulf %325, %294 : vector<2x32xf32>
    %329 = arith.mulf %324, %326 : vector<2x32xf32>
    %330 = arith.addf %328, %329 : vector<2x32xf32>
    %331 = math.tanh %330 : vector<2x32xf32>
    %332 = arith.mulf %327, %331 : vector<2x32xf32>
    %333 = tpu.concatenate %63, %332 in 1 : vector<2x32xf32>, vector<2x32xf32> -> vector<2x64xf32>
    %334 = tpu.concatenate %99, %296 in 1 : vector<2x32xf32>, vector<2x32xf32> -> vector<2x64xf32>
    %335 = tpu.concatenate %135, %260 in 1 : vector<2x32xf32>, vector<2x32xf32> -> vector<2x64xf32>
    %336 = tpu.concatenate %171, %224 in 1 : vector<2x32xf32>, vector<2x32xf32> -> vector<2x64xf32>
    %337 = tpu.concatenate %207, %188 in 1 : vector<2x32xf32>, vector<2x32xf32> -> vector<2x64xf32>
    %338 = tpu.concatenate %243, %152 in 1 : vector<2x32xf32>, vector<2x32xf32> -> vector<2x64xf32>
    %339 = tpu.concatenate %279, %116 in 1 : vector<2x32xf32>, vector<2x32xf32> -> vector<2x64xf32>
    %340 = tpu.concatenate %315, %80 in 1 : vector<2x32xf32>, vector<2x32xf32> -> vector<2x64xf32>
    %341 = vector.shape_cast %333 : vector<2x64xf32> to vector<2x1x64xf32>
    %342 = vector.shape_cast %334 : vector<2x64xf32> to vector<2x1x64xf32>
    %343 = vector.shape_cast %335 : vector<2x64xf32> to vector<2x1x64xf32>
    %344 = vector.shape_cast %336 : vector<2x64xf32> to vector<2x1x64xf32>
    %345 = vector.shape_cast %337 : vector<2x64xf32> to vector<2x1x64xf32>
    %346 = vector.shape_cast %338 : vector<2x64xf32> to vector<2x1x64xf32>
    %347 = vector.shape_cast %339 : vector<2x64xf32> to vector<2x1x64xf32>
    %348 = vector.shape_cast %340 : vector<2x64xf32> to vector<2x1x64xf32>
    %349 = tpu.concatenate %341, %342, %343, %344, %345, %346, %347, %348 in 1 : vector<2x1x64xf32>, vector<2x1x64xf32>, vector<2x1x64xf32>, vector<2x1x64xf32>, vector<2x1x64xf32>, vector<2x1x64xf32>, vector<2x1x64xf32>, vector<2x1x64xf32> -> vector<2x8x64xf32>
    %350 = vector.shape_cast %349 : vector<2x8x64xf32> to vector<16x64xf32>
    %c0_36 = arith.constant 0 : index
    %c0_37 = arith.constant 0 : index
    %351 = vector.load %arg4[%c0_36, %c0_37] : memref<64x256xf32, #tpu.memory_space<vmem>>, vector<64x256xf32>
    %cst_38 = arith.constant dense<0.000000e+00> : vector<16x256xf32>
    %352 = tpu.matmul %350, %351, %cst_38 {dimension_numbers = #tpu.dot_dimension_numbers<[1], [0], [0], [1], [0, 0, 1, 1], [], []>} : vector<16x64xf32>, vector<64x256xf32>, vector<16x256xf32> -> vector<16x256xf32>
    %c0_39 = arith.constant 0 : index
    %c0_40 = arith.constant 0 : index
    %353 = vector.load %arg6[%c0_39, %c0_40] : memref<1x256xf32, #tpu.memory_space<vmem>>, vector<1x256xf32>
    %354 = vector.broadcast %353 : vector<1x256xf32> to vector<16x256xf32>
    %355 = arith.addf %352, %354 : vector<16x256xf32>
    %356 = vector.shape_cast %355 : vector<16x256xf32> to vector<2x8x256xf32>
    %357 = vector.extract_strided_slice %356 {offsets = [0, 0, 0], sizes = [2, 1, 128], strides = [1, 1, 1]} : vector<2x8x256xf32> to vector<2x1x128xf32>
    %358 = vector.shape_cast %357 : vector<2x1x128xf32> to vector<2x128xf32>
    %359 = vector.extract_strided_slice %356 {offsets = [0, 1, 0], sizes = [2, 1, 128], strides = [1, 1, 1]} : vector<2x8x256xf32> to vector<2x1x128xf32>
    %360 = vector.shape_cast %359 : vector<2x1x128xf32> to vector<2x128xf32>
    %361 = vector.extract_strided_slice %356 {offsets = [0, 2, 0], sizes = [2, 1, 128], strides = [1, 1, 1]} : vector<2x8x256xf32> to vector<2x1x128xf32>
    %362 = vector.shape_cast %361 : vector<2x1x128xf32> to vector<2x128xf32>
    %363 = vector.extract_strided_slice %356 {offsets = [0, 3, 0], sizes = [2, 1, 128], strides = [1, 1, 1]} : vector<2x8x256xf32> to vector<2x1x128xf32>
    %364 = vector.shape_cast %363 : vector<2x1x128xf32> to vector<2x128xf32>
    %365 = vector.extract_strided_slice %356 {offsets = [0, 4, 0], sizes = [2, 1, 128], strides = [1, 1, 1]} : vector<2x8x256xf32> to vector<2x1x128xf32>
    %366 = vector.shape_cast %365 : vector<2x1x128xf32> to vector<2x128xf32>
    %367 = vector.extract_strided_slice %356 {offsets = [0, 5, 0], sizes = [2, 1, 128], strides = [1, 1, 1]} : vector<2x8x256xf32> to vector<2x1x128xf32>
    %368 = vector.shape_cast %367 : vector<2x1x128xf32> to vector<2x128xf32>
    %369 = vector.extract_strided_slice %356 {offsets = [0, 6, 0], sizes = [2, 1, 128], strides = [1, 1, 1]} : vector<2x8x256xf32> to vector<2x1x128xf32>
    %370 = vector.shape_cast %369 : vector<2x1x128xf32> to vector<2x128xf32>
    %371 = vector.extract_strided_slice %356 {offsets = [0, 7, 0], sizes = [2, 1, 128], strides = [1, 1, 1]} : vector<2x8x256xf32> to vector<2x1x128xf32>
    %372 = vector.shape_cast %371 : vector<2x1x128xf32> to vector<2x128xf32>
    %373 = vector.extract_strided_slice %356 {offsets = [0, 0, 128], sizes = [2, 1, 128], strides = [1, 1, 1]} : vector<2x8x256xf32> to vector<2x1x128xf32>
    %374 = vector.shape_cast %373 : vector<2x1x128xf32> to vector<2x128xf32>
    %375 = vector.extract_strided_slice %356 {offsets = [0, 1, 128], sizes = [2, 1, 128], strides = [1, 1, 1]} : vector<2x8x256xf32> to vector<2x1x128xf32>
    %376 = vector.shape_cast %375 : vector<2x1x128xf32> to vector<2x128xf32>
    %377 = vector.extract_strided_slice %356 {offsets = [0, 2, 128], sizes = [2, 1, 128], strides = [1, 1, 1]} : vector<2x8x256xf32> to vector<2x1x128xf32>
    %378 = vector.shape_cast %377 : vector<2x1x128xf32> to vector<2x128xf32>
    %379 = vector.extract_strided_slice %356 {offsets = [0, 3, 128], sizes = [2, 1, 128], strides = [1, 1, 1]} : vector<2x8x256xf32> to vector<2x1x128xf32>
    %380 = vector.shape_cast %379 : vector<2x1x128xf32> to vector<2x128xf32>
    %381 = vector.extract_strided_slice %356 {offsets = [0, 4, 128], sizes = [2, 1, 128], strides = [1, 1, 1]} : vector<2x8x256xf32> to vector<2x1x128xf32>
    %382 = vector.shape_cast %381 : vector<2x1x128xf32> to vector<2x128xf32>
    %383 = vector.extract_strided_slice %356 {offsets = [0, 5, 128], sizes = [2, 1, 128], strides = [1, 1, 1]} : vector<2x8x256xf32> to vector<2x1x128xf32>
    %384 = vector.shape_cast %383 : vector<2x1x128xf32> to vector<2x128xf32>
    %385 = vector.extract_strided_slice %356 {offsets = [0, 6, 128], sizes = [2, 1, 128], strides = [1, 1, 1]} : vector<2x8x256xf32> to vector<2x1x128xf32>
    %386 = vector.shape_cast %385 : vector<2x1x128xf32> to vector<2x128xf32>
    %387 = vector.extract_strided_slice %356 {offsets = [0, 7, 128], sizes = [2, 1, 128], strides = [1, 1, 1]} : vector<2x8x256xf32> to vector<2x1x128xf32>
    %388 = vector.shape_cast %387 : vector<2x1x128xf32> to vector<2x128xf32>
    %c0_41 = arith.constant 0 : index
    %c0_42 = arith.constant 0 : index
    %389 = vector.load %arg5[%c0_41, %c0_42] : memref<64x256xf32, #tpu.memory_space<vmem>>, vector<64x256xf32>
    %cst_43 = arith.constant 0.000000e+00 : f32
    %390 = vector.broadcast %cst_43 : f32 to vector<2x32xf32>
    %cst_44 = arith.constant 0.000000e+00 : f32
    %391 = vector.broadcast %cst_44 : f32 to vector<2x32xf32>
    %cst_45 = arith.constant 0.000000e+00 : f32
    %392 = vector.broadcast %cst_45 : f32 to vector<2x32xf32>
    %cst_46 = arith.constant 0.000000e+00 : f32
    %393 = vector.broadcast %cst_46 : f32 to vector<2x32xf32>
    %394 = tpu.concatenate %390, %392 in 1 : vector<2x32xf32>, vector<2x32xf32> -> vector<2x64xf32>
    %cst_47 = arith.constant dense<0.000000e+00> : vector<2x256xf32>
    %395 = tpu.matmul %394, %389, %cst_47 {dimension_numbers = #tpu.dot_dimension_numbers<[1], [0], [0], [1], [0, 0, 1, 1], [], []>} : vector<2x64xf32>, vector<64x256xf32>, vector<2x256xf32> -> vector<2x256xf32>
    %396 = vector.extract_strided_slice %395 {offsets = [0, 0], sizes = [2, 128], strides = [1, 1]} : vector<2x256xf32> to vector<2x128xf32>
    %397 = arith.addf %358, %396 : vector<2x128xf32>
    %398 = arith.negf %397 : vector<2x128xf32>
    %399 = math.exp %398 : vector<2x128xf32>
    %cst_48 = arith.constant 1.000000e+00 : f32
    %400 = vector.broadcast %cst_48 : f32 to vector<2x128xf32>
    %401 = arith.addf %400, %399 : vector<2x128xf32>
    %402 = arith.divf %400, %401 : vector<2x128xf32>
    %403 = math.tanh %397 : vector<2x128xf32>
    %404 = vector.extract_strided_slice %402 {offsets = [0, 0], sizes = [2, 32], strides = [1, 1]} : vector<2x128xf32> to vector<2x32xf32>
    %405 = vector.extract_strided_slice %402 {offsets = [0, 32], sizes = [2, 32], strides = [1, 1]} : vector<2x128xf32> to vector<2x32xf32>
    %406 = vector.extract_strided_slice %403 {offsets = [0, 64], sizes = [2, 32], strides = [1, 1]} : vector<2x128xf32> to vector<2x32xf32>
    %407 = vector.extract_strided_slice %402 {offsets = [0, 96], sizes = [2, 32], strides = [1, 1]} : vector<2x128xf32> to vector<2x32xf32>
    %408 = arith.mulf %405, %391 : vector<2x32xf32>
    %409 = arith.mulf %404, %406 : vector<2x32xf32>
    %410 = arith.addf %408, %409 : vector<2x32xf32>
    %411 = math.tanh %410 : vector<2x32xf32>
    %412 = arith.mulf %407, %411 : vector<2x32xf32>
    %413 = vector.extract_strided_slice %395 {offsets = [0, 128], sizes = [2, 128], strides = [1, 1]} : vector<2x256xf32> to vector<2x128xf32>
    %414 = arith.addf %388, %413 : vector<2x128xf32>
    %415 = arith.negf %414 : vector<2x128xf32>
    %416 = math.exp %415 : vector<2x128xf32>
    %cst_49 = arith.constant 1.000000e+00 : f32
    %417 = vector.broadcast %cst_49 : f32 to vector<2x128xf32>
    %418 = arith.addf %417, %416 : vector<2x128xf32>
    %419 = arith.divf %417, %418 : vector<2x128xf32>
    %420 = math.tanh %414 : vector<2x128xf32>
    %421 = vector.extract_strided_slice %419 {offsets = [0, 0], sizes = [2, 32], strides = [1, 1]} : vector<2x128xf32> to vector<2x32xf32>
    %422 = vector.extract_strided_slice %419 {offsets = [0, 32], sizes = [2, 32], strides = [1, 1]} : vector<2x128xf32> to vector<2x32xf32>
    %423 = vector.extract_strided_slice %420 {offsets = [0, 64], sizes = [2, 32], strides = [1, 1]} : vector<2x128xf32> to vector<2x32xf32>
    %424 = vector.extract_strided_slice %419 {offsets = [0, 96], sizes = [2, 32], strides = [1, 1]} : vector<2x128xf32> to vector<2x32xf32>
    %425 = arith.mulf %422, %393 : vector<2x32xf32>
    %426 = arith.mulf %421, %423 : vector<2x32xf32>
    %427 = arith.addf %425, %426 : vector<2x32xf32>
    %428 = math.tanh %427 : vector<2x32xf32>
    %429 = arith.mulf %424, %428 : vector<2x32xf32>
    %430 = tpu.concatenate %412, %429 in 1 : vector<2x32xf32>, vector<2x32xf32> -> vector<2x64xf32>
    %cst_50 = arith.constant dense<0.000000e+00> : vector<2x256xf32>
    %431 = tpu.matmul %430, %389, %cst_50 {dimension_numbers = #tpu.dot_dimension_numbers<[1], [0], [0], [1], [0, 0, 1, 1], [], []>} : vector<2x64xf32>, vector<64x256xf32>, vector<2x256xf32> -> vector<2x256xf32>
    %432 = vector.extract_strided_slice %431 {offsets = [0, 0], sizes = [2, 128], strides = [1, 1]} : vector<2x256xf32> to vector<2x128xf32>
    %433 = arith.addf %360, %432 : vector<2x128xf32>
    %434 = arith.negf %433 : vector<2x128xf32>
    %435 = math.exp %434 : vector<2x128xf32>
    %cst_51 = arith.constant 1.000000e+00 : f32
    %436 = vector.broadcast %cst_51 : f32 to vector<2x128xf32>
    %437 = arith.addf %436, %435 : vector<2x128xf32>
    %438 = arith.divf %436, %437 : vector<2x128xf32>
    %439 = math.tanh %433 : vector<2x128xf32>
    %440 = vector.extract_strided_slice %438 {offsets = [0, 0], sizes = [2, 32], strides = [1, 1]} : vector<2x128xf32> to vector<2x32xf32>
    %441 = vector.extract_strided_slice %438 {offsets = [0, 32], sizes = [2, 32], strides = [1, 1]} : vector<2x128xf32> to vector<2x32xf32>
    %442 = vector.extract_strided_slice %439 {offsets = [0, 64], sizes = [2, 32], strides = [1, 1]} : vector<2x128xf32> to vector<2x32xf32>
    %443 = vector.extract_strided_slice %438 {offsets = [0, 96], sizes = [2, 32], strides = [1, 1]} : vector<2x128xf32> to vector<2x32xf32>
    %444 = arith.mulf %441, %410 : vector<2x32xf32>
    %445 = arith.mulf %440, %442 : vector<2x32xf32>
    %446 = arith.addf %444, %445 : vector<2x32xf32>
    %447 = math.tanh %446 : vector<2x32xf32>
    %448 = arith.mulf %443, %447 : vector<2x32xf32>
    %449 = vector.extract_strided_slice %431 {offsets = [0, 128], sizes = [2, 128], strides = [1, 1]} : vector<2x256xf32> to vector<2x128xf32>
    %450 = arith.addf %386, %449 : vector<2x128xf32>
    %451 = arith.negf %450 : vector<2x128xf32>
    %452 = math.exp %451 : vector<2x128xf32>
    %cst_52 = arith.constant 1.000000e+00 : f32
    %453 = vector.broadcast %cst_52 : f32 to vector<2x128xf32>
    %454 = arith.addf %453, %452 : vector<2x128xf32>
    %455 = arith.divf %453, %454 : vector<2x128xf32>
    %456 = math.tanh %450 : vector<2x128xf32>
    %457 = vector.extract_strided_slice %455 {offsets = [0, 0], sizes = [2, 32], strides = [1, 1]} : vector<2x128xf32> to vector<2x32xf32>
    %458 = vector.extract_strided_slice %455 {offsets = [0, 32], sizes = [2, 32], strides = [1, 1]} : vector<2x128xf32> to vector<2x32xf32>
    %459 = vector.extract_strided_slice %456 {offsets = [0, 64], sizes = [2, 32], strides = [1, 1]} : vector<2x128xf32> to vector<2x32xf32>
    %460 = vector.extract_strided_slice %455 {offsets = [0, 96], sizes = [2, 32], strides = [1, 1]} : vector<2x128xf32> to vector<2x32xf32>
    %461 = arith.mulf %458, %427 : vector<2x32xf32>
    %462 = arith.mulf %457, %459 : vector<2x32xf32>
    %463 = arith.addf %461, %462 : vector<2x32xf32>
    %464 = math.tanh %463 : vector<2x32xf32>
    %465 = arith.mulf %460, %464 : vector<2x32xf32>
    %466 = tpu.concatenate %448, %465 in 1 : vector<2x32xf32>, vector<2x32xf32> -> vector<2x64xf32>
    %cst_53 = arith.constant dense<0.000000e+00> : vector<2x256xf32>
    %467 = tpu.matmul %466, %389, %cst_53 {dimension_numbers = #tpu.dot_dimension_numbers<[1], [0], [0], [1], [0, 0, 1, 1], [], []>} : vector<2x64xf32>, vector<64x256xf32>, vector<2x256xf32> -> vector<2x256xf32>
    %468 = vector.extract_strided_slice %467 {offsets = [0, 0], sizes = [2, 128], strides = [1, 1]} : vector<2x256xf32> to vector<2x128xf32>
    %469 = arith.addf %362, %468 : vector<2x128xf32>
    %470 = arith.negf %469 : vector<2x128xf32>
    %471 = math.exp %470 : vector<2x128xf32>
    %cst_54 = arith.constant 1.000000e+00 : f32
    %472 = vector.broadcast %cst_54 : f32 to vector<2x128xf32>
    %473 = arith.addf %472, %471 : vector<2x128xf32>
    %474 = arith.divf %472, %473 : vector<2x128xf32>
    %475 = math.tanh %469 : vector<2x128xf32>
    %476 = vector.extract_strided_slice %474 {offsets = [0, 0], sizes = [2, 32], strides = [1, 1]} : vector<2x128xf32> to vector<2x32xf32>
    %477 = vector.extract_strided_slice %474 {offsets = [0, 32], sizes = [2, 32], strides = [1, 1]} : vector<2x128xf32> to vector<2x32xf32>
    %478 = vector.extract_strided_slice %475 {offsets = [0, 64], sizes = [2, 32], strides = [1, 1]} : vector<2x128xf32> to vector<2x32xf32>
    %479 = vector.extract_strided_slice %474 {offsets = [0, 96], sizes = [2, 32], strides = [1, 1]} : vector<2x128xf32> to vector<2x32xf32>
    %480 = arith.mulf %477, %446 : vector<2x32xf32>
    %481 = arith.mulf %476, %478 : vector<2x32xf32>
    %482 = arith.addf %480, %481 : vector<2x32xf32>
    %483 = math.tanh %482 : vector<2x32xf32>
    %484 = arith.mulf %479, %483 : vector<2x32xf32>
    %485 = vector.extract_strided_slice %467 {offsets = [0, 128], sizes = [2, 128], strides = [1, 1]} : vector<2x256xf32> to vector<2x128xf32>
    %486 = arith.addf %384, %485 : vector<2x128xf32>
    %487 = arith.negf %486 : vector<2x128xf32>
    %488 = math.exp %487 : vector<2x128xf32>
    %cst_55 = arith.constant 1.000000e+00 : f32
    %489 = vector.broadcast %cst_55 : f32 to vector<2x128xf32>
    %490 = arith.addf %489, %488 : vector<2x128xf32>
    %491 = arith.divf %489, %490 : vector<2x128xf32>
    %492 = math.tanh %486 : vector<2x128xf32>
    %493 = vector.extract_strided_slice %491 {offsets = [0, 0], sizes = [2, 32], strides = [1, 1]} : vector<2x128xf32> to vector<2x32xf32>
    %494 = vector.extract_strided_slice %491 {offsets = [0, 32], sizes = [2, 32], strides = [1, 1]} : vector<2x128xf32> to vector<2x32xf32>
    %495 = vector.extract_strided_slice %492 {offsets = [0, 64], sizes = [2, 32], strides = [1, 1]} : vector<2x128xf32> to vector<2x32xf32>
    %496 = vector.extract_strided_slice %491 {offsets = [0, 96], sizes = [2, 32], strides = [1, 1]} : vector<2x128xf32> to vector<2x32xf32>
    %497 = arith.mulf %494, %463 : vector<2x32xf32>
    %498 = arith.mulf %493, %495 : vector<2x32xf32>
    %499 = arith.addf %497, %498 : vector<2x32xf32>
    %500 = math.tanh %499 : vector<2x32xf32>
    %501 = arith.mulf %496, %500 : vector<2x32xf32>
    %502 = tpu.concatenate %484, %501 in 1 : vector<2x32xf32>, vector<2x32xf32> -> vector<2x64xf32>
    %cst_56 = arith.constant dense<0.000000e+00> : vector<2x256xf32>
    %503 = tpu.matmul %502, %389, %cst_56 {dimension_numbers = #tpu.dot_dimension_numbers<[1], [0], [0], [1], [0, 0, 1, 1], [], []>} : vector<2x64xf32>, vector<64x256xf32>, vector<2x256xf32> -> vector<2x256xf32>
    %504 = vector.extract_strided_slice %503 {offsets = [0, 0], sizes = [2, 128], strides = [1, 1]} : vector<2x256xf32> to vector<2x128xf32>
    %505 = arith.addf %364, %504 : vector<2x128xf32>
    %506 = arith.negf %505 : vector<2x128xf32>
    %507 = math.exp %506 : vector<2x128xf32>
    %cst_57 = arith.constant 1.000000e+00 : f32
    %508 = vector.broadcast %cst_57 : f32 to vector<2x128xf32>
    %509 = arith.addf %508, %507 : vector<2x128xf32>
    %510 = arith.divf %508, %509 : vector<2x128xf32>
    %511 = math.tanh %505 : vector<2x128xf32>
    %512 = vector.extract_strided_slice %510 {offsets = [0, 0], sizes = [2, 32], strides = [1, 1]} : vector<2x128xf32> to vector<2x32xf32>
    %513 = vector.extract_strided_slice %510 {offsets = [0, 32], sizes = [2, 32], strides = [1, 1]} : vector<2x128xf32> to vector<2x32xf32>
    %514 = vector.extract_strided_slice %511 {offsets = [0, 64], sizes = [2, 32], strides = [1, 1]} : vector<2x128xf32> to vector<2x32xf32>
    %515 = vector.extract_strided_slice %510 {offsets = [0, 96], sizes = [2, 32], strides = [1, 1]} : vector<2x128xf32> to vector<2x32xf32>
    %516 = arith.mulf %513, %482 : vector<2x32xf32>
    %517 = arith.mulf %512, %514 : vector<2x32xf32>
    %518 = arith.addf %516, %517 : vector<2x32xf32>
    %519 = math.tanh %518 : vector<2x32xf32>
    %520 = arith.mulf %515, %519 : vector<2x32xf32>
    %521 = vector.extract_strided_slice %503 {offsets = [0, 128], sizes = [2, 128], strides = [1, 1]} : vector<2x256xf32> to vector<2x128xf32>
    %522 = arith.addf %382, %521 : vector<2x128xf32>
    %523 = arith.negf %522 : vector<2x128xf32>
    %524 = math.exp %523 : vector<2x128xf32>
    %cst_58 = arith.constant 1.000000e+00 : f32
    %525 = vector.broadcast %cst_58 : f32 to vector<2x128xf32>
    %526 = arith.addf %525, %524 : vector<2x128xf32>
    %527 = arith.divf %525, %526 : vector<2x128xf32>
    %528 = math.tanh %522 : vector<2x128xf32>
    %529 = vector.extract_strided_slice %527 {offsets = [0, 0], sizes = [2, 32], strides = [1, 1]} : vector<2x128xf32> to vector<2x32xf32>
    %530 = vector.extract_strided_slice %527 {offsets = [0, 32], sizes = [2, 32], strides = [1, 1]} : vector<2x128xf32> to vector<2x32xf32>
    %531 = vector.extract_strided_slice %528 {offsets = [0, 64], sizes = [2, 32], strides = [1, 1]} : vector<2x128xf32> to vector<2x32xf32>
    %532 = vector.extract_strided_slice %527 {offsets = [0, 96], sizes = [2, 32], strides = [1, 1]} : vector<2x128xf32> to vector<2x32xf32>
    %533 = arith.mulf %530, %499 : vector<2x32xf32>
    %534 = arith.mulf %529, %531 : vector<2x32xf32>
    %535 = arith.addf %533, %534 : vector<2x32xf32>
    %536 = math.tanh %535 : vector<2x32xf32>
    %537 = arith.mulf %532, %536 : vector<2x32xf32>
    %538 = tpu.concatenate %520, %537 in 1 : vector<2x32xf32>, vector<2x32xf32> -> vector<2x64xf32>
    %cst_59 = arith.constant dense<0.000000e+00> : vector<2x256xf32>
    %539 = tpu.matmul %538, %389, %cst_59 {dimension_numbers = #tpu.dot_dimension_numbers<[1], [0], [0], [1], [0, 0, 1, 1], [], []>} : vector<2x64xf32>, vector<64x256xf32>, vector<2x256xf32> -> vector<2x256xf32>
    %540 = vector.extract_strided_slice %539 {offsets = [0, 0], sizes = [2, 128], strides = [1, 1]} : vector<2x256xf32> to vector<2x128xf32>
    %541 = arith.addf %366, %540 : vector<2x128xf32>
    %542 = arith.negf %541 : vector<2x128xf32>
    %543 = math.exp %542 : vector<2x128xf32>
    %cst_60 = arith.constant 1.000000e+00 : f32
    %544 = vector.broadcast %cst_60 : f32 to vector<2x128xf32>
    %545 = arith.addf %544, %543 : vector<2x128xf32>
    %546 = arith.divf %544, %545 : vector<2x128xf32>
    %547 = math.tanh %541 : vector<2x128xf32>
    %548 = vector.extract_strided_slice %546 {offsets = [0, 0], sizes = [2, 32], strides = [1, 1]} : vector<2x128xf32> to vector<2x32xf32>
    %549 = vector.extract_strided_slice %546 {offsets = [0, 32], sizes = [2, 32], strides = [1, 1]} : vector<2x128xf32> to vector<2x32xf32>
    %550 = vector.extract_strided_slice %547 {offsets = [0, 64], sizes = [2, 32], strides = [1, 1]} : vector<2x128xf32> to vector<2x32xf32>
    %551 = vector.extract_strided_slice %546 {offsets = [0, 96], sizes = [2, 32], strides = [1, 1]} : vector<2x128xf32> to vector<2x32xf32>
    %552 = arith.mulf %549, %518 : vector<2x32xf32>
    %553 = arith.mulf %548, %550 : vector<2x32xf32>
    %554 = arith.addf %552, %553 : vector<2x32xf32>
    %555 = math.tanh %554 : vector<2x32xf32>
    %556 = arith.mulf %551, %555 : vector<2x32xf32>
    %557 = vector.extract_strided_slice %539 {offsets = [0, 128], sizes = [2, 128], strides = [1, 1]} : vector<2x256xf32> to vector<2x128xf32>
    %558 = arith.addf %380, %557 : vector<2x128xf32>
    %559 = arith.negf %558 : vector<2x128xf32>
    %560 = math.exp %559 : vector<2x128xf32>
    %cst_61 = arith.constant 1.000000e+00 : f32
    %561 = vector.broadcast %cst_61 : f32 to vector<2x128xf32>
    %562 = arith.addf %561, %560 : vector<2x128xf32>
    %563 = arith.divf %561, %562 : vector<2x128xf32>
    %564 = math.tanh %558 : vector<2x128xf32>
    %565 = vector.extract_strided_slice %563 {offsets = [0, 0], sizes = [2, 32], strides = [1, 1]} : vector<2x128xf32> to vector<2x32xf32>
    %566 = vector.extract_strided_slice %563 {offsets = [0, 32], sizes = [2, 32], strides = [1, 1]} : vector<2x128xf32> to vector<2x32xf32>
    %567 = vector.extract_strided_slice %564 {offsets = [0, 64], sizes = [2, 32], strides = [1, 1]} : vector<2x128xf32> to vector<2x32xf32>
    %568 = vector.extract_strided_slice %563 {offsets = [0, 96], sizes = [2, 32], strides = [1, 1]} : vector<2x128xf32> to vector<2x32xf32>
    %569 = arith.mulf %566, %535 : vector<2x32xf32>
    %570 = arith.mulf %565, %567 : vector<2x32xf32>
    %571 = arith.addf %569, %570 : vector<2x32xf32>
    %572 = math.tanh %571 : vector<2x32xf32>
    %573 = arith.mulf %568, %572 : vector<2x32xf32>
    %574 = tpu.concatenate %556, %573 in 1 : vector<2x32xf32>, vector<2x32xf32> -> vector<2x64xf32>
    %cst_62 = arith.constant dense<0.000000e+00> : vector<2x256xf32>
    %575 = tpu.matmul %574, %389, %cst_62 {dimension_numbers = #tpu.dot_dimension_numbers<[1], [0], [0], [1], [0, 0, 1, 1], [], []>} : vector<2x64xf32>, vector<64x256xf32>, vector<2x256xf32> -> vector<2x256xf32>
    %576 = vector.extract_strided_slice %575 {offsets = [0, 0], sizes = [2, 128], strides = [1, 1]} : vector<2x256xf32> to vector<2x128xf32>
    %577 = arith.addf %368, %576 : vector<2x128xf32>
    %578 = arith.negf %577 : vector<2x128xf32>
    %579 = math.exp %578 : vector<2x128xf32>
    %cst_63 = arith.constant 1.000000e+00 : f32
    %580 = vector.broadcast %cst_63 : f32 to vector<2x128xf32>
    %581 = arith.addf %580, %579 : vector<2x128xf32>
    %582 = arith.divf %580, %581 : vector<2x128xf32>
    %583 = math.tanh %577 : vector<2x128xf32>
    %584 = vector.extract_strided_slice %582 {offsets = [0, 0], sizes = [2, 32], strides = [1, 1]} : vector<2x128xf32> to vector<2x32xf32>
    %585 = vector.extract_strided_slice %582 {offsets = [0, 32], sizes = [2, 32], strides = [1, 1]} : vector<2x128xf32> to vector<2x32xf32>
    %586 = vector.extract_strided_slice %583 {offsets = [0, 64], sizes = [2, 32], strides = [1, 1]} : vector<2x128xf32> to vector<2x32xf32>
    %587 = vector.extract_strided_slice %582 {offsets = [0, 96], sizes = [2, 32], strides = [1, 1]} : vector<2x128xf32> to vector<2x32xf32>
    %588 = arith.mulf %585, %554 : vector<2x32xf32>
    %589 = arith.mulf %584, %586 : vector<2x32xf32>
    %590 = arith.addf %588, %589 : vector<2x32xf32>
    %591 = math.tanh %590 : vector<2x32xf32>
    %592 = arith.mulf %587, %591 : vector<2x32xf32>
    %593 = vector.extract_strided_slice %575 {offsets = [0, 128], sizes = [2, 128], strides = [1, 1]} : vector<2x256xf32> to vector<2x128xf32>
    %594 = arith.addf %378, %593 : vector<2x128xf32>
    %595 = arith.negf %594 : vector<2x128xf32>
    %596 = math.exp %595 : vector<2x128xf32>
    %cst_64 = arith.constant 1.000000e+00 : f32
    %597 = vector.broadcast %cst_64 : f32 to vector<2x128xf32>
    %598 = arith.addf %597, %596 : vector<2x128xf32>
    %599 = arith.divf %597, %598 : vector<2x128xf32>
    %600 = math.tanh %594 : vector<2x128xf32>
    %601 = vector.extract_strided_slice %599 {offsets = [0, 0], sizes = [2, 32], strides = [1, 1]} : vector<2x128xf32> to vector<2x32xf32>
    %602 = vector.extract_strided_slice %599 {offsets = [0, 32], sizes = [2, 32], strides = [1, 1]} : vector<2x128xf32> to vector<2x32xf32>
    %603 = vector.extract_strided_slice %600 {offsets = [0, 64], sizes = [2, 32], strides = [1, 1]} : vector<2x128xf32> to vector<2x32xf32>
    %604 = vector.extract_strided_slice %599 {offsets = [0, 96], sizes = [2, 32], strides = [1, 1]} : vector<2x128xf32> to vector<2x32xf32>
    %605 = arith.mulf %602, %571 : vector<2x32xf32>
    %606 = arith.mulf %601, %603 : vector<2x32xf32>
    %607 = arith.addf %605, %606 : vector<2x32xf32>
    %608 = math.tanh %607 : vector<2x32xf32>
    %609 = arith.mulf %604, %608 : vector<2x32xf32>
    %610 = tpu.concatenate %592, %609 in 1 : vector<2x32xf32>, vector<2x32xf32> -> vector<2x64xf32>
    %cst_65 = arith.constant dense<0.000000e+00> : vector<2x256xf32>
    %611 = tpu.matmul %610, %389, %cst_65 {dimension_numbers = #tpu.dot_dimension_numbers<[1], [0], [0], [1], [0, 0, 1, 1], [], []>} : vector<2x64xf32>, vector<64x256xf32>, vector<2x256xf32> -> vector<2x256xf32>
    %612 = vector.extract_strided_slice %611 {offsets = [0, 0], sizes = [2, 128], strides = [1, 1]} : vector<2x256xf32> to vector<2x128xf32>
    %613 = arith.addf %370, %612 : vector<2x128xf32>
    %614 = arith.negf %613 : vector<2x128xf32>
    %615 = math.exp %614 : vector<2x128xf32>
    %cst_66 = arith.constant 1.000000e+00 : f32
    %616 = vector.broadcast %cst_66 : f32 to vector<2x128xf32>
    %617 = arith.addf %616, %615 : vector<2x128xf32>
    %618 = arith.divf %616, %617 : vector<2x128xf32>
    %619 = math.tanh %613 : vector<2x128xf32>
    %620 = vector.extract_strided_slice %618 {offsets = [0, 0], sizes = [2, 32], strides = [1, 1]} : vector<2x128xf32> to vector<2x32xf32>
    %621 = vector.extract_strided_slice %618 {offsets = [0, 32], sizes = [2, 32], strides = [1, 1]} : vector<2x128xf32> to vector<2x32xf32>
    %622 = vector.extract_strided_slice %619 {offsets = [0, 64], sizes = [2, 32], strides = [1, 1]} : vector<2x128xf32> to vector<2x32xf32>
    %623 = vector.extract_strided_slice %618 {offsets = [0, 96], sizes = [2, 32], strides = [1, 1]} : vector<2x128xf32> to vector<2x32xf32>
    %624 = arith.mulf %621, %590 : vector<2x32xf32>
    %625 = arith.mulf %620, %622 : vector<2x32xf32>
    %626 = arith.addf %624, %625 : vector<2x32xf32>
    %627 = math.tanh %626 : vector<2x32xf32>
    %628 = arith.mulf %623, %627 : vector<2x32xf32>
    %629 = vector.extract_strided_slice %611 {offsets = [0, 128], sizes = [2, 128], strides = [1, 1]} : vector<2x256xf32> to vector<2x128xf32>
    %630 = arith.addf %376, %629 : vector<2x128xf32>
    %631 = arith.negf %630 : vector<2x128xf32>
    %632 = math.exp %631 : vector<2x128xf32>
    %cst_67 = arith.constant 1.000000e+00 : f32
    %633 = vector.broadcast %cst_67 : f32 to vector<2x128xf32>
    %634 = arith.addf %633, %632 : vector<2x128xf32>
    %635 = arith.divf %633, %634 : vector<2x128xf32>
    %636 = math.tanh %630 : vector<2x128xf32>
    %637 = vector.extract_strided_slice %635 {offsets = [0, 0], sizes = [2, 32], strides = [1, 1]} : vector<2x128xf32> to vector<2x32xf32>
    %638 = vector.extract_strided_slice %635 {offsets = [0, 32], sizes = [2, 32], strides = [1, 1]} : vector<2x128xf32> to vector<2x32xf32>
    %639 = vector.extract_strided_slice %636 {offsets = [0, 64], sizes = [2, 32], strides = [1, 1]} : vector<2x128xf32> to vector<2x32xf32>
    %640 = vector.extract_strided_slice %635 {offsets = [0, 96], sizes = [2, 32], strides = [1, 1]} : vector<2x128xf32> to vector<2x32xf32>
    %641 = arith.mulf %638, %607 : vector<2x32xf32>
    %642 = arith.mulf %637, %639 : vector<2x32xf32>
    %643 = arith.addf %641, %642 : vector<2x32xf32>
    %644 = math.tanh %643 : vector<2x32xf32>
    %645 = arith.mulf %640, %644 : vector<2x32xf32>
    %646 = tpu.concatenate %628, %645 in 1 : vector<2x32xf32>, vector<2x32xf32> -> vector<2x64xf32>
    %cst_68 = arith.constant dense<0.000000e+00> : vector<2x256xf32>
    %647 = tpu.matmul %646, %389, %cst_68 {dimension_numbers = #tpu.dot_dimension_numbers<[1], [0], [0], [1], [0, 0, 1, 1], [], []>} : vector<2x64xf32>, vector<64x256xf32>, vector<2x256xf32> -> vector<2x256xf32>
    %648 = vector.extract_strided_slice %647 {offsets = [0, 0], sizes = [2, 128], strides = [1, 1]} : vector<2x256xf32> to vector<2x128xf32>
    %649 = arith.addf %372, %648 : vector<2x128xf32>
    %650 = arith.negf %649 : vector<2x128xf32>
    %651 = math.exp %650 : vector<2x128xf32>
    %cst_69 = arith.constant 1.000000e+00 : f32
    %652 = vector.broadcast %cst_69 : f32 to vector<2x128xf32>
    %653 = arith.addf %652, %651 : vector<2x128xf32>
    %654 = arith.divf %652, %653 : vector<2x128xf32>
    %655 = math.tanh %649 : vector<2x128xf32>
    %656 = vector.extract_strided_slice %654 {offsets = [0, 0], sizes = [2, 32], strides = [1, 1]} : vector<2x128xf32> to vector<2x32xf32>
    %657 = vector.extract_strided_slice %654 {offsets = [0, 32], sizes = [2, 32], strides = [1, 1]} : vector<2x128xf32> to vector<2x32xf32>
    %658 = vector.extract_strided_slice %655 {offsets = [0, 64], sizes = [2, 32], strides = [1, 1]} : vector<2x128xf32> to vector<2x32xf32>
    %659 = vector.extract_strided_slice %654 {offsets = [0, 96], sizes = [2, 32], strides = [1, 1]} : vector<2x128xf32> to vector<2x32xf32>
    %660 = arith.mulf %657, %626 : vector<2x32xf32>
    %661 = arith.mulf %656, %658 : vector<2x32xf32>
    %662 = arith.addf %660, %661 : vector<2x32xf32>
    %663 = math.tanh %662 : vector<2x32xf32>
    %664 = arith.mulf %659, %663 : vector<2x32xf32>
    %665 = vector.extract_strided_slice %647 {offsets = [0, 128], sizes = [2, 128], strides = [1, 1]} : vector<2x256xf32> to vector<2x128xf32>
    %666 = arith.addf %374, %665 : vector<2x128xf32>
    %667 = arith.negf %666 : vector<2x128xf32>
    %668 = math.exp %667 : vector<2x128xf32>
    %cst_70 = arith.constant 1.000000e+00 : f32
    %669 = vector.broadcast %cst_70 : f32 to vector<2x128xf32>
    %670 = arith.addf %669, %668 : vector<2x128xf32>
    %671 = arith.divf %669, %670 : vector<2x128xf32>
    %672 = math.tanh %666 : vector<2x128xf32>
    %673 = vector.extract_strided_slice %671 {offsets = [0, 0], sizes = [2, 32], strides = [1, 1]} : vector<2x128xf32> to vector<2x32xf32>
    %674 = vector.extract_strided_slice %671 {offsets = [0, 32], sizes = [2, 32], strides = [1, 1]} : vector<2x128xf32> to vector<2x32xf32>
    %675 = vector.extract_strided_slice %672 {offsets = [0, 64], sizes = [2, 32], strides = [1, 1]} : vector<2x128xf32> to vector<2x32xf32>
    %676 = vector.extract_strided_slice %671 {offsets = [0, 96], sizes = [2, 32], strides = [1, 1]} : vector<2x128xf32> to vector<2x32xf32>
    %677 = arith.mulf %674, %643 : vector<2x32xf32>
    %678 = arith.mulf %673, %675 : vector<2x32xf32>
    %679 = arith.addf %677, %678 : vector<2x32xf32>
    %680 = math.tanh %679 : vector<2x32xf32>
    %681 = arith.mulf %676, %680 : vector<2x32xf32>
    %682 = tpu.concatenate %664, %681 in 1 : vector<2x32xf32>, vector<2x32xf32> -> vector<2x64xf32>
    %c0_71 = arith.constant 0 : index
    %c0_72 = arith.constant 0 : index
    %683 = vector.load %arg7[%c0_71, %c0_72] : memref<64x5xf32, #tpu.memory_space<vmem>>, vector<64x5xf32>
    %cst_73 = arith.constant dense<0.000000e+00> : vector<2x5xf32>
    %684 = tpu.matmul %682, %683, %cst_73 {dimension_numbers = #tpu.dot_dimension_numbers<[1], [0], [0], [1], [0, 0, 1, 1], [], []>} : vector<2x64xf32>, vector<64x5xf32>, vector<2x5xf32> -> vector<2x5xf32>
    %c0_74 = arith.constant 0 : index
    %c0_75 = arith.constant 0 : index
    %685 = vector.load %arg8[%c0_74, %c0_75] : memref<1x5xf32, #tpu.memory_space<vmem>>, vector<1x5xf32>
    %686 = vector.broadcast %685 : vector<1x5xf32> to vector<2x5xf32>
    %687 = arith.addf %684, %686 : vector<2x5xf32>
    %c0_76 = arith.constant 0 : index
    %c0_77 = arith.constant 0 : index
    %688 = vector.load %arg9[%c0_76, %c0_77] : memref<2x5xf32, #tpu.memory_space<vmem>>, vector<2x5xf32>
    tpu.vector_store %arg9[%c0_76, %c0_77], %687 {strides = array<i32>} : memref<2x5xf32, #tpu.memory_space<vmem>>, vector<2x5xf32>,
    return
  }
}

</mosaic_0001>

<llo_original>
// kernel: lstm_classifier_forward.1
$region0: #{lstm_classifier_forward.1}
  #allocation0 [shape = 'u32[]', space=smem, size = 0x4, offset = 0x4, fixed_abs, tag = 'smem constant byte address 0x4 - core index']
  #allocation1 [shape = 'u32[144,128]{1,0:T(1,128)}', space=vmem, size = 0x12000, scoped, tag = 'internal scratch']
  %s0 = inlined_call_operand.vmem [shape: f32[2,8,8], index: 0, kind: input, shape index: {}]
  %s1 = inlined_call_operand.vmem [shape: f32[8,256], index: 1, kind: input, shape index: {}]
  %s2 = inlined_call_operand.vmem [shape: f32[64,256], index: 2, kind: input, shape index: {}]
  %s3 = inlined_call_operand.vmem [shape: f32[1,256], index: 3, kind: input, shape index: {}]
  %s4 = inlined_call_operand.vmem [shape: f32[64,256], index: 4, kind: input, shape index: {}]
  %s5 = inlined_call_operand.vmem [shape: f32[64,256], index: 5, kind: input, shape index: {}]
  %s6 = inlined_call_operand.vmem [shape: f32[1,256], index: 6, kind: input, shape index: {}]
  %s7 = inlined_call_operand.vmem [shape: f32[64,5], index: 7, kind: input, shape index: {}]
  %s8 = inlined_call_operand.vmem [shape: f32[1,5], index: 8, kind: input, shape index: {}]
  %s9 = inlined_call_operand.hbm [shape: f32[2,5], index: 9, kind: output, shape index: {}]
  %s10 = sld [smem:[#allocation0]]
  $region46: #{lstm_classifier_forward.1} parent=0
    _
  %s12 = ssub.s32 1, %s10
  %s13 = scalar_select 0, %s12, %s10
  $region1: #{lstm_classifier_forward.1} parent=0
    #allocation2 [shape = 'u8[1024]{0}', space=vmem, size = 0x400, scoped, tag = 'output window, operand 0, single buffered']
    #allocation3 [shape = 's32[1]{0}', space=sflag, size = 0x4, scoped, tag = 'scoped memory for lstm_classifier_forward.1']
    %14 = vsyncpa [#allocation3], 0
    // Predicated region
    $region2: #{lstm_classifier_forward.1} parent=1 // pred_check
      _
    $region3: #{lstm_classifier_forward.1} parent=1 // pred_check_branch
      %16 = sbr.rel (0) target = $region5
    $region4: #{lstm_classifier_forward.1} parent=1 // pred_region
      _
    $region5: #{lstm_classifier_forward.1} parent=1 // pred_fallthru
      _
    // Predicated region
    $region6: #{lstm_classifier_forward.1} parent=1 // pred_check
      _
    $region7: #{lstm_classifier_forward.1} parent=1 // pred_check_branch
      %18 = sbr.rel (0) target = $region9
    $region8: #{lstm_classifier_forward.1} parent=1 // pred_region
      _
    $region9: #{lstm_classifier_forward.1} parent=1 // pred_fallthru
      _
    // Predicated region
    $region10: #{lstm_classifier_forward.1} parent=1 // pred_check
      _
    $region11: #{lstm_classifier_forward.1} parent=1 // pred_check_branch
      %20 = sbr.rel (0) target = $region13
    $region12: #{lstm_classifier_forward.1} parent=1 // pred_region
      _
    $region13: #{lstm_classifier_forward.1} parent=1 // pred_fallthru
      _
    // Predicated region
    $region14: #{lstm_classifier_forward.1} parent=1 // pred_check
      _
    $region15: #{lstm_classifier_forward.1} parent=1 // pred_check_branch
      %22 = sbr.rel (0) target = $region17
    $region16: #{lstm_classifier_forward.1} parent=1 // pred_region
      _
    $region17: #{lstm_classifier_forward.1} parent=1 // pred_fallthru
      _
    // Predicated region
    $region18: #{lstm_classifier_forward.1} parent=1 // pred_check
      _
    $region19: #{lstm_classifier_forward.1} parent=1 // pred_check_branch
      %24 = sbr.rel (0) target = $region21
    $region20: #{lstm_classifier_forward.1} parent=1 // pred_region
      _
    $region21: #{lstm_classifier_forward.1} parent=1 // pred_fallthru
      _
    // Predicated region
    $region22: #{lstm_classifier_forward.1} parent=1 // pred_check
      _
    $region23: #{lstm_classifier_forward.1} parent=1 // pred_check_branch
      %26 = sbr.rel (0) target = $region25
    $region24: #{lstm_classifier_forward.1} parent=1 // pred_region
      _
    $region25: #{lstm_classifier_forward.1} parent=1 // pred_fallthru
      _
    // Predicated region
    $region26: #{lstm_classifier_forward.1} parent=1 // pred_check
      _
    $region27: #{lstm_classifier_forward.1} parent=1 // pred_check_branch
      %28 = sbr.rel (0) target = $region29
    $region28: #{lstm_classifier_forward.1} parent=1 // pred_region
      _
    $region29: #{lstm_classifier_forward.1} parent=1 // pred_fallthru
      _
    // Predicated region
    $region30: #{lstm_classifier_forward.1} parent=1 // pred_check
      _
    $region31: #{lstm_classifier_forward.1} parent=1 // pred_check_branch
      %30 = sbr.rel (0) target = $region33
    $region32: #{lstm_classifier_forward.1} parent=1 // pred_region
      _
    $region33: #{lstm_classifier_forward.1} parent=1 // pred_fallthru
      _
    // Predicated region
    $region34: #{lstm_classifier_forward.1} parent=1 // pred_check
      _
    $region35: #{lstm_classifier_forward.1} parent=1 // pred_check_branch
      %32 = sbr.rel (0) target = $region37
    $region36: #{lstm_classifier_forward.1} parent=1 // pred_region
      _
    $region37: #{lstm_classifier_forward.1} parent=1 // pred_fallthru
      _
    %v33 = vld [vmem:[%s0] sm:$0xff]
    %v34 = vld [vmem:[%s0 + $0x8] sm:$0xff]
    %v35 = vld [vmem:[%s1] sm:$0xff]
    %v36 = vld [vmem:[%s1 + $0x8] sm:$0xff]
    %v37 = vld [vmem:[%s3] sm:$0x3]
    %v39 = vlaneseq
    %v40 = vshrl.u32 %v39, 7
    %v41 = vsub.s32 0, %v40
    %v42 = vrot.slane %v37, %v41
    %v43 = vlaneseq
    %v44 = vshrl.u32 %v43, 7
    %v45 = vsub.s32 1, %v44
    %v46 = vrot.slane %v37, %v45
    %vm49 = vcmask 64512
    %v51 = vsel %vm49, %v33, 0
    %v54 = vsel %vm49, %v34, 0
    %56 = vmatprep.subr.mxu0 0.0
    %57 = vmatpush1.msra.mxu0 0.0
    %58 = vmatprep.subr.mxu0 0.0
    %59 = vmatpush1.msra.mxu0 0.0
    %60 = vmatprep.subr.mxu0 0.0
    %61 = vmatpush1.msra.mxu0 0.0
    %62 = vmatprep.subr.mxu0 0.0
    %63 = vmatpush1.msra.mxu0 0.0
    %64 = vmatprep.subr.mxu0 0.0
    %65 = vmatpush1.msra.mxu0 0.0
    %66 = vmatprep.subr.mxu0 0.0
    %67 = vmatpush1.msra.mxu0 0.0
    %68 = vmatprep.subr.mxu0 0.0
    %69 = vmatpush1.msra.mxu0 0.0
    %70 = vmatprep.subr.mxu0 0.0
    %71 = vmatpush1.msra.mxu0 0.0
    %72 = vmatprep.subr.mxu0 0.0
    %73 = vmatpush1.msra.mxu0 0.0
    %74 = vmatprep.subr.mxu0 0.0
    %75 = vmatpush1.msra.mxu0 0.0
    %76 = vmatprep.subr.mxu0 0.0
    %77 = vmatpush1.msra.mxu0 0.0
    %78 = vmatprep.subr.mxu0 0.0
    %79 = vmatpush1.msra.mxu0 0.0
    %80 = vmatprep.subr.mxu0 0.0
    %81 = vmatpush1.msra.mxu0 0.0
    %82 = vmatprep.subr.mxu0 0.0
    %83 = vmatpush1.msra.mxu0 0.0
    %84 = vmatprep.subr.mxu0 0.0
    %85 = vmatpush1.msra.mxu0 0.0
    %86 = vmatprep.subr.mxu0 %v36
    %87 = vmatpush1.msra.mxu0 %v35
    %88 = vmatprep.subr.mxu0 0.0
    %89 = vmatpush2.msra.mxu0 0.0
    %90 = vmatprep.subr.mxu0 0.0
    %91 = vmatpush2.msra.mxu0 0.0
    %92 = vmatprep.subr.mxu0 0.0
    %93 = vmatpush2.msra.mxu0 0.0
    %94 = vmatprep.subr.mxu0 0.0
    %95 = vmatpush2.msra.mxu0 0.0
    %96 = vmatprep.subr.mxu0 0.0
    %97 = vmatpush2.msra.mxu0 0.0
    %98 = vmatprep.subr.mxu0 0.0
    %99 = vmatpush2.msra.mxu0 0.0
    %100 = vmatprep.subr.mxu0 0.0
    %101 = vmatpush2.msra.mxu0 0.0
    %102 = vmatprep.subr.mxu0 0.0
    %103 = vmatpush2.msra.mxu0 0.0
    %104 = vmatprep.subr.mxu0 0.0
    %105 = vmatpush2.msra.mxu0 0.0
    %106 = vmatprep.subr.mxu0 0.0
    %107 = vmatpush2.msra.mxu0 0.0
    %108 = vmatprep.subr.mxu0 0.0
    %109 = vmatpush2.msra.mxu0 0.0
    %110 = vmatprep.subr.mxu0 0.0
    %111 = vmatpush2.msra.mxu0 0.0
    %112 = vmatprep.subr.mxu0 0.0
    %113 = vmatpush2.msra.mxu0 0.0
    %114 = vmatprep.subr.mxu0 0.0
    %115 = vmatpush2.msra.mxu0 0.0
    %116 = vmatprep.subr.mxu0 0.0
    %117 = vmatpush2.msra.mxu0 0.0
    %118 = vmatprep.subr.mxu0 0.0
    %119 = vmatpush2.msra.mxu0 0.0
    %120 = vmatprep.mubr.f32.mxu0 0.0
    %121 = vmatmul.mubr.f32.gmra.mxu0 %v51
    %v122 = vpop.f32.mrf.mxu0
    %v123 = vadd.f32 %v42, %v122
    %v124 = vpop.f32.mrf.mxu0
    %v125 = vadd.f32 %v46, %v124
    %126 = vmatprep.mubr.f32.mxu0 0.0
    %127 = vmatmul.mubr.f32.gmra.mxu0 %v54
    %v128 = vpop.f32.mrf.mxu0
    %v129 = vadd.f32 %v42, %v128
    %v130 = vpop.f32.mrf.mxu0
    %v131 = vadd.f32 %v46, %v130
    %132 = vdwg.mxu0
    %v133 = vld [vmem:[%s2] sm:$0xff]
    %v134 = vld [vmem:[%s2 + $0x8] sm:$0xff]
    %v135 = vld [vmem:[%s2 + $0x10] sm:$0xff]
    %v136 = vld [vmem:[%s2 + $0x18] sm:$0xff]
    %v137 = vld [vmem:[%s2 + $0x20] sm:$0xff]
    %v138 = vld [vmem:[%s2 + $0x28] sm:$0xff]
    %v139 = vld [vmem:[%s2 + $0x30] sm:$0xff]
    %v140 = vld [vmem:[%s2 + $0x38] sm:$0xff]
    %v141 = vld [vmem:[%s2 + $0x40] sm:$0xff]
    %v142 = vld [vmem:[%s2 + $0x48] sm:$0xff]
    %v143 = vld [vmem:[%s2 + $0x50] sm:$0xff]
    %v144 = vld [vmem:[%s2 + $0x58] sm:$0xff]
    %v145 = vld [vmem:[%s2 + $0x60] sm:$0xff]
    %v146 = vld [vmem:[%s2 + $0x68] sm:$0xff]
    %v147 = vld [vmem:[%s2 + $0x70] sm:$0xff]
    %v148 = vld [vmem:[%s2 + $0x78] sm:$0xff]
    %vm149 = vcmask 523264
    %v151 = vsel %vm149, 0.0, 0
    %153 = vmatprep.subr.mxu0 0.0
    %154 = vmatpush1.msra.mxu0 0.0
    %155 = vmatprep.subr.mxu0 0.0
    %156 = vmatpush1.msra.mxu0 0.0
    %157 = vmatprep.subr.mxu0 0.0
    %158 = vmatpush1.msra.mxu0 0.0
    %159 = vmatprep.subr.mxu0 0.0
    %160 = vmatpush1.msra.mxu0 0.0
    %161 = vmatprep.subr.mxu0 0.0
    %162 = vmatpush1.msra.mxu0 0.0
    %163 = vmatprep.subr.mxu0 0.0
    %164 = vmatpush1.msra.mxu0 0.0
    %165 = vmatprep.subr.mxu0 0.0
    %166 = vmatpush1.msra.mxu0 0.0
    %167 = vmatprep.subr.mxu0 0.0
    %168 = vmatpush1.msra.mxu0 0.0
    %169 = vmatprep.subr.mxu0 %v148
    %170 = vmatpush1.msra.mxu0 %v147
    %171 = vmatprep.subr.mxu0 %v146
    %172 = vmatpush1.msra.mxu0 %v145
    %173 = vmatprep.subr.mxu0 %v144
    %174 = vmatpush1.msra.mxu0 %v143
    %175 = vmatprep.subr.mxu0 %v142
    %176 = vmatpush1.msra.mxu0 %v141
    %177 = vmatprep.subr.mxu0 %v140
    %178 = vmatpush1.msra.mxu0 %v139
    %179 = vmatprep.subr.mxu0 %v138
    %180 = vmatpush1.msra.mxu0 %v137
    %181 = vmatprep.subr.mxu0 %v136
    %182 = vmatpush1.msra.mxu0 %v135
    %183 = vmatprep.subr.mxu0 %v134
    %184 = vmatpush1.msra.mxu0 %v133
    %185 = vmatprep.subr.mxu0 0.0
    %186 = vmatpush2.msra.mxu0 0.0
    %187 = vmatprep.subr.mxu0 0.0
    %188 = vmatpush2.msra.mxu0 0.0
    %189 = vmatprep.subr.mxu0 0.0
    %190 = vmatpush2.msra.mxu0 0.0
    %191 = vmatprep.subr.mxu0 0.0
    %192 = vmatpush2.msra.mxu0 0.0
    %193 = vmatprep.subr.mxu0 0.0
    %194 = vmatpush2.msra.mxu0 0.0
    %195 = vmatprep.subr.mxu0 0.0
    %196 = vmatpush2.msra.mxu0 0.0
    %197 = vmatprep.subr.mxu0 0.0
    %198 = vmatpush2.msra.mxu0 0.0
    %199 = vmatprep.subr.mxu0 0.0
    %200 = vmatpush2.msra.mxu0 0.0
    %201 = vmatprep.subr.mxu0 0.0
    %202 = vmatpush2.msra.mxu0 0.0
    %203 = vmatprep.subr.mxu0 0.0
    %204 = vmatpush2.msra.mxu0 0.0
    %205 = vmatprep.subr.mxu0 0.0
    %206 = vmatpush2.msra.mxu0 0.0
    %207 = vmatprep.subr.mxu0 0.0
    %208 = vmatpush2.msra.mxu0 0.0
    %209 = vmatprep.subr.mxu0 0.0
    %210 = vmatpush2.msra.mxu0 0.0
    %211 = vmatprep.subr.mxu0 0.0
    %212 = vmatpush2.msra.mxu0 0.0
    %213 = vmatprep.subr.mxu0 0.0
    %214 = vmatpush2.msra.mxu0 0.0
    %215 = vmatprep.subr.mxu0 0.0
    %216 = vmatpush2.msra.mxu0 0.0
    %217 = vmatprep.mubr.f32.mxu0 0.0
    %218 = vmatmul.mubr.f32.gmra.mxu0 %v151
    %v219 = vpop.f32.mrf.mxu0
    %v220 = vadd.f32 0.0, %v219
    %v221 = vpop.f32.mrf.mxu0
    %v222 = vadd.f32 0.0, %v221
    %223 = vdwg.mxu0
    %v225 = vrot.slane %v220, 1
    %v228 = vadd.f32 %v123, %v220
    %v229 = vadd.f32 %v129, %v225
    %v230 = vxor.u32 %v228, 2147483648
    %v231 = vxor.u32 %v229, 2147483648
    %v232 = vmul.f32 %v230, 1.442695
    %v233 = vpow.pop %v232
    %v234 = vmul.f32 %v231, 1.442695
    %v235 = vpow.pop %v234
    %v236 = vadd.f32 %v233, 1.0
    %v237 = vadd.f32 %v235, 1.0
    %v238 = vrcp.pop %v236
    %v239 = vmul.f32 1.0, %v238
    %v240 = vrcp.pop %v237
    %v241 = vmul.f32 1.0, %v240
    %v242 = vtanh.pop %v228
    %v243 = vtanh.pop %v229
    %v244 = vmul.f32 %v239, 0.0
    %v245 = vmul.f32 %v241, 0.0
    %248 = vrot.lane.b32.xlu0 %v242, 64
    %v249 = vpop.permute.xlu0 %248
    %250 = vrot.lane.b32.xlu0 %v243, 64
    %v251 = vpop.permute.xlu0 %250
    %v254 = vmul.f32 %v239, %v249
    %v255 = vmul.f32 %v241, %v251
    %258 = vrot.lane.b32.xlu0 %v254, 32
    %v259 = vpop.permute.xlu0 %258
    %260 = vrot.lane.b32.xlu0 %v255, 32
    %v261 = vpop.permute.xlu0 %260
    %v264 = vadd.f32 %v244, %v259
    %v265 = vadd.f32 %v245, %v261
    %v266 = vtanh.pop %v264
    %v267 = vtanh.pop %v265
    %270 = vrot.lane.b32.xlu0 %v266, 64
    %v271 = vpop.permute.xlu0 %270
    %272 = vrot.lane.b32.xlu0 %v267, 64
    %v273 = vpop.permute.xlu0 %272
    %v276 = vmul.f32 %v239, %v271
    %v277 = vmul.f32 %v241, %v273
    %v279 = vrot.slane %v222, 1
    %v280 = vrot.slane %v222, 2
    %v283 = vadd.f32 %v125, %v279
    %v284 = vadd.f32 %v131, %v280
    %v285 = vxor.u32 %v283, 2147483648
    %v286 = vxor.u32 %v284, 2147483648
    %v287 = vmul.f32 %v285, 1.442695
    %v288 = vpow.pop %v287
    %v289 = vmul.f32 %v286, 1.442695
    %v290 = vpow.pop %v289
    %v291 = vadd.f32 %v288, 1.0
    %v292 = vadd.f32 %v290, 1.0
    %v293 = vrcp.pop %v291
    %v294 = vmul.f32 1.0, %v293
    %v295 = vrcp.pop %v292
    %v296 = vmul.f32 1.0, %v295
    %v297 = vtanh.pop %v283
    %v298 = vtanh.pop %v284
    %v299 = vmul.f32 %v294, 0.0
    %v300 = vmul.f32 %v296, 0.0
    %303 = vrot.lane.b32.xlu0 %v297, 64
    %v304 = vpop.permute.xlu0 %303
    %305 = vrot.lane.b32.xlu0 %v298, 64
    %v306 = vpop.permute.xlu0 %305
    %v309 = vmul.f32 %v294, %v304
    %v310 = vmul.f32 %v296, %v306
    %313 = vrot.lane.b32.xlu0 %v309, 32
    %v314 = vpop.permute.xlu0 %313
    %315 = vrot.lane.b32.xlu0 %v310, 32
    %v316 = vpop.permute.xlu0 %315
    %v319 = vadd.f32 %v299, %v314
    %v320 = vadd.f32 %v300, %v316
    %v321 = vtanh.pop %v319
    %v322 = vtanh.pop %v320
    %325 = vrot.lane.b32.xlu0 %v321, 64
    %v326 = vpop.permute.xlu0 %325
    %327 = vrot.lane.b32.xlu0 %v322, 64
    %v328 = vpop.permute.xlu0 %327
    %v331 = vmul.f32 %v294, %v326
    %v332 = vmul.f32 %v296, %v328
    %v335 = vrot.slane %v277, 7
    %vm336 = vcmask 1041409
    %v337 = vsel %vm336, %v335, %v276
    %338 = vrot.lane.b32.xlu0 %v337, 32
    %v339 = vpop.permute.xlu0 %338
    %v343 = vrot.slane %v331, 7
    %v344 = vrot.slane %v332, 6
    %v345 = vsel %vm336, %v344, %v343
    %346 = vrot.lane.b32.xlu0 %v345, 64
    %v347 = vpop.permute.xlu0 %346
    %vm349 = vcmask 261120
    %v350 = vsel %vm349, %v339, %v347
    %v352 = vsel %vm149, %v350, 0
    %354 = vmatprep.subr.mxu0 0.0
    %355 = vmatpush1.msra.mxu0 0.0
    %356 = vmatprep.subr.mxu0 0.0
    %357 = vmatpush1.msra.mxu0 0.0
    %358 = vmatprep.subr.mxu0 0.0
    %359 = vmatpush1.msra.mxu0 0.0
    %360 = vmatprep.subr.mxu0 0.0
    %361 = vmatpush1.msra.mxu0 0.0
    %362 = vmatprep.subr.mxu0 0.0
    %363 = vmatpush1.msra.mxu0 0.0
    %364 = vmatprep.subr.mxu0 0.0
    %365 = vmatpush1.msra.mxu0 0.0
    %366 = vmatprep.subr.mxu0 0.0
    %367 = vmatpush1.msra.mxu0 0.0
    %368 = vmatprep.subr.mxu0 0.0
    %369 = vmatpush1.msra.mxu0 0.0
    %370 = vmatprep.subr.mxu0 %v148
    %371 = vmatpush1.msra.mxu0 %v147
    %372 = vmatprep.subr.mxu0 %v146
    %373 = vmatpush1.msra.mxu0 %v145
    %374 = vmatprep.subr.mxu0 %v144
    %375 = vmatpush1.msra.mxu0 %v143
    %376 = vmatprep.subr.mxu0 %v142
    %377 = vmatpush1.msra.mxu0 %v141
    %378 = vmatprep.subr.mxu0 %v140
    %379 = vmatpush1.msra.mxu0 %v139
    %380 = vmatprep.subr.mxu0 %v138
    %381 = vmatpush1.msra.mxu0 %v137
    %382 = vmatprep.subr.mxu0 %v136
    %383 = vmatpush1.msra.mxu0 %v135
    %384 = vmatprep.subr.mxu0 %v134
    %385 = vmatpush1.msra.mxu0 %v133
    %386 = vmatprep.subr.mxu0 0.0
    %387 = vmatpush2.msra.mxu0 0.0
    %388 = vmatprep.subr.mxu0 0.0
    %389 = vmatpush2.msra.mxu0 0.0
    %390 = vmatprep.subr.mxu0 0.0
    %391 = vmatpush2.msra.mxu0 0.0
    %392 = vmatprep.subr.mxu0 0.0
    %393 = vmatpush2.msra.mxu0 0.0
    %394 = vmatprep.subr.mxu0 0.0
    %395 = vmatpush2.msra.mxu0 0.0
    %396 = vmatprep.subr.mxu0 0.0
    %397 = vmatpush2.msra.mxu0 0.0
    %398 = vmatprep.subr.mxu0 0.0
    %399 = vmatpush2.msra.mxu0 0.0
    %400 = vmatprep.subr.mxu0 0.0
    %401 = vmatpush2.msra.mxu0 0.0
    %402 = vmatprep.subr.mxu0 0.0
    %403 = vmatpush2.msra.mxu0 0.0
    %404 = vmatprep.subr.mxu0 0.0
    %405 = vmatpush2.msra.mxu0 0.0
    %406 = vmatprep.subr.mxu0 0.0
    %407 = vmatpush2.msra.mxu0 0.0
    %408 = vmatprep.subr.mxu0 0.0
    %409 = vmatpush2.msra.mxu0 0.0
    %410 = vmatprep.subr.mxu0 0.0
    %411 = vmatpush2.msra.mxu0 0.0
    %412 = vmatprep.subr.mxu0 0.0
    %413 = vmatpush2.msra.mxu0 0.0
    %414 = vmatprep.subr.mxu0 0.0
    %415 = vmatpush2.msra.mxu0 0.0
    %416 = vmatprep.subr.mxu0 0.0
    %417 = vmatpush2.msra.mxu0 0.0
    %418 = vmatprep.mubr.f32.mxu0 0.0
    %419 = vmatmul.mubr.f32.gmra.mxu0 %v352
    %v420 = vpop.f32.mrf.mxu0
    %v421 = vadd.f32 0.0, %v420
    %v422 = vpop.f32.mrf.mxu0
    %v423 = vadd.f32 0.0, %v422
    %424 = vdwg.mxu0
    %v426 = vrot.slane %v421, 7
    %v429 = vadd.f32 %v123, %v426
    %v430 = vadd.f32 %v129, %v421
    %v431 = vxor.u32 %v429, 2147483648
    %v432 = vxor.u32 %v430, 2147483648
    %v433 = vmul.f32 %v431, 1.442695
    %v434 = vpow.pop %v433
    %v435 = vmul.f32 %v432, 1.442695
    %v436 = vpow.pop %v435
    %v437 = vadd.f32 %v434, 1.0
    %v438 = vadd.f32 %v436, 1.0
    %v439 = vrcp.pop %v437
    %v440 = vmul.f32 1.0, %v439
    %v441 = vrcp.pop %v438
    %v442 = vmul.f32 1.0, %v441
    %v443 = vtanh.pop %v429
    %v444 = vtanh.pop %v430
    %v447 = vrot.slane %v264, 7
    %v448 = vrot.slane %v265, 7
    %v451 = vmul.f32 %v440, %v447
    %v452 = vmul.f32 %v442, %v448
    %455 = vrot.lane.b32.xlu0 %v443, 64
    %v456 = vpop.permute.xlu0 %455
    %457 = vrot.lane.b32.xlu0 %v444, 64
    %v458 = vpop.permute.xlu0 %457
    %v461 = vmul.f32 %v440, %v456
    %v462 = vmul.f32 %v442, %v458
    %465 = vrot.lane.b32.xlu0 %v461, 32
    %v466 = vpop.permute.xlu0 %465
    %467 = vrot.lane.b32.xlu0 %v462, 32
    %v468 = vpop.permute.xlu0 %467
    %v471 = vadd.f32 %v451, %v466
    %v472 = vadd.f32 %v452, %v468
    %v473 = vtanh.pop %v471
    %v474 = vtanh.pop %v472
    %477 = vrot.lane.b32.xlu0 %v473, 64
    %v478 = vpop.permute.xlu0 %477
    %479 = vrot.lane.b32.xlu0 %v474, 64
    %v480 = vpop.permute.xlu0 %479
    %v483 = vmul.f32 %v440, %v478
    %v484 = vmul.f32 %v442, %v480
    %v486 = vrot.slane %v423, 2
    %v487 = vrot.slane %v423, 3
    %v490 = vadd.f32 %v125, %v486
    %v491 = vadd.f32 %v131, %v487
    %v492 = vxor.u32 %v490, 2147483648
    %v493 = vxor.u32 %v491, 2147483648
    %v494 = vmul.f32 %v492, 1.442695
    %v495 = vpow.pop %v494
    %v496 = vmul.f32 %v493, 1.442695
    %v497 = vpow.pop %v496
    %v498 = vadd.f32 %v495, 1.0
    %v499 = vadd.f32 %v497, 1.0
    %v500 = vrcp.pop %v498
    %v501 = vmul.f32 1.0, %v500
    %v502 = vrcp.pop %v499
    %v503 = vmul.f32 1.0, %v502
    %v504 = vtanh.pop %v490
    %v505 = vtanh.pop %v491
    %v508 = vrot.slane %v319, 1
    %v509 = vrot.slane %v320, 1
    %v512 = vmul.f32 %v501, %v508
    %v513 = vmul.f32 %v503, %v509
    %516 = vrot.lane.b32.xlu0 %v504, 64
    %v517 = vpop.permute.xlu0 %516
    %518 = vrot.lane.b32.xlu0 %v505, 64
    %v519 = vpop.permute.xlu0 %518
    %v522 = vmul.f32 %v501, %v517
    %v523 = vmul.f32 %v503, %v519
    %526 = vrot.lane.b32.xlu0 %v522, 32
    %v527 = vpop.permute.xlu0 %526
    %528 = vrot.lane.b32.xlu0 %v523, 32
    %v529 = vpop.permute.xlu0 %528
    %v532 = vadd.f32 %v512, %v527
    %v533 = vadd.f32 %v513, %v529
    %v534 = vtanh.pop %v532
    %v535 = vtanh.pop %v533
    %538 = vrot.lane.b32.xlu0 %v534, 64
    %v539 = vpop.permute.xlu0 %538
    %540 = vrot.lane.b32.xlu0 %v535, 64
    %v541 = vpop.permute.xlu0 %540
    %v544 = vmul.f32 %v501, %v539
    %v545 = vmul.f32 %v503, %v541
    %v548 = vrot.slane %v484, 7
    %vm549 = vcmask 1042434
    %v550 = vsel %vm549, %v548, %v483
    %551 = vrot.lane.b32.xlu0 %v550, 32
    %v552 = vpop.permute.xlu0 %551
    %v556 = vrot.slane %v544, 5
    %v557 = vrot.slane %v545, 4
    %v558 = vsel %vm549, %v557, %v556
    %559 = vrot.lane.b32.xlu0 %v558, 64
    %v560 = vpop.permute.xlu0 %559
    %v562 = vsel %vm349, %v552, %v560
    %v564 = vrot.slane %v562, 1
    %v565 = vsel %vm149, %v564, 0
    %567 = vmatprep.subr.mxu0 0.0
    %568 = vmatpush1.msra.mxu0 0.0
    %569 = vmatprep.subr.mxu0 0.0
    %570 = vmatpush1.msra.mxu0 0.0
    %571 = vmatprep.subr.mxu0 0.0
    %572 = vmatpush1.msra.mxu0 0.0
    %573 = vmatprep.subr.mxu0 0.0
    %574 = vmatpush1.msra.mxu0 0.0
    %575 = vmatprep.subr.mxu0 0.0
    %576 = vmatpush1.msra.mxu0 0.0
    %577 = vmatprep.subr.mxu0 0.0
    %578 = vmatpush1.msra.mxu0 0.0
    %579 = vmatprep.subr.mxu0 0.0
    %580 = vmatpush1.msra.mxu0 0.0
    %581 = vmatprep.subr.mxu0 0.0
    %582 = vmatpush1.msra.mxu0 0.0
    %583 = vmatprep.subr.mxu0 %v148
    %584 = vmatpush1.msra.mxu0 %v147
    %585 = vmatprep.subr.mxu0 %v146
    %586 = vmatpush1.msra.mxu0 %v145
    %587 = vmatprep.subr.mxu0 %v144
    %588 = vmatpush1.msra.mxu0 %v143
    %589 = vmatprep.subr.mxu0 %v142
    %590 = vmatpush1.msra.mxu0 %v141
    %591 = vmatprep.subr.mxu0 %v140
    %592 = vmatpush1.msra.mxu0 %v139
    %593 = vmatprep.subr.mxu0 %v138
    %594 = vmatpush1.msra.mxu0 %v137
    %595 = vmatprep.subr.mxu0 %v136
    %596 = vmatpush1.msra.mxu0 %v135
    %597 = vmatprep.subr.mxu0 %v134
    %598 = vmatpush1.msra.mxu0 %v133
    %599 = vmatprep.subr.mxu0 0.0
    %600 = vmatpush2.msra.mxu0 0.0
    %601 = vmatprep.subr.mxu0 0.0
    %602 = vmatpush2.msra.mxu0 0.0
    %603 = vmatprep.subr.mxu0 0.0
    %604 = vmatpush2.msra.mxu0 0.0
    %605 = vmatprep.subr.mxu0 0.0
    %606 = vmatpush2.msra.mxu0 0.0
    %607 = vmatprep.subr.mxu0 0.0
    %608 = vmatpush2.msra.mxu0 0.0
    %609 = vmatprep.subr.mxu0 0.0
    %610 = vmatpush2.msra.mxu0 0.0
    %611 = vmatprep.subr.mxu0 0.0
    %612 = vmatpush2.msra.mxu0 0.0
    %613 = vmatprep.subr.mxu0 0.0
    %614 = vmatpush2.msra.mxu0 0.0
    %615 = vmatprep.subr.mxu0 0.0
    %616 = vmatpush2.msra.mxu0 0.0
    %617 = vmatprep.subr.mxu0 0.0
    %618 = vmatpush2.msra.mxu0 0.0
    %619 = vmatprep.subr.mxu0 0.0
    %620 = vmatpush2.msra.mxu0 0.0
    %621 = vmatprep.subr.mxu0 0.0
    %622 = vmatpush2.msra.mxu0 0.0
    %623 = vmatprep.subr.mxu0 0.0
    %624 = vmatpush2.msra.mxu0 0.0
    %625 = vmatprep.subr.mxu0 0.0
    %626 = vmatpush2.msra.mxu0 0.0
    %627 = vmatprep.subr.mxu0 0.0
    %628 = vmatpush2.msra.mxu0 0.0
    %629 = vmatprep.subr.mxu0 0.0
    %630 = vmatpush2.msra.mxu0 0.0
    %631 = vmatprep.mubr.f32.mxu0 0.0
    %632 = vmatmul.mubr.f32.gmra.mxu0 %v565
    %v633 = vpop.f32.mrf.mxu0
    %v634 = vadd.f32 0.0, %v633
    %v635 = vpop.f32.mrf.mxu0
    %v636 = vadd.f32 0.0, %v635
    %637 = vdwg.mxu0
    %v639 = vrot.slane %v634, 6
    %v640 = vrot.slane %v634, 7
    %v643 = vadd.f32 %v123, %v639
    %v644 = vadd.f32 %v129, %v640
    %v645 = vxor.u32 %v643, 2147483648
    %v646 = vxor.u32 %v644, 2147483648
    %v647 = vmul.f32 %v645, 1.442695
    %v648 = vpow.pop %v647
    %v649 = vmul.f32 %v646, 1.442695
    %v650 = vpow.pop %v649
    %v651 = vadd.f32 %v648, 1.0
    %v652 = vadd.f32 %v650, 1.0
    %v653 = vrcp.pop %v651
    %v654 = vmul.f32 1.0, %v653
    %v655 = vrcp.pop %v652
    %v656 = vmul.f32 1.0, %v655
    %v657 = vtanh.pop %v643
    %v658 = vtanh.pop %v644
    %v661 = vrot.slane %v471, 7
    %v662 = vrot.slane %v472, 7
    %v665 = vmul.f32 %v654, %v661
    %v666 = vmul.f32 %v656, %v662
    %669 = vrot.lane.b32.xlu0 %v657, 64
    %v670 = vpop.permute.xlu0 %669
    %671 = vrot.lane.b32.xlu0 %v658, 64
    %v672 = vpop.permute.xlu0 %671
    %v675 = vmul.f32 %v654, %v670
    %v676 = vmul.f32 %v656, %v672
    %679 = vrot.lane.b32.xlu0 %v675, 32
    %v680 = vpop.permute.xlu0 %679
    %681 = vrot.lane.b32.xlu0 %v676, 32
    %v682 = vpop.permute.xlu0 %681
    %v685 = vadd.f32 %v665, %v680
    %v686 = vadd.f32 %v666, %v682
    %v687 = vtanh.pop %v685
    %v688 = vtanh.pop %v686
    %691 = vrot.lane.b32.xlu0 %v687, 64
    %v692 = vpop.permute.xlu0 %691
    %693 = vrot.lane.b32.xlu0 %v688, 64
    %v694 = vpop.permute.xlu0 %693
    %v697 = vmul.f32 %v654, %v692
    %v698 = vmul.f32 %v656, %v694
    %v700 = vrot.slane %v636, 3
    %v701 = vrot.slane %v636, 4
    %v704 = vadd.f32 %v125, %v700
    %v705 = vadd.f32 %v131, %v701
    %v706 = vxor.u32 %v704, 2147483648
    %v707 = vxor.u32 %v705, 2147483648
    %v708 = vmul.f32 %v706, 1.442695
    %v709 = vpow.pop %v708
    %v710 = vmul.f32 %v707, 1.442695
    %v711 = vpow.pop %v710
    %v712 = vadd.f32 %v709, 1.0
    %v713 = vadd.f32 %v711, 1.0
    %v714 = vrcp.pop %v712
    %v715 = vmul.f32 1.0, %v714
    %v716 = vrcp.pop %v713
    %v717 = vmul.f32 1.0, %v716
    %v718 = vtanh.pop %v704
    %v719 = vtanh.pop %v705
    %v722 = vrot.slane %v532, 1
    %v723 = vrot.slane %v533, 1
    %v726 = vmul.f32 %v715, %v722
    %v727 = vmul.f32 %v717, %v723
    %730 = vrot.lane.b32.xlu0 %v718, 64
    %v731 = vpop.permute.xlu0 %730
    %732 = vrot.lane.b32.xlu0 %v719, 64
    %v733 = vpop.permute.xlu0 %732
    %v736 = vmul.f32 %v715, %v731
    %v737 = vmul.f32 %v717, %v733
    %740 = vrot.lane.b32.xlu0 %v736, 32
    %v741 = vpop.permute.xlu0 %740
    %742 = vrot.lane.b32.xlu0 %v737, 32
    %v743 = vpop.permute.xlu0 %742
    %v746 = vadd.f32 %v726, %v741
    %v747 = vadd.f32 %v727, %v743
    %v748 = vtanh.pop %v746
    %v749 = vtanh.pop %v747
    %752 = vrot.lane.b32.xlu0 %v748, 64
    %v753 = vpop.permute.xlu0 %752
    %754 = vrot.lane.b32.xlu0 %v749, 64
    %v755 = vpop.permute.xlu0 %754
    %v758 = vmul.f32 %v715, %v753
    %v759 = vmul.f32 %v717, %v755
    %v762 = vrot.slane %v698, 7
    %vm763 = vcmask 1043459
    %v764 = vsel %vm763, %v762, %v697
    %765 = vrot.lane.b32.xlu0 %v764, 32
    %v766 = vpop.permute.xlu0 %765
    %v770 = vrot.slane %v758, 3
    %v771 = vrot.slane %v759, 2
    %v772 = vsel %vm763, %v771, %v770
    %773 = vrot.lane.b32.xlu0 %v772, 64
    %v774 = vpop.permute.xlu0 %773
    %v776 = vsel %vm349, %v766, %v774
    %v778 = vrot.slane %v776, 2
    %v779 = vsel %vm149, %v778, 0
    %781 = vmatprep.subr.mxu0 0.0
    %782 = vmatpush1.msra.mxu0 0.0
    %783 = vmatprep.subr.mxu0 0.0
    %784 = vmatpush1.msra.mxu0 0.0
    %785 = vmatprep.subr.mxu0 0.0
    %786 = vmatpush1.msra.mxu0 0.0
    %787 = vmatprep.subr.mxu0 0.0
    %788 = vmatpush1.msra.mxu0 0.0
    %789 = vmatprep.subr.mxu0 0.0
    %790 = vmatpush1.msra.mxu0 0.0
    %791 = vmatprep.subr.mxu0 0.0
    %792 = vmatpush1.msra.mxu0 0.0
    %793 = vmatprep.subr.mxu0 0.0
    %794 = vmatpush1.msra.mxu0 0.0
    %795 = vmatprep.subr.mxu0 0.0
    %796 = vmatpush1.msra.mxu0 0.0
    %797 = vmatprep.subr.mxu0 %v148
    %798 = vmatpush1.msra.mxu0 %v147
    %799 = vmatprep.subr.mxu0 %v146
    %800 = vmatpush1.msra.mxu0 %v145
    %801 = vmatprep.subr.mxu0 %v144
    %802 = vmatpush1.msra.mxu0 %v143
    %803 = vmatprep.subr.mxu0 %v142
    %804 = vmatpush1.msra.mxu0 %v141
    %805 = vmatprep.subr.mxu0 %v140
    %806 = vmatpush1.msra.mxu0 %v139
    %807 = vmatprep.subr.mxu0 %v138
    %808 = vmatpush1.msra.mxu0 %v137
    %809 = vmatprep.subr.mxu0 %v136
    %810 = vmatpush1.msra.mxu0 %v135
    %811 = vmatprep.subr.mxu0 %v134
    %812 = vmatpush1.msra.mxu0 %v133
    %813 = vmatprep.subr.mxu0 0.0
    %814 = vmatpush2.msra.mxu0 0.0
    %815 = vmatprep.subr.mxu0 0.0
    %816 = vmatpush2.msra.mxu0 0.0
    %817 = vmatprep.subr.mxu0 0.0
    %818 = vmatpush2.msra.mxu0 0.0
    %819 = vmatprep.subr.mxu0 0.0
    %820 = vmatpush2.msra.mxu0 0.0
    %821 = vmatprep.subr.mxu0 0.0
    %822 = vmatpush2.msra.mxu0 0.0
    %823 = vmatprep.subr.mxu0 0.0
    %824 = vmatpush2.msra.mxu0 0.0
    %825 = vmatprep.subr.mxu0 0.0
    %826 = vmatpush2.msra.mxu0 0.0
    %827 = vmatprep.subr.mxu0 0.0
    %828 = vmatpush2.msra.mxu0 0.0
    %829 = vmatprep.subr.mxu0 0.0
    %830 = vmatpush2.msra.mxu0 0.0
    %831 = vmatprep.subr.mxu0 0.0
    %832 = vmatpush2.msra.mxu0 0.0
    %833 = vmatprep.subr.mxu0 0.0
    %834 = vmatpush2.msra.mxu0 0.0
    %835 = vmatprep.subr.mxu0 0.0
    %836 = vmatpush2.msra.mxu0 0.0
    %837 = vmatprep.subr.mxu0 0.0
    %838 = vmatpush2.msra.mxu0 0.0
    %839 = vmatprep.subr.mxu0 0.0
    %840 = vmatpush2.msra.mxu0 0.0
    %841 = vmatprep.subr.mxu0 0.0
    %842 = vmatpush2.msra.mxu0 0.0
    %843 = vmatprep.subr.mxu0 0.0
    %844 = vmatpush2.msra.mxu0 0.0
    %845 = vmatprep.mubr.f32.mxu0 0.0
    %846 = vmatmul.mubr.f32.gmra.mxu0 %v779
    %v847 = vpop.f32.mrf.mxu0
    %v848 = vadd.f32 0.0, %v847
    %v849 = vpop.f32.mrf.mxu0
    %v850 = vadd.f32 0.0, %v849
    %851 = vdwg.mxu0
    %v853 = vrot.slane %v848, 5
    %v854 = vrot.slane %v848, 6
    %v857 = vadd.f32 %v123, %v853
    %v858 = vadd.f32 %v129, %v854
    %v859 = vxor.u32 %v857, 2147483648
    %v860 = vxor.u32 %v858, 2147483648
    %v861 = vmul.f32 %v859, 1.442695
    %v862 = vpow.pop %v861
    %v863 = vmul.f32 %v860, 1.442695
    %v864 = vpow.pop %v863
    %v865 = vadd.f32 %v862, 1.0
    %v866 = vadd.f32 %v864, 1.0
    %v867 = vrcp.pop %v865
    %v868 = vmul.f32 1.0, %v867
    %v869 = vrcp.pop %v866
    %v870 = vmul.f32 1.0, %v869
    %v871 = vtanh.pop %v857
    %v872 = vtanh.pop %v858
    %v875 = vrot.slane %v685, 7
    %v876 = vrot.slane %v686, 7
    %v879 = vmul.f32 %v868, %v875
    %v880 = vmul.f32 %v870, %v876
    %883 = vrot.lane.b32.xlu0 %v871, 64
    %v884 = vpop.permute.xlu0 %883
    %885 = vrot.lane.b32.xlu0 %v872, 64
    %v886 = vpop.permute.xlu0 %885
    %v889 = vmul.f32 %v868, %v884
    %v890 = vmul.f32 %v870, %v886
    %893 = vrot.lane.b32.xlu0 %v889, 32
    %v894 = vpop.permute.xlu0 %893
    %895 = vrot.lane.b32.xlu0 %v890, 32
    %v896 = vpop.permute.xlu0 %895
    %v899 = vadd.f32 %v879, %v894
    %v900 = vadd.f32 %v880, %v896
    %v901 = vtanh.pop %v899
    %v902 = vtanh.pop %v900
    %905 = vrot.lane.b32.xlu0 %v901, 64
    %v906 = vpop.permute.xlu0 %905
    %907 = vrot.lane.b32.xlu0 %v902, 64
    %v908 = vpop.permute.xlu0 %907
    %v911 = vmul.f32 %v868, %v906
    %v912 = vmul.f32 %v870, %v908
    %v914 = vrot.slane %v850, 4
    %v915 = vrot.slane %v850, 5
    %v918 = vadd.f32 %v125, %v914
    %v919 = vadd.f32 %v131, %v915
    %v920 = vxor.u32 %v918, 2147483648
    %v921 = vxor.u32 %v919, 2147483648
    %v922 = vmul.f32 %v920, 1.442695
    %v923 = vpow.pop %v922
    %v924 = vmul.f32 %v921, 1.442695
    %v925 = vpow.pop %v924
    %v926 = vadd.f32 %v923, 1.0
    %v927 = vadd.f32 %v925, 1.0
    %v928 = vrcp.pop %v926
    %v929 = vmul.f32 1.0, %v928
    %v930 = vrcp.pop %v927
    %v931 = vmul.f32 1.0, %v930
    %v932 = vtanh.pop %v918
    %v933 = vtanh.pop %v919
    %v936 = vrot.slane %v746, 1
    %v937 = vrot.slane %v747, 1
    %v940 = vmul.f32 %v929, %v936
    %v941 = vmul.f32 %v931, %v937
    %944 = vrot.lane.b32.xlu0 %v932, 64
    %v945 = vpop.permute.xlu0 %944
    %946 = vrot.lane.b32.xlu0 %v933, 64
    %v947 = vpop.permute.xlu0 %946
    %v950 = vmul.f32 %v929, %v945
    %v951 = vmul.f32 %v931, %v947
    %954 = vrot.lane.b32.xlu0 %v950, 32
    %v955 = vpop.permute.xlu0 %954
    %956 = vrot.lane.b32.xlu0 %v951, 32
    %v957 = vpop.permute.xlu0 %956
    %v960 = vadd.f32 %v940, %v955
    %v961 = vadd.f32 %v941, %v957
    %v962 = vtanh.pop %v960
    %v963 = vtanh.pop %v961
    %966 = vrot.lane.b32.xlu0 %v962, 64
    %v967 = vpop.permute.xlu0 %966
    %968 = vrot.lane.b32.xlu0 %v963, 64
    %v969 = vpop.permute.xlu0 %968
    %v972 = vmul.f32 %v929, %v967
    %v973 = vmul.f32 %v931, %v969
    %v976 = vrot.slane %v912, 7
    %vm977 = vcmask 1044484
    %v978 = vsel %vm977, %v976, %v911
    %979 = vrot.lane.b32.xlu0 %v978, 32
    %v980 = vpop.permute.xlu0 %979
    %v984 = vrot.slane %v972, 1
    %v985 = vsel %vm977, %v973, %v984
    %986 = vrot.lane.b32.xlu0 %v985, 64
    %v987 = vpop.permute.xlu0 %986
    %v989 = vsel %vm349, %v980, %v987
    %v991 = vrot.slane %v989, 3
    %v992 = vsel %vm149, %v991, 0
    %994 = vmatprep.subr.mxu0 0.0
    %995 = vmatpush1.msra.mxu0 0.0
    %996 = vmatprep.subr.mxu0 0.0
    %997 = vmatpush1.msra.mxu0 0.0
    %998 = vmatprep.subr.mxu0 0.0
    %999 = vmatpush1.msra.mxu0 0.0
    %1000 = vmatprep.subr.mxu0 0.0
    %1001 = vmatpush1.msra.mxu0 0.0
    %1002 = vmatprep.subr.mxu0 0.0
    %1003 = vmatpush1.msra.mxu0 0.0
    %1004 = vmatprep.subr.mxu0 0.0
    %1005 = vmatpush1.msra.mxu0 0.0
    %1006 = vmatprep.subr.mxu0 0.0
    %1007 = vmatpush1.msra.mxu0 0.0
    %1008 = vmatprep.subr.mxu0 0.0
    %1009 = vmatpush1.msra.mxu0 0.0
    %1010 = vmatprep.subr.mxu0 %v148
    %1011 = vmatpush1.msra.mxu0 %v147
    %1012 = vmatprep.subr.mxu0 %v146
    %1013 = vmatpush1.msra.mxu0 %v145
    %1014 = vmatprep.subr.mxu0 %v144
    %1015 = vmatpush1.msra.mxu0 %v143
    %1016 = vmatprep.subr.mxu0 %v142
    %1017 = vmatpush1.msra.mxu0 %v141
    %1018 = vmatprep.subr.mxu0 %v140
    %1019 = vmatpush1.msra.mxu0 %v139
    %1020 = vmatprep.subr.mxu0 %v138
    %1021 = vmatpush1.msra.mxu0 %v137
    %1022 = vmatprep.subr.mxu0 %v136
    %1023 = vmatpush1.msra.mxu0 %v135
    %1024 = vmatprep.subr.mxu0 %v134
    %1025 = vmatpush1.msra.mxu0 %v133
    %1026 = vmatprep.subr.mxu0 0.0
    %1027 = vmatpush2.msra.mxu0 0.0
    %1028 = vmatprep.subr.mxu0 0.0
    %1029 = vmatpush2.msra.mxu0 0.0
    %1030 = vmatprep.subr.mxu0 0.0
    %1031 = vmatpush2.msra.mxu0 0.0
    %1032 = vmatprep.subr.mxu0 0.0
    %1033 = vmatpush2.msra.mxu0 0.0
    %1034 = vmatprep.subr.mxu0 0.0
    %1035 = vmatpush2.msra.mxu0 0.0
    %1036 = vmatprep.subr.mxu0 0.0
    %1037 = vmatpush2.msra.mxu0 0.0
    %1038 = vmatprep.subr.mxu0 0.0
    %1039 = vmatpush2.msra.mxu0 0.0
    %1040 = vmatprep.subr.mxu0 0.0
    %1041 = vmatpush2.msra.mxu0 0.0
    %1042 = vmatprep.subr.mxu0 0.0
    %1043 = vmatpush2.msra.mxu0 0.0
    %1044 = vmatprep.subr.mxu0 0.0
    %1045 = vmatpush2.msra.mxu0 0.0
    %1046 = vmatprep.subr.mxu0 0.0
    %1047 = vmatpush2.msra.mxu0 0.0
    %1048 = vmatprep.subr.mxu0 0.0
    %1049 = vmatpush2.msra.mxu0 0.0
    %1050 = vmatprep.subr.mxu0 0.0
    %1051 = vmatpush2.msra.mxu0 0.0
    %1052 = vmatprep.subr.mxu0 0.0
    %1053 = vmatpush2.msra.mxu0 0.0
    %1054 = vmatprep.subr.mxu0 0.0
    %1055 = vmatpush2.msra.mxu0 0.0
    %1056 = vmatprep.subr.mxu0 0.0
    %1057 = vmatpush2.msra.mxu0 0.0
    %1058 = vmatprep.mubr.f32.mxu0 0.0
    %1059 = vmatmul.mubr.f32.gmra.mxu0 %v992
    %v1060 = vpop.f32.mrf.mxu0
    %v1061 = vadd.f32 0.0, %v1060
    %v1062 = vpop.f32.mrf.mxu0
    %v1063 = vadd.f32 0.0, %v1062
    %1064 = vdwg.mxu0
    %v1066 = vrot.slane %v1061, 4
    %v1067 = vrot.slane %v1061, 5
    %v1070 = vadd.f32 %v123, %v1066
    %v1071 = vadd.f32 %v129, %v1067
    %v1072 = vxor.u32 %v1070, 2147483648
    %v1073 = vxor.u32 %v1071, 2147483648
    %v1074 = vmul.f32 %v1072, 1.442695
    %v1075 = vpow.pop %v1074
    %v1076 = vmul.f32 %v1073, 1.442695
    %v1077 = vpow.pop %v1076
    %v1078 = vadd.f32 %v1075, 1.0
    %v1079 = vadd.f32 %v1077, 1.0
    %v1080 = vrcp.pop %v1078
    %v1081 = vmul.f32 1.0, %v1080
    %v1082 = vrcp.pop %v1079
    %v1083 = vmul.f32 1.0, %v1082
    %v1084 = vtanh.pop %v1070
    %v1085 = vtanh.pop %v1071
    %v1088 = vrot.slane %v899, 7
    %v1089 = vrot.slane %v900, 7
    %v1092 = vmul.f32 %v1081, %v1088
    %v1093 = vmul.f32 %v1083, %v1089
    %1096 = vrot.lane.b32.xlu0 %v1084, 64
    %v1097 = vpop.permute.xlu0 %1096
    %1098 = vrot.lane.b32.xlu0 %v1085, 64
    %v1099 = vpop.permute.xlu0 %1098
    %v1102 = vmul.f32 %v1081, %v1097
    %v1103 = vmul.f32 %v1083, %v1099
    %1106 = vrot.lane.b32.xlu0 %v1102, 32
    %v1107 = vpop.permute.xlu0 %1106
    %1108 = vrot.lane.b32.xlu0 %v1103, 32
    %v1109 = vpop.permute.xlu0 %1108
    %v1112 = vadd.f32 %v1092, %v1107
    %v1113 = vadd.f32 %v1093, %v1109
    %v1114 = vtanh.pop %v1112
    %v1115 = vtanh.pop %v1113
    %1118 = vrot.lane.b32.xlu0 %v1114, 64
    %v1119 = vpop.permute.xlu0 %1118
    %1120 = vrot.lane.b32.xlu0 %v1115, 64
    %v1121 = vpop.permute.xlu0 %1120
    %v1124 = vmul.f32 %v1081, %v1119
    %v1125 = vmul.f32 %v1083, %v1121
    %v1127 = vrot.slane %v1063, 5
    %v1128 = vrot.slane %v1063, 6
    %v1131 = vadd.f32 %v125, %v1127
    %v1132 = vadd.f32 %v131, %v1128
    %v1133 = vxor.u32 %v1131, 2147483648
    %v1134 = vxor.u32 %v1132, 2147483648
    %v1135 = vmul.f32 %v1133, 1.442695
    %v1136 = vpow.pop %v1135
    %v1137 = vmul.f32 %v1134, 1.442695
    %v1138 = vpow.pop %v1137
    %v1139 = vadd.f32 %v1136, 1.0
    %v1140 = vadd.f32 %v1138, 1.0
    %v1141 = vrcp.pop %v1139
    %v1142 = vmul.f32 1.0, %v1141
    %v1143 = vrcp.pop %v1140
    %v1144 = vmul.f32 1.0, %v1143
    %v1145 = vtanh.pop %v1131
    %v1146 = vtanh.pop %v1132
    %v1149 = vrot.slane %v960, 1
    %v1150 = vrot.slane %v961, 1
    %v1153 = vmul.f32 %v1142, %v1149
    %v1154 = vmul.f32 %v1144, %v1150
    %1157 = vrot.lane.b32.xlu0 %v1145, 64
    %v1158 = vpop.permute.xlu0 %1157
    %1159 = vrot.lane.b32.xlu0 %v1146, 64
    %v1160 = vpop.permute.xlu0 %1159
    %v1163 = vmul.f32 %v1142, %v1158
    %v1164 = vmul.f32 %v1144, %v1160
    %1167 = vrot.lane.b32.xlu0 %v1163, 32
    %v1168 = vpop.permute.xlu0 %1167
    %1169 = vrot.lane.b32.xlu0 %v1164, 32
    %v1170 = vpop.permute.xlu0 %1169
    %v1173 = vadd.f32 %v1153, %v1168
    %v1174 = vadd.f32 %v1154, %v1170
    %v1175 = vtanh.pop %v1173
    %v1176 = vtanh.pop %v1174
    %1179 = vrot.lane.b32.xlu0 %v1175, 64
    %v1180 = vpop.permute.xlu0 %1179
    %1181 = vrot.lane.b32.xlu0 %v1176, 64
    %v1182 = vpop.permute.xlu0 %1181
    %v1185 = vmul.f32 %v1142, %v1180
    %v1186 = vmul.f32 %v1144, %v1182
    %v1189 = vrot.slane %v1125, 7
    %vm1190 = vcmask 1045509
    %v1191 = vsel %vm1190, %v1189, %v1124
    %1192 = vrot.lane.b32.xlu0 %v1191, 32
    %v1193 = vpop.permute.xlu0 %1192
    %v1197 = vrot.slane %v1185, 7
    %v1198 = vrot.slane %v1186, 6
    %v1199 = vsel %vm1190, %v1198, %v1197
    %1200 = vrot.lane.b32.xlu0 %v1199, 64
    %v1201 = vpop.permute.xlu0 %1200
    %v1203 = vsel %vm349, %v1193, %v1201
    %v1205 = vrot.slane %v1203, 4
    %v1206 = vsel %vm149, %v1205, 0
    %1208 = vmatprep.subr.mxu0 0.0
    %1209 = vmatpush1.msra.mxu0 0.0
    %1210 = vmatprep.subr.mxu0 0.0
    %1211 = vmatpush1.msra.mxu0 0.0
    %1212 = vmatprep.subr.mxu0 0.0
    %1213 = vmatpush1.msra.mxu0 0.0
    %1214 = vmatprep.subr.mxu0 0.0
    %1215 = vmatpush1.msra.mxu0 0.0
    %1216 = vmatprep.subr.mxu0 0.0
    %1217 = vmatpush1.msra.mxu0 0.0
    %1218 = vmatprep.subr.mxu0 0.0
    %1219 = vmatpush1.msra.mxu0 0.0
    %1220 = vmatprep.subr.mxu0 0.0
    %1221 = vmatpush1.msra.mxu0 0.0
    %1222 = vmatprep.subr.mxu0 0.0
    %1223 = vmatpush1.msra.mxu0 0.0
    %1224 = vmatprep.subr.mxu0 %v148
    %1225 = vmatpush1.msra.mxu0 %v147
    %1226 = vmatprep.subr.mxu0 %v146
    %1227 = vmatpush1.msra.mxu0 %v145
    %1228 = vmatprep.subr.mxu0 %v144
    %1229 = vmatpush1.msra.mxu0 %v143
    %1230 = vmatprep.subr.mxu0 %v142
    %1231 = vmatpush1.msra.mxu0 %v141
    %1232 = vmatprep.subr.mxu0 %v140
    %1233 = vmatpush1.msra.mxu0 %v139
    %1234 = vmatprep.subr.mxu0 %v138
    %1235 = vmatpush1.msra.mxu0 %v137
    %1236 = vmatprep.subr.mxu0 %v136
    %1237 = vmatpush1.msra.mxu0 %v135
    %1238 = vmatprep.subr.mxu0 %v134
    %1239 = vmatpush1.msra.mxu0 %v133
    %1240 = vmatprep.subr.mxu0 0.0
    %1241 = vmatpush2.msra.mxu0 0.0
    %1242 = vmatprep.subr.mxu0 0.0
    %1243 = vmatpush2.msra.mxu0 0.0
    %1244 = vmatprep.subr.mxu0 0.0
    %1245 = vmatpush2.msra.mxu0 0.0
    %1246 = vmatprep.subr.mxu0 0.0
    %1247 = vmatpush2.msra.mxu0 0.0
    %1248 = vmatprep.subr.mxu0 0.0
    %1249 = vmatpush2.msra.mxu0 0.0
    %1250 = vmatprep.subr.mxu0 0.0
    %1251 = vmatpush2.msra.mxu0 0.0
    %1252 = vmatprep.subr.mxu0 0.0
    %1253 = vmatpush2.msra.mxu0 0.0
    %1254 = vmatprep.subr.mxu0 0.0
    %1255 = vmatpush2.msra.mxu0 0.0
    %1256 = vmatprep.subr.mxu0 0.0
    %1257 = vmatpush2.msra.mxu0 0.0
    %1258 = vmatprep.subr.mxu0 0.0
    %1259 = vmatpush2.msra.mxu0 0.0
    %1260 = vmatprep.subr.mxu0 0.0
    %1261 = vmatpush2.msra.mxu0 0.0
    %1262 = vmatprep.subr.mxu0 0.0
    %1263 = vmatpush2.msra.mxu0 0.0
    %1264 = vmatprep.subr.mxu0 0.0
    %1265 = vmatpush2.msra.mxu0 0.0
    %1266 = vmatprep.subr.mxu0 0.0
    %1267 = vmatpush2.msra.mxu0 0.0
    %1268 = vmatprep.subr.mxu0 0.0
    %1269 = vmatpush2.msra.mxu0 0.0
    %1270 = vmatprep.subr.mxu0 0.0
    %1271 = vmatpush2.msra.mxu0 0.0
    %1272 = vmatprep.mubr.f32.mxu0 0.0
    %1273 = vmatmul.mubr.f32.gmra.mxu0 %v1206
    %v1274 = vpop.f32.mrf.mxu0
    %v1275 = vadd.f32 0.0, %v1274
    %v1276 = vpop.f32.mrf.mxu0
    %v1277 = vadd.f32 0.0, %v1276
    %1278 = vdwg.mxu0
    %v1280 = vrot.slane %v1275, 3
    %v1281 = vrot.slane %v1275, 4
    %v1284 = vadd.f32 %v123, %v1280
    %v1285 = vadd.f32 %v129, %v1281
    %v1286 = vxor.u32 %v1284, 2147483648
    %v1287 = vxor.u32 %v1285, 2147483648
    %v1288 = vmul.f32 %v1286, 1.442695
    %v1289 = vpow.pop %v1288
    %v1290 = vmul.f32 %v1287, 1.442695
    %v1291 = vpow.pop %v1290
    %v1292 = vadd.f32 %v1289, 1.0
    %v1293 = vadd.f32 %v1291, 1.0
    %v1294 = vrcp.pop %v1292
    %v1295 = vmul.f32 1.0, %v1294
    %v1296 = vrcp.pop %v1293
    %v1297 = vmul.f32 1.0, %v1296
    %v1298 = vtanh.pop %v1284
    %v1299 = vtanh.pop %v1285
    %v1302 = vrot.slane %v1112, 7
    %v1303 = vrot.slane %v1113, 7
    %v1306 = vmul.f32 %v1295, %v1302
    %v1307 = vmul.f32 %v1297, %v1303
    %1310 = vrot.lane.b32.xlu0 %v1298, 64
    %v1311 = vpop.permute.xlu0 %1310
    %1312 = vrot.lane.b32.xlu0 %v1299, 64
    %v1313 = vpop.permute.xlu0 %1312
    %v1316 = vmul.f32 %v1295, %v1311
    %v1317 = vmul.f32 %v1297, %v1313
    %1320 = vrot.lane.b32.xlu0 %v1316, 32
    %v1321 = vpop.permute.xlu0 %1320
    %1322 = vrot.lane.b32.xlu0 %v1317, 32
    %v1323 = vpop.permute.xlu0 %1322
    %v1326 = vadd.f32 %v1306, %v1321
    %v1327 = vadd.f32 %v1307, %v1323
    %v1328 = vtanh.pop %v1326
    %v1329 = vtanh.pop %v1327
    %1332 = vrot.lane.b32.xlu0 %v1328, 64
    %v1333 = vpop.permute.xlu0 %1332
    %1334 = vrot.lane.b32.xlu0 %v1329, 64
    %v1335 = vpop.permute.xlu0 %1334
    %v1338 = vmul.f32 %v1295, %v1333
    %v1339 = vmul.f32 %v1297, %v1335
    %v1341 = vrot.slane %v1277, 6
    %v1342 = vrot.slane %v1277, 7
    %v1345 = vadd.f32 %v125, %v1341
    %v1346 = vadd.f32 %v131, %v1342
    %v1347 = vxor.u32 %v1345, 2147483648
    %v1348 = vxor.u32 %v1346, 2147483648
    %v1349 = vmul.f32 %v1347, 1.442695
    %v1350 = vpow.pop %v1349
    %v1351 = vmul.f32 %v1348, 1.442695
    %v1352 = vpow.pop %v1351
    %v1353 = vadd.f32 %v1350, 1.0
    %v1354 = vadd.f32 %v1352, 1.0
    %v1355 = vrcp.pop %v1353
    %v1356 = vmul.f32 1.0, %v1355
    %v1357 = vrcp.pop %v1354
    %v1358 = vmul.f32 1.0, %v1357
    %v1359 = vtanh.pop %v1345
    %v1360 = vtanh.pop %v1346
    %v1363 = vrot.slane %v1173, 1
    %v1364 = vrot.slane %v1174, 1
    %v1367 = vmul.f32 %v1356, %v1363
    %v1368 = vmul.f32 %v1358, %v1364
    %1371 = vrot.lane.b32.xlu0 %v1359, 64
    %v1372 = vpop.permute.xlu0 %1371
    %1373 = vrot.lane.b32.xlu0 %v1360, 64
    %v1374 = vpop.permute.xlu0 %1373
    %v1377 = vmul.f32 %v1356, %v1372
    %v1378 = vmul.f32 %v1358, %v1374
    %1381 = vrot.lane.b32.xlu0 %v1377, 32
    %v1382 = vpop.permute.xlu0 %1381
    %1383 = vrot.lane.b32.xlu0 %v1378, 32
    %v1384 = vpop.permute.xlu0 %1383
    %v1387 = vadd.f32 %v1367, %v1382
    %v1388 = vadd.f32 %v1368, %v1384
    %v1389 = vtanh.pop %v1387
    %v1390 = vtanh.pop %v1388
    %1393 = vrot.lane.b32.xlu0 %v1389, 64
    %v1394 = vpop.permute.xlu0 %1393
    %1395 = vrot.lane.b32.xlu0 %v1390, 64
    %v1396 = vpop.permute.xlu0 %1395
    %v1399 = vmul.f32 %v1356, %v1394
    %v1400 = vmul.f32 %v1358, %v1396
    %v1403 = vrot.slane %v1339, 7
    %vm1404 = vcmask 1046534
    %v1405 = vsel %vm1404, %v1403, %v1338
    %1406 = vrot.lane.b32.xlu0 %v1405, 32
    %v1407 = vpop.permute.xlu0 %1406
    %v1411 = vrot.slane %v1399, 5
    %v1412 = vrot.slane %v1400, 4
    %v1413 = vsel %vm1404, %v1412, %v1411
    %1414 = vrot.lane.b32.xlu0 %v1413, 64
    %v1415 = vpop.permute.xlu0 %1414
    %v1417 = vsel %vm349, %v1407, %v1415
    %v1419 = vrot.slane %v1417, 5
    %v1420 = vsel %vm149, %v1419, 0
    %1422 = vmatprep.subr.mxu0 0.0
    %1423 = vmatpush1.msra.mxu0 0.0
    %1424 = vmatprep.subr.mxu0 0.0
    %1425 = vmatpush1.msra.mxu0 0.0
    %1426 = vmatprep.subr.mxu0 0.0
    %1427 = vmatpush1.msra.mxu0 0.0
    %1428 = vmatprep.subr.mxu0 0.0
    %1429 = vmatpush1.msra.mxu0 0.0
    %1430 = vmatprep.subr.mxu0 0.0
    %1431 = vmatpush1.msra.mxu0 0.0
    %1432 = vmatprep.subr.mxu0 0.0
    %1433 = vmatpush1.msra.mxu0 0.0
    %1434 = vmatprep.subr.mxu0 0.0
    %1435 = vmatpush1.msra.mxu0 0.0
    %1436 = vmatprep.subr.mxu0 0.0
    %1437 = vmatpush1.msra.mxu0 0.0
    %1438 = vmatprep.subr.mxu0 %v148
    %1439 = vmatpush1.msra.mxu0 %v147
    %1440 = vmatprep.subr.mxu0 %v146
    %1441 = vmatpush1.msra.mxu0 %v145
    %1442 = vmatprep.subr.mxu0 %v144
    %1443 = vmatpush1.msra.mxu0 %v143
    %1444 = vmatprep.subr.mxu0 %v142
    %1445 = vmatpush1.msra.mxu0 %v141
    %1446 = vmatprep.subr.mxu0 %v140
    %1447 = vmatpush1.msra.mxu0 %v139
    %1448 = vmatprep.subr.mxu0 %v138
    %1449 = vmatpush1.msra.mxu0 %v137
    %1450 = vmatprep.subr.mxu0 %v136
    %1451 = vmatpush1.msra.mxu0 %v135
    %1452 = vmatprep.subr.mxu0 %v134
    %1453 = vmatpush1.msra.mxu0 %v133
    %1454 = vmatprep.subr.mxu0 0.0
    %1455 = vmatpush2.msra.mxu0 0.0
    %1456 = vmatprep.subr.mxu0 0.0
    %1457 = vmatpush2.msra.mxu0 0.0
    %1458 = vmatprep.subr.mxu0 0.0
    %1459 = vmatpush2.msra.mxu0 0.0
    %1460 = vmatprep.subr.mxu0 0.0
    %1461 = vmatpush2.msra.mxu0 0.0
    %1462 = vmatprep.subr.mxu0 0.0
    %1463 = vmatpush2.msra.mxu0 0.0
    %1464 = vmatprep.subr.mxu0 0.0
    %1465 = vmatpush2.msra.mxu0 0.0
    %1466 = vmatprep.subr.mxu0 0.0
    %1467 = vmatpush2.msra.mxu0 0.0
    %1468 = vmatprep.subr.mxu0 0.0
    %1469 = vmatpush2.msra.mxu0 0.0
    %1470 = vmatprep.subr.mxu0 0.0
    %1471 = vmatpush2.msra.mxu0 0.0
    %1472 = vmatprep.subr.mxu0 0.0
    %1473 = vmatpush2.msra.mxu0 0.0
    %1474 = vmatprep.subr.mxu0 0.0
    %1475 = vmatpush2.msra.mxu0 0.0
    %1476 = vmatprep.subr.mxu0 0.0
    %1477 = vmatpush2.msra.mxu0 0.0
    %1478 = vmatprep.subr.mxu0 0.0
    %1479 = vmatpush2.msra.mxu0 0.0
    %1480 = vmatprep.subr.mxu0 0.0
    %1481 = vmatpush2.msra.mxu0 0.0
    %1482 = vmatprep.subr.mxu0 0.0
    %1483 = vmatpush2.msra.mxu0 0.0
    %1484 = vmatprep.subr.mxu0 0.0
    %1485 = vmatpush2.msra.mxu0 0.0
    %1486 = vmatprep.mubr.f32.mxu0 0.0
    %1487 = vmatmul.mubr.f32.gmra.mxu0 %v1420
    %v1488 = vpop.f32.mrf.mxu0
    %v1489 = vadd.f32 0.0, %v1488
    %v1490 = vpop.f32.mrf.mxu0
    %v1491 = vadd.f32 0.0, %v1490
    %1492 = vdwg.mxu0
    %v1494 = vrot.slane %v1489, 2
    %v1495 = vrot.slane %v1489, 3
    %v1498 = vadd.f32 %v123, %v1494
    %v1499 = vadd.f32 %v129, %v1495
    %v1500 = vxor.u32 %v1498, 2147483648
    %v1501 = vxor.u32 %v1499, 2147483648
    %v1502 = vmul.f32 %v1500, 1.442695
    %v1503 = vpow.pop %v1502
    %v1504 = vmul.f32 %v1501, 1.442695
    %v1505 = vpow.pop %v1504
    %v1506 = vadd.f32 %v1503, 1.0
    %v1507 = vadd.f32 %v1505, 1.0
    %v1508 = vrcp.pop %v1506
    %v1509 = vmul.f32 1.0, %v1508
    %v1510 = vrcp.pop %v1507
    %v1511 = vmul.f32 1.0, %v1510
    %v1512 = vtanh.pop %v1498
    %v1513 = vtanh.pop %v1499
    %v1516 = vrot.slane %v1326, 7
    %v1517 = vrot.slane %v1327, 7
    %v1520 = vmul.f32 %v1509, %v1516
    %v1521 = vmul.f32 %v1511, %v1517
    %1524 = vrot.lane.b32.xlu0 %v1512, 64
    %v1525 = vpop.permute.xlu0 %1524
    %1526 = vrot.lane.b32.xlu0 %v1513, 64
    %v1527 = vpop.permute.xlu0 %1526
    %v1530 = vmul.f32 %v1509, %v1525
    %v1531 = vmul.f32 %v1511, %v1527
    %1534 = vrot.lane.b32.xlu0 %v1530, 32
    %v1535 = vpop.permute.xlu0 %1534
    %1536 = vrot.lane.b32.xlu0 %v1531, 32
    %v1537 = vpop.permute.xlu0 %1536
    %v1540 = vadd.f32 %v1520, %v1535
    %v1541 = vadd.f32 %v1521, %v1537
    %v1542 = vtanh.pop %v1540
    %v1543 = vtanh.pop %v1541
    %1546 = vrot.lane.b32.xlu0 %v1542, 64
    %v1547 = vpop.permute.xlu0 %1546
    %1548 = vrot.lane.b32.xlu0 %v1543, 64
    %v1549 = vpop.permute.xlu0 %1548
    %v1552 = vmul.f32 %v1509, %v1547
    %v1553 = vmul.f32 %v1511, %v1549
    %v1555 = vrot.slane %v1491, 7
    %v1558 = vadd.f32 %v125, %v1555
    %v1559 = vadd.f32 %v131, %v1491
    %v1560 = vxor.u32 %v1558, 2147483648
    %v1561 = vxor.u32 %v1559, 2147483648
    %v1562 = vmul.f32 %v1560, 1.442695
    %v1563 = vpow.pop %v1562
    %v1564 = vmul.f32 %v1561, 1.442695
    %v1565 = vpow.pop %v1564
    %v1566 = vadd.f32 %v1563, 1.0
    %v1567 = vadd.f32 %v1565, 1.0
    %v1568 = vrcp.pop %v1566
    %v1569 = vmul.f32 1.0, %v1568
    %v1570 = vrcp.pop %v1567
    %v1571 = vmul.f32 1.0, %v1570
    %v1572 = vtanh.pop %v1558
    %v1573 = vtanh.pop %v1559
    %v1576 = vrot.slane %v1387, 1
    %v1577 = vrot.slane %v1388, 1
    %v1580 = vmul.f32 %v1569, %v1576
    %v1581 = vmul.f32 %v1571, %v1577
    %1584 = vrot.lane.b32.xlu0 %v1572, 64
    %v1585 = vpop.permute.xlu0 %1584
    %1586 = vrot.lane.b32.xlu0 %v1573, 64
    %v1587 = vpop.permute.xlu0 %1586
    %v1590 = vmul.f32 %v1569, %v1585
    %v1591 = vmul.f32 %v1571, %v1587
    %1594 = vrot.lane.b32.xlu0 %v1590, 32
    %v1595 = vpop.permute.xlu0 %1594
    %1596 = vrot.lane.b32.xlu0 %v1591, 32
    %v1597 = vpop.permute.xlu0 %1596
    %v1600 = vadd.f32 %v1580, %v1595
    %v1601 = vadd.f32 %v1581, %v1597
    %v1602 = vtanh.pop %v1600
    %v1603 = vtanh.pop %v1601
    %1606 = vrot.lane.b32.xlu0 %v1602, 64
    %v1607 = vpop.permute.xlu0 %1606
    %1608 = vrot.lane.b32.xlu0 %v1603, 64
    %v1609 = vpop.permute.xlu0 %1608
    %v1612 = vmul.f32 %v1569, %v1607
    %v1613 = vmul.f32 %v1571, %v1609
    %v1616 = vrot.slane %v1553, 7
    %vm1617 = vcmask 1047559
    %v1618 = vsel %vm1617, %v1616, %v1552
    %1619 = vrot.lane.b32.xlu0 %v1618, 32
    %v1620 = vpop.permute.xlu0 %1619
    %v1624 = vrot.slane %v1612, 3
    %v1625 = vrot.slane %v1613, 2
    %v1626 = vsel %vm1617, %v1625, %v1624
    %1627 = vrot.lane.b32.xlu0 %v1626, 64
    %v1628 = vpop.permute.xlu0 %1627
    %v1630 = vsel %vm349, %v1620, %v1628
    %v1632 = vrot.slane %v1630, 6
    %v1633 = vsel %vm149, %v1632, 0
    %1635 = vmatprep.subr.mxu0 0.0
    %1636 = vmatpush1.msra.mxu0 0.0
    %1637 = vmatprep.subr.mxu0 0.0
    %1638 = vmatpush1.msra.mxu0 0.0
    %1639 = vmatprep.subr.mxu0 0.0
    %1640 = vmatpush1.msra.mxu0 0.0
    %1641 = vmatprep.subr.mxu0 0.0
    %1642 = vmatpush1.msra.mxu0 0.0
    %1643 = vmatprep.subr.mxu0 0.0
    %1644 = vmatpush1.msra.mxu0 0.0
    %1645 = vmatprep.subr.mxu0 0.0
    %1646 = vmatpush1.msra.mxu0 0.0
    %1647 = vmatprep.subr.mxu0 0.0
    %1648 = vmatpush1.msra.mxu0 0.0
    %1649 = vmatprep.subr.mxu0 0.0
    %1650 = vmatpush1.msra.mxu0 0.0
    %1651 = vmatprep.subr.mxu0 %v148
    %1652 = vmatpush1.msra.mxu0 %v147
    %1653 = vmatprep.subr.mxu0 %v146
    %1654 = vmatpush1.msra.mxu0 %v145
    %1655 = vmatprep.subr.mxu0 %v144
    %1656 = vmatpush1.msra.mxu0 %v143
    %1657 = vmatprep.subr.mxu0 %v142
    %1658 = vmatpush1.msra.mxu0 %v141
    %1659 = vmatprep.subr.mxu0 %v140
    %1660 = vmatpush1.msra.mxu0 %v139
    %1661 = vmatprep.subr.mxu0 %v138
    %1662 = vmatpush1.msra.mxu0 %v137
    %1663 = vmatprep.subr.mxu0 %v136
    %1664 = vmatpush1.msra.mxu0 %v135
    %1665 = vmatprep.subr.mxu0 %v134
    %1666 = vmatpush1.msra.mxu0 %v133
    %1667 = vmatprep.subr.mxu0 0.0
    %1668 = vmatpush2.msra.mxu0 0.0
    %1669 = vmatprep.subr.mxu0 0.0
    %1670 = vmatpush2.msra.mxu0 0.0
    %1671 = vmatprep.subr.mxu0 0.0
    %1672 = vmatpush2.msra.mxu0 0.0
    %1673 = vmatprep.subr.mxu0 0.0
    %1674 = vmatpush2.msra.mxu0 0.0
    %1675 = vmatprep.subr.mxu0 0.0
    %1676 = vmatpush2.msra.mxu0 0.0
    %1677 = vmatprep.subr.mxu0 0.0
    %1678 = vmatpush2.msra.mxu0 0.0
    %1679 = vmatprep.subr.mxu0 0.0
    %1680 = vmatpush2.msra.mxu0 0.0
    %1681 = vmatprep.subr.mxu0 0.0
    %1682 = vmatpush2.msra.mxu0 0.0
    %1683 = vmatprep.subr.mxu0 0.0
    %1684 = vmatpush2.msra.mxu0 0.0
    %1685 = vmatprep.subr.mxu0 0.0
    %1686 = vmatpush2.msra.mxu0 0.0
    %1687 = vmatprep.subr.mxu0 0.0
    %1688 = vmatpush2.msra.mxu0 0.0
    %1689 = vmatprep.subr.mxu0 0.0
    %1690 = vmatpush2.msra.mxu0 0.0
    %1691 = vmatprep.subr.mxu0 0.0
    %1692 = vmatpush2.msra.mxu0 0.0
    %1693 = vmatprep.subr.mxu0 0.0
    %1694 = vmatpush2.msra.mxu0 0.0
    %1695 = vmatprep.subr.mxu0 0.0
    %1696 = vmatpush2.msra.mxu0 0.0
    %1697 = vmatprep.subr.mxu0 0.0
    %1698 = vmatpush2.msra.mxu0 0.0
    %1699 = vmatprep.mubr.f32.mxu0 0.0
    %1700 = vmatmul.mubr.f32.gmra.mxu0 %v1633
    %v1701 = vpop.f32.mrf.mxu0
    %v1702 = vadd.f32 0.0, %v1701
    %v1703 = vpop.f32.mrf.mxu0
    %v1704 = vadd.f32 0.0, %v1703
    %1705 = vdwg.mxu0
    %v1707 = vrot.slane %v1702, 1
    %v1708 = vrot.slane %v1702, 2
    %v1711 = vadd.f32 %v123, %v1707
    %v1712 = vadd.f32 %v129, %v1708
    %v1713 = vxor.u32 %v1711, 2147483648
    %v1714 = vxor.u32 %v1712, 2147483648
    %v1715 = vmul.f32 %v1713, 1.442695
    %v1716 = vpow.pop %v1715
    %v1717 = vmul.f32 %v1714, 1.442695
    %v1718 = vpow.pop %v1717
    %v1719 = vadd.f32 %v1716, 1.0
    %v1720 = vadd.f32 %v1718, 1.0
    %v1721 = vrcp.pop %v1719
    %v1722 = vmul.f32 1.0, %v1721
    %v1723 = vrcp.pop %v1720
    %v1724 = vmul.f32 1.0, %v1723
    %v1725 = vtanh.pop %v1711
    %v1726 = vtanh.pop %v1712
    %v1729 = vrot.slane %v1540, 7
    %v1730 = vrot.slane %v1541, 7
    %v1733 = vmul.f32 %v1722, %v1729
    %v1734 = vmul.f32 %v1724, %v1730
    %1737 = vrot.lane.b32.xlu0 %v1725, 64
    %v1738 = vpop.permute.xlu0 %1737
    %1739 = vrot.lane.b32.xlu0 %v1726, 64
    %v1740 = vpop.permute.xlu0 %1739
    %v1743 = vmul.f32 %v1722, %v1738
    %v1744 = vmul.f32 %v1724, %v1740
    %1747 = vrot.lane.b32.xlu0 %v1743, 32
    %v1748 = vpop.permute.xlu0 %1747
    %1749 = vrot.lane.b32.xlu0 %v1744, 32
    %v1750 = vpop.permute.xlu0 %1749
    %v1753 = vadd.f32 %v1733, %v1748
    %v1754 = vadd.f32 %v1734, %v1750
    %v1755 = vtanh.pop %v1753
    %v1756 = vtanh.pop %v1754
    %1759 = vrot.lane.b32.xlu0 %v1755, 64
    %v1760 = vpop.permute.xlu0 %1759
    %1761 = vrot.lane.b32.xlu0 %v1756, 64
    %v1762 = vpop.permute.xlu0 %1761
    %v1765 = vmul.f32 %v1722, %v1760
    %v1766 = vmul.f32 %v1724, %v1762
    %v1768 = vrot.slane %v1704, 1
    %v1771 = vadd.f32 %v125, %v1704
    %v1772 = vadd.f32 %v131, %v1768
    %v1773 = vxor.u32 %v1771, 2147483648
    %v1774 = vxor.u32 %v1772, 2147483648
    %v1775 = vmul.f32 %v1773, 1.442695
    %v1776 = vpow.pop %v1775
    %v1777 = vmul.f32 %v1774, 1.442695
    %v1778 = vpow.pop %v1777
    %v1779 = vadd.f32 %v1776, 1.0
    %v1780 = vadd.f32 %v1778, 1.0
    %v1781 = vrcp.pop %v1779
    %v1782 = vmul.f32 1.0, %v1781
    %v1783 = vrcp.pop %v1780
    %v1784 = vmul.f32 1.0, %v1783
    %v1785 = vtanh.pop %v1771
    %v1786 = vtanh.pop %v1772
    %v1789 = vrot.slane %v1600, 1
    %v1790 = vrot.slane %v1601, 1
    %v1793 = vmul.f32 %v1782, %v1789
    %v1794 = vmul.f32 %v1784, %v1790
    %1797 = vrot.lane.b32.xlu0 %v1785, 64
    %v1798 = vpop.permute.xlu0 %1797
    %1799 = vrot.lane.b32.xlu0 %v1786, 64
    %v1800 = vpop.permute.xlu0 %1799
    %v1803 = vmul.f32 %v1782, %v1798
    %v1804 = vmul.f32 %v1784, %v1800
    %1807 = vrot.lane.b32.xlu0 %v1803, 32
    %v1808 = vpop.permute.xlu0 %1807
    %1809 = vrot.lane.b32.xlu0 %v1804, 32
    %v1810 = vpop.permute.xlu0 %1809
    %v1813 = vadd.f32 %v1793, %v1808
    %v1814 = vadd.f32 %v1794, %v1810
    %v1815 = vtanh.pop %v1813
    %v1816 = vtanh.pop %v1814
    %1819 = vrot.lane.b32.xlu0 %v1815, 64
    %v1820 = vpop.permute.xlu0 %1819
    %1821 = vrot.lane.b32.xlu0 %v1816, 64
    %v1822 = vpop.permute.xlu0 %1821
    %v1825 = vmul.f32 %v1782, %v1820
    %v1826 = vmul.f32 %v1784, %v1822
    %v1829 = vrot.slane %v1826, 7
    %v1830 = vsel %vm336, %v1829, %v1825
    %1831 = vrot.lane.b32.xlu0 %v1830, 64
    %v1832 = vpop.permute.xlu0 %1831
    %v1834 = vsel %vm349, %v339, %v1832
    %v1835 = vrot.slane %v1613, 7
    %v1836 = vsel %vm549, %v1835, %v1612
    %1837 = vrot.lane.b32.xlu0 %v1836, 64
    %v1838 = vpop.permute.xlu0 %1837
    %v1840 = vsel %vm349, %v552, %v1838
    %v1841 = vrot.slane %v1400, 7
    %v1842 = vsel %vm763, %v1841, %v1399
    %1843 = vrot.lane.b32.xlu0 %v1842, 64
    %v1844 = vpop.permute.xlu0 %1843
    %v1846 = vsel %vm349, %v766, %v1844
    %v1847 = vrot.slane %v1186, 7
    %v1848 = vsel %vm977, %v1847, %v1185
    %1849 = vrot.lane.b32.xlu0 %v1848, 64
    %v1850 = vpop.permute.xlu0 %1849
    %v1852 = vsel %vm349, %v980, %v1850
    %v1853 = vrot.slane %v973, 7
    %v1854 = vsel %vm1190, %v1853, %v972
    %1855 = vrot.lane.b32.xlu0 %v1854, 64
    %v1856 = vpop.permute.xlu0 %1855
    %v1858 = vsel %vm349, %v1193, %v1856
    %v1859 = vrot.slane %v759, 7
    %v1860 = vsel %vm1404, %v1859, %v758
    %1861 = vrot.lane.b32.xlu0 %v1860, 64
    %v1862 = vpop.permute.xlu0 %1861
    %v1864 = vsel %vm349, %v1407, %v1862
    %v1865 = vrot.slane %v545, 7
    %v1866 = vsel %vm1617, %v1865, %v544
    %1867 = vrot.lane.b32.xlu0 %v1866, 64
    %v1868 = vpop.permute.xlu0 %1867
    %v1870 = vsel %vm349, %v1620, %v1868
    %v1873 = vrot.slane %v1766, 7
    %1874 = vrot.lane.b32.xlu0 %v1765, 32
    %v1875 = vpop.permute.xlu0 %1874
    %1876 = vrot.lane.b32.xlu0 %v1873, 32
    %v1877 = vpop.permute.xlu0 %1876
    %v1880 = vrot.slane %v332, 7
    %1881 = vrot.lane.b32.xlu0 %v331, 64
    %v1882 = vpop.permute.xlu0 %1881
    %1883 = vrot.lane.b32.xlu0 %v1880, 64
    %v1884 = vpop.permute.xlu0 %1883
    %v1887 = vsel %vm349, %v1875, %v1882
    %v1888 = vsel %vm349, %v1877, %v1884
    %v1891 = vunpack.c.l.s4 1966171168
    %v1892 = vunpack.c.0.s8 %v1891
    %v1893 = vlaneseq
    %v1894 = vshrl.u32 %v1893, 7
    %v1895 = vsub.s32 %v1892, %v1894
    %v1896 = vrot.slane %v1834, %v1895
    %v1897 = vcombine.high %v1896, %v1896
    %v1899 = vunpack.c.l.s4 1966171168
    %v1900 = vunpack.c.0.s8 %v1899
    %v1901 = vlaneseq
    %v1902 = vshrl.u32 %v1901, 7
    %v1903 = vsub.s32 %v1900, %v1902
    %v1904 = vrot.slane %v1896, %v1903
    %v1906 = vunpack.c.l.s4 1966171168
    %v1907 = vunpack.c.0.s8 %v1906
    %v1908 = vlaneseq
    %v1909 = vshrl.u32 %v1908, 7
    %v1910 = vsub.s32 %v1907, %v1909
    %v1911 = vrot.slane %v1897, %v1910
    %v1916 = vunpack.c.l.s4 1966171168
    %v1917 = vunpack.c.0.s8 %v1916
    %v1918 = vlaneseq
    %v1919 = vshrl.u32 %v1918, 7
    %v1920 = vsub.s32 %v1917, %v1919
    %v1921 = vrot.slane %v1840, %v1920
    %v1922 = vcombine.high %v1921, %v1921
    %v1924 = vunpack.c.l.s4 1966171168
    %v1925 = vunpack.c.0.s8 %v1924
    %v1926 = vlaneseq
    %v1927 = vshrl.u32 %v1926, 7
    %v1928 = vsub.s32 %v1925, %v1927
    %v1929 = vrot.slane %v1921, %v1928
    %v1931 = vunpack.c.l.s4 1966171168
    %v1932 = vunpack.c.0.s8 %v1931
    %v1933 = vlaneseq
    %v1934 = vshrl.u32 %v1933, 7
    %v1935 = vsub.s32 %v1932, %v1934
    %v1936 = vrot.slane %v1922, %v1935
    %v1937 = vcombine.high %v1929, %v1929
    %v1940 = vunpack.c.l.s4 1966171168
    %v1941 = vunpack.c.0.s8 %v1940
    %v1942 = vlaneseq
    %v1943 = vshrl.u32 %v1942, 7
    %v1944 = vsub.s32 %v1941, %v1943
    %v1945 = vrot.slane %v1846, %v1944
    %v1946 = vcombine.high %v1945, %v1945
    %v1948 = vunpack.c.l.s4 1966171168
    %v1949 = vunpack.c.0.s8 %v1948
    %v1950 = vlaneseq
    %v1951 = vshrl.u32 %v1950, 7
    %v1952 = vsub.s32 %v1949, %v1951
    %v1953 = vrot.slane %v1945, %v1952
    %v1955 = vunpack.c.l.s4 1966171168
    %v1956 = vunpack.c.0.s8 %v1955
    %v1957 = vlaneseq
    %v1958 = vshrl.u32 %v1957, 7
    %v1959 = vsub.s32 %v1956, %v1958
    %v1960 = vrot.slane %v1946, %v1959
    %v1961 = vcombine.high %v1953, %v1953
    %v1962 = vcombine.high %v1960, %v1960
    %v1964 = vcombine.high %v1852, %v1852
    %v1966 = vunpack.c.l.s4 1966171168
    %v1967 = vunpack.c.0.s8 %v1966
    %v1968 = vlaneseq
    %v1969 = vshrl.u32 %v1968, 7
    %v1970 = vsub.s32 %v1967, %v1969
    %v1971 = vrot.slane %v1852, %v1970
    %v1973 = vunpack.c.l.s4 1966171168
    %v1974 = vunpack.c.0.s8 %v1973
    %v1975 = vlaneseq
    %v1976 = vshrl.u32 %v1975, 7
    %v1977 = vsub.s32 %v1974, %v1976
    %v1978 = vrot.slane %v1964, %v1977
    %v1979 = vcombine.high %v1971, %v1971
    %v1981 = vunpack.c.l.s4 1966171168
    %v1982 = vunpack.c.0.s8 %v1981
    %v1983 = vlaneseq
    %v1984 = vshrl.u32 %v1983, 7
    %v1985 = vsub.s32 %v1982, %v1984
    %v1986 = vrot.slane %v1978, %v1985
    %v1988 = vunpack.c.l.s4 1966171168
    %v1989 = vunpack.c.0.s8 %v1988
    %v1990 = vlaneseq
    %v1991 = vshrl.u32 %v1990, 7
    %v1992 = vsub.s32 %v1989, %v1991
    %v1993 = vrot.slane %v1979, %v1992
    %v1994 = vcombine.high %v1993, %v1993
    %v1996 = vcombine.high %v1858, %v1858
    %v1998 = vunpack.c.l.s4 1966171168
    %v1999 = vunpack.c.0.s8 %v1998
    %v2000 = vlaneseq
    %v2001 = vshrl.u32 %v2000, 7
    %v2002 = vsub.s32 %v1999, %v2001
    %v2003 = vrot.slane %v1996, %v2002
    %v2004 = vcombine.high %v2003, %v2003
    %v2006 = vunpack.c.l.s4 1966171168
    %v2007 = vunpack.c.0.s8 %v2006
    %v2008 = vlaneseq
    %v2009 = vshrl.u32 %v2008, 7
    %v2010 = vsub.s32 %v2007, %v2009
    %v2011 = vrot.slane %v2003, %v2010
    %v2013 = vunpack.c.l.s4 1966171168
    %v2014 = vunpack.c.0.s8 %v2013
    %v2015 = vlaneseq
    %v2016 = vshrl.u32 %v2015, 7
    %v2017 = vsub.s32 %v2014, %v2016
    %v2018 = vrot.slane %v2004, %v2017
    %v2020 = vcombine.high %v1864, %v1864
    %v2022 = vunpack.c.l.s4 1966171168
    %v2023 = vunpack.c.0.s8 %v2022
    %v2024 = vlaneseq
    %v2025 = vshrl.u32 %v2024, 7
    %v2026 = vsub.s32 %v2023, %v2025
    %v2027 = vrot.slane %v2020, %v2026
    %v2028 = vcombine.high %v2027, %v2027
    %v2030 = vunpack.c.l.s4 1966171168
    %v2031 = vunpack.c.0.s8 %v2030
    %v2032 = vlaneseq
    %v2033 = vshrl.u32 %v2032, 7
    %v2034 = vsub.s32 %v2031, %v2033
    %v2035 = vrot.slane %v2027, %v2034
    %v2037 = vunpack.c.l.s4 1966171168
    %v2038 = vunpack.c.0.s8 %v2037
    %v2039 = vlaneseq
    %v2040 = vshrl.u32 %v2039, 7
    %v2041 = vsub.s32 %v2038, %v2040
    %v2042 = vrot.slane %v2028, %v2041
    %v2043 = vcombine.high %v2035, %v2035
    %v2045 = vcombine.high %v1870, %v1870
    %v2047 = vunpack.c.l.s4 1966171168
    %v2048 = vunpack.c.0.s8 %v2047
    %v2049 = vlaneseq
    %v2050 = vshrl.u32 %v2049, 7
    %v2051 = vsub.s32 %v2048, %v2050
    %v2052 = vrot.slane %v2045, %v2051
    %v2053 = vcombine.high %v2052, %v2052
    %v2055 = vunpack.c.l.s4 1966171168
    %v2056 = vunpack.c.0.s8 %v2055
    %v2057 = vlaneseq
    %v2058 = vshrl.u32 %v2057, 7
    %v2059 = vsub.s32 %v2056, %v2058
    %v2060 = vrot.slane %v2052, %v2059
    %v2062 = vunpack.c.l.s4 1966171168
    %v2063 = vunpack.c.0.s8 %v2062
    %v2064 = vlaneseq
    %v2065 = vshrl.u32 %v2064, 7
    %v2066 = vsub.s32 %v2063, %v2065
    %v2067 = vrot.slane %v2053, %v2066
    %v2068 = vcombine.high %v2060, %v2060
    %v2069 = vcombine.high %v2067, %v2067
    %v2072 = vcombine.high %v1887, %v1887
    %v2074 = vunpack.c.l.s4 1966171168
    %v2075 = vunpack.c.0.s8 %v2074
    %v2076 = vlaneseq
    %v2077 = vshrl.u32 %v2076, 7
    %v2078 = vsub.s32 %v2075, %v2077
    %v2079 = vrot.slane %v2072, %v2078
    %v2080 = vcombine.high %v2079, %v2079
    %v2082 = vunpack.c.l.s4 1966171168
    %v2083 = vunpack.c.0.s8 %v2082
    %v2084 = vlaneseq
    %v2085 = vshrl.u32 %v2084, 7
    %v2086 = vsub.s32 %v2083, %v2085
    %v2087 = vrot.slane %v2080, %v2086
    %v2088 = vcombine.high %v2087, %v2087
    %v2090 = vunpack.c.l.s4 1966171168
    %v2091 = vunpack.c.0.s8 %v2090
    %v2092 = vlaneseq
    %v2093 = vshrl.u32 %v2092, 7
    %v2094 = vsub.s32 %v2091, %v2093
    %v2095 = vrot.slane %v1888, %v2094
    %v2097 = vunpack.c.l.s4 1966171168
    %v2098 = vunpack.c.0.s8 %v2097
    %v2099 = vlaneseq
    %v2100 = vshrl.u32 %v2099, 7
    %v2101 = vsub.s32 %v2098, %v2100
    %v2102 = vrot.slane %v2095, %v2101
    %v2103 = vlaneseq
    %v2104 = vshrl.u32 %v2103, 7
    %v2105 = vsub.s32 0, %v2104
    %v2106 = vrot.slane %v1936, %v2105
    %v2107 = vlaneseq
    %v2108 = vshrl.u32 %v2107, 7
    %v2109 = vsub.s32 0, %v2108
    %v2110 = vrot.slane %v1937, %v2109
    %v2113 = vlaneseq
    %v2114 = vshrl.u32 %v2113, 7
    %v2115 = vsub.s32 0, %v2114
    %v2116 = vrot.slane %v1961, %v2115
    %v2117 = vlaneseq
    %v2118 = vshrl.u32 %v2117, 7
    %v2119 = vsub.s32 0, %v2118
    %v2120 = vrot.slane %v1962, %v2119
    %v2123 = vlaneseq
    %v2124 = vshrl.u32 %v2123, 7
    %v2125 = vsub.s32 0, %v2124
    %v2126 = vrot.slane %v1994, %v2125
    %v2127 = vlaneseq
    %v2128 = vshrl.u32 %v2127, 7
    %v2129 = vsub.s32 0, %v2128
    %v2130 = vrot.slane %v1986, %v2129
    %v2133 = vlaneseq
    %v2134 = vshrl.u32 %v2133, 7
    %v2135 = vsub.s32 0, %v2134
    %v2136 = vrot.slane %v2011, %v2135
    %v2137 = vlaneseq
    %v2138 = vshrl.u32 %v2137, 7
    %v2139 = vsub.s32 0, %v2138
    %v2140 = vrot.slane %v2018, %v2139
    %v2143 = vlaneseq
    %v2144 = vshrl.u32 %v2143, 7
    %v2145 = vsub.s32 0, %v2144
    %v2146 = vrot.slane %v2042, %v2145
    %v2147 = vlaneseq
    %v2148 = vshrl.u32 %v2147, 7
    %v2149 = vsub.s32 0, %v2148
    %v2150 = vrot.slane %v2043, %v2149
    %v2153 = vlaneseq
    %v2154 = vshrl.u32 %v2153, 7
    %v2155 = vsub.s32 0, %v2154
    %v2156 = vrot.slane %v2068, %v2155
    %v2157 = vlaneseq
    %v2158 = vshrl.u32 %v2157, 7
    %v2159 = vsub.s32 0, %v2158
    %v2160 = vrot.slane %v2069, %v2159
    %v2163 = vlaneseq
    %v2164 = vshrl.u32 %v2163, 7
    %v2165 = vsub.s32 0, %v2164
    %v2166 = vrot.slane %v2088, %v2165
    %v2167 = vlaneseq
    %v2168 = vshrl.u32 %v2167, 7
    %v2169 = vsub.s32 0, %v2168
    %v2170 = vrot.slane %v2102, %v2169
    %vm2173 = vcmask 1040384
    %v2174 = vsel %vm2173, %v1904, %v2106
    %v2175 = vsel %vm2173, %v1911, %v2110
    %vm2176 = vcmask 1041408
    %v2177 = vsel %vm2176, %v2174, %v2116
    %v2178 = vsel %vm2176, %v2175, %v2120
    %vm2179 = vcmask 1042432
    %v2180 = vsel %vm2179, %v2177, %v2126
    %v2181 = vsel %vm2179, %v2178, %v2130
    %vm2182 = vcmask 1043456
    %v2183 = vsel %vm2182, %v2180, %v2136
    %v2184 = vsel %vm2182, %v2181, %v2140
    %vm2185 = vcmask 1044480
    %v2186 = vsel %vm2185, %v2183, %v2146
    %v2187 = vsel %vm2185, %v2184, %v2150
    %vm2188 = vcmask 1045504
    %v2189 = vsel %vm2188, %v2186, %v2156
    %v2190 = vsel %vm2188, %v2187, %v2160
    %vm2191 = vcmask 1046528
    %v2192 = vsel %vm2191, %v2189, %v2166
    %v2193 = vsel %vm2191, %v2190, %v2170
    %v2194 = vld [vmem:[%s4] sm:$0xff]
    %v2195 = vld [vmem:[%s4 + $0x8] sm:$0xff]
    %v2196 = vld [vmem:[%s4 + $0x10] sm:$0xff]
    %v2197 = vld [vmem:[%s4 + $0x18] sm:$0xff]
    %v2198 = vld [vmem:[%s4 + $0x20] sm:$0xff]
    %v2199 = vld [vmem:[%s4 + $0x28] sm:$0xff]
    %v2200 = vld [vmem:[%s4 + $0x30] sm:$0xff]
    %v2201 = vld [vmem:[%s4 + $0x38] sm:$0xff]
    %v2202 = vld [vmem:[%s4 + $0x40] sm:$0xff]
    %v2203 = vld [vmem:[%s4 + $0x48] sm:$0xff]
    %v2204 = vld [vmem:[%s4 + $0x50] sm:$0xff]
    %v2205 = vld [vmem:[%s4 + $0x58] sm:$0xff]
    %v2206 = vld [vmem:[%s4 + $0x60] sm:$0xff]
    %v2207 = vld [vmem:[%s4 + $0x68] sm:$0xff]
    %v2208 = vld [vmem:[%s4 + $0x70] sm:$0xff]
    %v2209 = vld [vmem:[%s4 + $0x78] sm:$0xff]
    %v2210 = vld [vmem:[%s6] sm:$0x3]
    %v2212 = vlaneseq
    %v2213 = vshrl.u32 %v2212, 7
    %v2214 = vsub.s32 0, %v2213
    %v2215 = vrot.slane %v2210, %v2214
    %v2216 = vlaneseq
    %v2217 = vshrl.u32 %v2216, 7
    %v2218 = vsub.s32 1, %v2217
    %v2219 = vrot.slane %v2210, %v2218
    %v2223 = vsel %vm149, %v2192, 0
    %v2226 = vsel %vm149, %v2193, 0
    %2228 = vmatprep.subr.mxu0 0.0
    %2229 = vmatpush1.msra.mxu0 0.0
    %2230 = vmatprep.subr.mxu0 0.0
    %2231 = vmatpush1.msra.mxu0 0.0
    %2232 = vmatprep.subr.mxu0 0.0
    %2233 = vmatpush1.msra.mxu0 0.0
    %2234 = vmatprep.subr.mxu0 0.0
    %2235 = vmatpush1.msra.mxu0 0.0
    %2236 = vmatprep.subr.mxu0 0.0
    %2237 = vmatpush1.msra.mxu0 0.0
    %2238 = vmatprep.subr.mxu0 0.0
    %2239 = vmatpush1.msra.mxu0 0.0
    %2240 = vmatprep.subr.mxu0 0.0
    %2241 = vmatpush1.msra.mxu0 0.0
    %2242 = vmatprep.subr.mxu0 0.0
    %2243 = vmatpush1.msra.mxu0 0.0
    %2244 = vmatprep.subr.mxu0 %v2209
    %2245 = vmatpush1.msra.mxu0 %v2208
    %2246 = vmatprep.subr.mxu0 %v2207
    %2247 = vmatpush1.msra.mxu0 %v2206
    %2248 = vmatprep.subr.mxu0 %v2205
    %2249 = vmatpush1.msra.mxu0 %v2204
    %2250 = vmatprep.subr.mxu0 %v2203
    %2251 = vmatpush1.msra.mxu0 %v2202
    %2252 = vmatprep.subr.mxu0 %v2201
    %2253 = vmatpush1.msra.mxu0 %v2200
    %2254 = vmatprep.subr.mxu0 %v2199
    %2255 = vmatpush1.msra.mxu0 %v2198
    %2256 = vmatprep.subr.mxu0 %v2197
    %2257 = vmatpush1.msra.mxu0 %v2196
    %2258 = vmatprep.subr.mxu0 %v2195
    %2259 = vmatpush1.msra.mxu0 %v2194
    %2260 = vmatprep.subr.mxu0 0.0
    %2261 = vmatpush2.msra.mxu0 0.0
    %2262 = vmatprep.subr.mxu0 0.0
    %2263 = vmatpush2.msra.mxu0 0.0
    %2264 = vmatprep.subr.mxu0 0.0
    %2265 = vmatpush2.msra.mxu0 0.0
    %2266 = vmatprep.subr.mxu0 0.0
    %2267 = vmatpush2.msra.mxu0 0.0
    %2268 = vmatprep.subr.mxu0 0.0
    %2269 = vmatpush2.msra.mxu0 0.0
    %2270 = vmatprep.subr.mxu0 0.0
    %2271 = vmatpush2.msra.mxu0 0.0
    %2272 = vmatprep.subr.mxu0 0.0
    %2273 = vmatpush2.msra.mxu0 0.0
    %2274 = vmatprep.subr.mxu0 0.0
    %2275 = vmatpush2.msra.mxu0 0.0
    %2276 = vmatprep.subr.mxu0 0.0
    %2277 = vmatpush2.msra.mxu0 0.0
    %2278 = vmatprep.subr.mxu0 0.0
    %2279 = vmatpush2.msra.mxu0 0.0
    %2280 = vmatprep.subr.mxu0 0.0
    %2281 = vmatpush2.msra.mxu0 0.0
    %2282 = vmatprep.subr.mxu0 0.0
    %2283 = vmatpush2.msra.mxu0 0.0
    %2284 = vmatprep.subr.mxu0 0.0
    %2285 = vmatpush2.msra.mxu0 0.0
    %2286 = vmatprep.subr.mxu0 0.0
    %2287 = vmatpush2.msra.mxu0 0.0
    %2288 = vmatprep.subr.mxu0 0.0
    %2289 = vmatpush2.msra.mxu0 0.0
    %2290 = vmatprep.subr.mxu0 0.0
    %2291 = vmatpush2.msra.mxu0 0.0
    %2292 = vmatprep.mubr.f32.mxu0 0.0
    %2293 = vmatmul.mubr.f32.gmra.mxu0 %v2223
    %v2294 = vpop.f32.mrf.mxu0
    %v2295 = vadd.f32 %v2215, %v2294
    %v2296 = vpop.f32.mrf.mxu0
    %v2297 = vadd.f32 %v2219, %v2296
    %2298 = vmatprep.mubr.f32.mxu0 0.0
    %2299 = vmatmul.mubr.f32.gmra.mxu0 %v2226
    %v2300 = vpop.f32.mrf.mxu0
    %v2301 = vadd.f32 %v2215, %v2300
    %v2302 = vpop.f32.mrf.mxu0
    %v2303 = vadd.f32 %v2219, %v2302
    %2304 = vdwg.mxu0
    %v2305 = vld [vmem:[%s5] sm:$0xff]
    %v2306 = vld [vmem:[%s5 + $0x8] sm:$0xff]
    %v2307 = vld [vmem:[%s5 + $0x10] sm:$0xff]
    %v2308 = vld [vmem:[%s5 + $0x18] sm:$0xff]
    %v2309 = vld [vmem:[%s5 + $0x20] sm:$0xff]
    %v2310 = vld [vmem:[%s5 + $0x28] sm:$0xff]
    %v2311 = vld [vmem:[%s5 + $0x30] sm:$0xff]
    %v2312 = vld [vmem:[%s5 + $0x38] sm:$0xff]
    %v2313 = vld [vmem:[%s5 + $0x40] sm:$0xff]
    %v2314 = vld [vmem:[%s5 + $0x48] sm:$0xff]
    %v2315 = vld [vmem:[%s5 + $0x50] sm:$0xff]
    %v2316 = vld [vmem:[%s5 + $0x58] sm:$0xff]
    %v2317 = vld [vmem:[%s5 + $0x60] sm:$0xff]
    %v2318 = vld [vmem:[%s5 + $0x68] sm:$0xff]
    %v2319 = vld [vmem:[%s5 + $0x70] sm:$0xff]
    %v2320 = vld [vmem:[%s5 + $0x78] sm:$0xff]
    %2321 = vmatprep.subr.mxu0 0.0
    %2322 = vmatpush1.msra.mxu0 0.0
    %2323 = vmatprep.subr.mxu0 0.0
    %2324 = vmatpush1.msra.mxu0 0.0
    %2325 = vmatprep.subr.mxu0 0.0
    %2326 = vmatpush1.msra.mxu0 0.0
    %2327 = vmatprep.subr.mxu0 0.0
    %2328 = vmatpush1.msra.mxu0 0.0
    %2329 = vmatprep.subr.mxu0 0.0
    %2330 = vmatpush1.msra.mxu0 0.0
    %2331 = vmatprep.subr.mxu0 0.0
    %2332 = vmatpush1.msra.mxu0 0.0
    %2333 = vmatprep.subr.mxu0 0.0
    %2334 = vmatpush1.msra.mxu0 0.0
    %2335 = vmatprep.subr.mxu0 0.0
    %2336 = vmatpush1.msra.mxu0 0.0
    %2337 = vmatprep.subr.mxu0 %v2320
    %2338 = vmatpush1.msra.mxu0 %v2319
    %2339 = vmatprep.subr.mxu0 %v2318
    %2340 = vmatpush1.msra.mxu0 %v2317
    %2341 = vmatprep.subr.mxu0 %v2316
    %2342 = vmatpush1.msra.mxu0 %v2315
    %2343 = vmatprep.subr.mxu0 %v2314
    %2344 = vmatpush1.msra.mxu0 %v2313
    %2345 = vmatprep.subr.mxu0 %v2312
    %2346 = vmatpush1.msra.mxu0 %v2311
    %2347 = vmatprep.subr.mxu0 %v2310
    %2348 = vmatpush1.msra.mxu0 %v2309
    %2349 = vmatprep.subr.mxu0 %v2308
    %2350 = vmatpush1.msra.mxu0 %v2307
    %2351 = vmatprep.subr.mxu0 %v2306
    %2352 = vmatpush1.msra.mxu0 %v2305
    %2353 = vmatprep.subr.mxu0 0.0
    %2354 = vmatpush2.msra.mxu0 0.0
    %2355 = vmatprep.subr.mxu0 0.0
    %2356 = vmatpush2.msra.mxu0 0.0
    %2357 = vmatprep.subr.mxu0 0.0
    %2358 = vmatpush2.msra.mxu0 0.0
    %2359 = vmatprep.subr.mxu0 0.0
    %2360 = vmatpush2.msra.mxu0 0.0
    %2361 = vmatprep.subr.mxu0 0.0
    %2362 = vmatpush2.msra.mxu0 0.0
    %2363 = vmatprep.subr.mxu0 0.0
    %2364 = vmatpush2.msra.mxu0 0.0
    %2365 = vmatprep.subr.mxu0 0.0
    %2366 = vmatpush2.msra.mxu0 0.0
    %2367 = vmatprep.subr.mxu0 0.0
    %2368 = vmatpush2.msra.mxu0 0.0
    %2369 = vmatprep.subr.mxu0 0.0
    %2370 = vmatpush2.msra.mxu0 0.0
    %2371 = vmatprep.subr.mxu0 0.0
    %2372 = vmatpush2.msra.mxu0 0.0
    %2373 = vmatprep.subr.mxu0 0.0
    %2374 = vmatpush2.msra.mxu0 0.0
    %2375 = vmatprep.subr.mxu0 0.0
    %2376 = vmatpush2.msra.mxu0 0.0
    %2377 = vmatprep.subr.mxu0 0.0
    %2378 = vmatpush2.msra.mxu0 0.0
    %2379 = vmatprep.subr.mxu0 0.0
    %2380 = vmatpush2.msra.mxu0 0.0
    %2381 = vmatprep.subr.mxu0 0.0
    %2382 = vmatpush2.msra.mxu0 0.0
    %2383 = vmatprep.subr.mxu0 0.0
    %2384 = vmatpush2.msra.mxu0 0.0
    %2385 = vmatprep.mubr.f32.mxu0 0.0
    %2386 = vmatmul.mubr.f32.gmra.mxu0 %v151
    %v2387 = vpop.f32.mrf.mxu0
    %v2388 = vadd.f32 0.0, %v2387
    %v2389 = vpop.f32.mrf.mxu0
    %v2390 = vadd.f32 0.0, %v2389
    %2391 = vdwg.mxu0
    %v2393 = vrot.slane %v2388, 1
    %v2396 = vadd.f32 %v2295, %v2388
    %v2397 = vadd.f32 %v2301, %v2393
    %v2398 = vxor.u32 %v2396, 2147483648
    %v2399 = vxor.u32 %v2397, 2147483648
    %v2400 = vmul.f32 %v2398, 1.442695
    %v2401 = vpow.pop %v2400
    %v2402 = vmul.f32 %v2399, 1.442695
    %v2403 = vpow.pop %v2402
    %v2404 = vadd.f32 %v2401, 1.0
    %v2405 = vadd.f32 %v2403, 1.0
    %v2406 = vrcp.pop %v2404
    %v2407 = vmul.f32 1.0, %v2406
    %v2408 = vrcp.pop %v2405
    %v2409 = vmul.f32 1.0, %v2408
    %v2410 = vtanh.pop %v2396
    %v2411 = vtanh.pop %v2397
    %v2412 = vmul.f32 %v2407, 0.0
    %v2413 = vmul.f32 %v2409, 0.0
    %2416 = vrot.lane.b32.xlu0 %v2410, 64
    %v2417 = vpop.permute.xlu0 %2416
    %2418 = vrot.lane.b32.xlu0 %v2411, 64
    %v2419 = vpop.permute.xlu0 %2418
    %v2422 = vmul.f32 %v2407, %v2417
    %v2423 = vmul.f32 %v2409, %v2419
    %2426 = vrot.lane.b32.xlu0 %v2422, 32
    %v2427 = vpop.permute.xlu0 %2426
    %2428 = vrot.lane.b32.xlu0 %v2423, 32
    %v2429 = vpop.permute.xlu0 %2428
    %v2432 = vadd.f32 %v2412, %v2427
    %v2433 = vadd.f32 %v2413, %v2429
    %v2434 = vtanh.pop %v2432
    %v2435 = vtanh.pop %v2433
    %2438 = vrot.lane.b32.xlu0 %v2434, 64
    %v2439 = vpop.permute.xlu0 %2438
    %2440 = vrot.lane.b32.xlu0 %v2435, 64
    %v2441 = vpop.permute.xlu0 %2440
    %v2444 = vmul.f32 %v2407, %v2439
    %v2445 = vmul.f32 %v2409, %v2441
    %v2447 = vrot.slane %v2390, 1
    %v2448 = vrot.slane %v2390, 2
    %v2451 = vadd.f32 %v2297, %v2447
    %v2452 = vadd.f32 %v2303, %v2448
    %v2453 = vxor.u32 %v2451, 2147483648
    %v2454 = vxor.u32 %v2452, 2147483648
    %v2455 = vmul.f32 %v2453, 1.442695
    %v2456 = vpow.pop %v2455
    %v2457 = vmul.f32 %v2454, 1.442695
    %v2458 = vpow.pop %v2457
    %v2459 = vadd.f32 %v2456, 1.0
    %v2460 = vadd.f32 %v2458, 1.0
    %v2461 = vrcp.pop %v2459
    %v2462 = vmul.f32 1.0, %v2461
    %v2463 = vrcp.pop %v2460
    %v2464 = vmul.f32 1.0, %v2463
    %v2465 = vtanh.pop %v2451
    %v2466 = vtanh.pop %v2452
    %v2467 = vmul.f32 %v2462, 0.0
    %v2468 = vmul.f32 %v2464, 0.0
    %2471 = vrot.lane.b32.xlu0 %v2465, 64
    %v2472 = vpop.permute.xlu0 %2471
    %2473 = vrot.lane.b32.xlu0 %v2466, 64
    %v2474 = vpop.permute.xlu0 %2473
    %v2477 = vmul.f32 %v2462, %v2472
    %v2478 = vmul.f32 %v2464, %v2474
    %2481 = vrot.lane.b32.xlu0 %v2477, 32
    %v2482 = vpop.permute.xlu0 %2481
    %2483 = vrot.lane.b32.xlu0 %v2478, 32
    %v2484 = vpop.permute.xlu0 %2483
    %v2487 = vadd.f32 %v2467, %v2482
    %v2488 = vadd.f32 %v2468, %v2484
    %v2489 = vtanh.pop %v2487
    %v2490 = vtanh.pop %v2488
    %2493 = vrot.lane.b32.xlu0 %v2489, 64
    %v2494 = vpop.permute.xlu0 %2493
    %2495 = vrot.lane.b32.xlu0 %v2490, 64
    %v2496 = vpop.permute.xlu0 %2495
    %v2499 = vmul.f32 %v2462, %v2494
    %v2500 = vmul.f32 %v2464, %v2496
    %v2503 = vrot.slane %v2445, 7
    %v2504 = vsel %vm336, %v2503, %v2444
    %2505 = vrot.lane.b32.xlu0 %v2504, 32
    %v2506 = vpop.permute.xlu0 %2505
    %v2510 = vrot.slane %v2499, 7
    %v2511 = vrot.slane %v2500, 6
    %v2512 = vsel %vm336, %v2511, %v2510
    %2513 = vrot.lane.b32.xlu0 %v2512, 64
    %v2514 = vpop.permute.xlu0 %2513
    %v2516 = vsel %vm349, %v2506, %v2514
    %v2518 = vsel %vm149, %v2516, 0
    %2520 = vmatprep.subr.mxu0 0.0
    %2521 = vmatpush1.msra.mxu0 0.0
    %2522 = vmatprep.subr.mxu0 0.0
    %2523 = vmatpush1.msra.mxu0 0.0
    %2524 = vmatprep.subr.mxu0 0.0
    %2525 = vmatpush1.msra.mxu0 0.0
    %2526 = vmatprep.subr.mxu0 0.0
    %2527 = vmatpush1.msra.mxu0 0.0
    %2528 = vmatprep.subr.mxu0 0.0
    %2529 = vmatpush1.msra.mxu0 0.0
    %2530 = vmatprep.subr.mxu0 0.0
    %2531 = vmatpush1.msra.mxu0 0.0
    %2532 = vmatprep.subr.mxu0 0.0
    %2533 = vmatpush1.msra.mxu0 0.0
    %2534 = vmatprep.subr.mxu0 0.0
    %2535 = vmatpush1.msra.mxu0 0.0
    %2536 = vmatprep.subr.mxu0 %v2320
    %2537 = vmatpush1.msra.mxu0 %v2319
    %2538 = vmatprep.subr.mxu0 %v2318
    %2539 = vmatpush1.msra.mxu0 %v2317
    %2540 = vmatprep.subr.mxu0 %v2316
    %2541 = vmatpush1.msra.mxu0 %v2315
    %2542 = vmatprep.subr.mxu0 %v2314
    %2543 = vmatpush1.msra.mxu0 %v2313
    %2544 = vmatprep.subr.mxu0 %v2312
    %2545 = vmatpush1.msra.mxu0 %v2311
    %2546 = vmatprep.subr.mxu0 %v2310
    %2547 = vmatpush1.msra.mxu0 %v2309
    %2548 = vmatprep.subr.mxu0 %v2308
    %2549 = vmatpush1.msra.mxu0 %v2307
    %2550 = vmatprep.subr.mxu0 %v2306
    %2551 = vmatpush1.msra.mxu0 %v2305
    %2552 = vmatprep.subr.mxu0 0.0
    %2553 = vmatpush2.msra.mxu0 0.0
    %2554 = vmatprep.subr.mxu0 0.0
    %2555 = vmatpush2.msra.mxu0 0.0
    %2556 = vmatprep.subr.mxu0 0.0
    %2557 = vmatpush2.msra.mxu0 0.0
    %2558 = vmatprep.subr.mxu0 0.0
    %2559 = vmatpush2.msra.mxu0 0.0
    %2560 = vmatprep.subr.mxu0 0.0
    %2561 = vmatpush2.msra.mxu0 0.0
    %2562 = vmatprep.subr.mxu0 0.0
    %2563 = vmatpush2.msra.mxu0 0.0
    %2564 = vmatprep.subr.mxu0 0.0
    %2565 = vmatpush2.msra.mxu0 0.0
    %2566 = vmatprep.subr.mxu0 0.0
    %2567 = vmatpush2.msra.mxu0 0.0
    %2568 = vmatprep.subr.mxu0 0.0
    %2569 = vmatpush2.msra.mxu0 0.0
    %2570 = vmatprep.subr.mxu0 0.0
    %2571 = vmatpush2.msra.mxu0 0.0
    %2572 = vmatprep.subr.mxu0 0.0
    %2573 = vmatpush2.msra.mxu0 0.0
    %2574 = vmatprep.subr.mxu0 0.0
    %2575 = vmatpush2.msra.mxu0 0.0
    %2576 = vmatprep.subr.mxu0 0.0
    %2577 = vmatpush2.msra.mxu0 0.0
    %2578 = vmatprep.subr.mxu0 0.0
    %2579 = vmatpush2.msra.mxu0 0.0
    %2580 = vmatprep.subr.mxu0 0.0
    %2581 = vmatpush2.msra.mxu0 0.0
    %2582 = vmatprep.subr.mxu0 0.0
    %2583 = vmatpush2.msra.mxu0 0.0
    %2584 = vmatprep.mubr.f32.mxu0 0.0
    %2585 = vmatmul.mubr.f32.gmra.mxu0 %v2518
    %v2586 = vpop.f32.mrf.mxu0
    %v2587 = vadd.f32 0.0, %v2586
    %v2588 = vpop.f32.mrf.mxu0
    %v2589 = vadd.f32 0.0, %v2588
    %2590 = vdwg.mxu0
    %v2592 = vrot.slane %v2587, 7
    %v2595 = vadd.f32 %v2295, %v2592
    %v2596 = vadd.f32 %v2301, %v2587
    %v2597 = vxor.u32 %v2595, 2147483648
    %v2598 = vxor.u32 %v2596, 2147483648
    %v2599 = vmul.f32 %v2597, 1.442695
    %v2600 = vpow.pop %v2599
    %v2601 = vmul.f32 %v2598, 1.442695
    %v2602 = vpow.pop %v2601
    %v2603 = vadd.f32 %v2600, 1.0
    %v2604 = vadd.f32 %v2602, 1.0
    %v2605 = vrcp.pop %v2603
    %v2606 = vmul.f32 1.0, %v2605
    %v2607 = vrcp.pop %v2604
    %v2608 = vmul.f32 1.0, %v2607
    %v2609 = vtanh.pop %v2595
    %v2610 = vtanh.pop %v2596
    %v2613 = vrot.slane %v2432, 7
    %v2614 = vrot.slane %v2433, 7
    %v2617 = vmul.f32 %v2606, %v2613
    %v2618 = vmul.f32 %v2608, %v2614
    %2621 = vrot.lane.b32.xlu0 %v2609, 64
    %v2622 = vpop.permute.xlu0 %2621
    %2623 = vrot.lane.b32.xlu0 %v2610, 64
    %v2624 = vpop.permute.xlu0 %2623
    %v2627 = vmul.f32 %v2606, %v2622
    %v2628 = vmul.f32 %v2608, %v2624
    %2631 = vrot.lane.b32.xlu0 %v2627, 32
    %v2632 = vpop.permute.xlu0 %2631
    %2633 = vrot.lane.b32.xlu0 %v2628, 32
    %v2634 = vpop.permute.xlu0 %2633
    %v2637 = vadd.f32 %v2617, %v2632
    %v2638 = vadd.f32 %v2618, %v2634
    %v2639 = vtanh.pop %v2637
    %v2640 = vtanh.pop %v2638
    %2643 = vrot.lane.b32.xlu0 %v2639, 64
    %v2644 = vpop.permute.xlu0 %2643
    %2645 = vrot.lane.b32.xlu0 %v2640, 64
    %v2646 = vpop.permute.xlu0 %2645
    %v2649 = vmul.f32 %v2606, %v2644
    %v2650 = vmul.f32 %v2608, %v2646
    %v2652 = vrot.slane %v2589, 2
    %v2653 = vrot.slane %v2589, 3
    %v2656 = vadd.f32 %v2297, %v2652
    %v2657 = vadd.f32 %v2303, %v2653
    %v2658 = vxor.u32 %v2656, 2147483648
    %v2659 = vxor.u32 %v2657, 2147483648
    %v2660 = vmul.f32 %v2658, 1.442695
    %v2661 = vpow.pop %v2660
    %v2662 = vmul.f32 %v2659, 1.442695
    %v2663 = vpow.pop %v2662
    %v2664 = vadd.f32 %v2661, 1.0
    %v2665 = vadd.f32 %v2663, 1.0
    %v2666 = vrcp.pop %v2664
    %v2667 = vmul.f32 1.0, %v2666
    %v2668 = vrcp.pop %v2665
    %v2669 = vmul.f32 1.0, %v2668
    %v2670 = vtanh.pop %v2656
    %v2671 = vtanh.pop %v2657
    %v2674 = vrot.slane %v2487, 1
    %v2675 = vrot.slane %v2488, 1
    %v2678 = vmul.f32 %v2667, %v2674
    %v2679 = vmul.f32 %v2669, %v2675
    %2682 = vrot.lane.b32.xlu0 %v2670, 64
    %v2683 = vpop.permute.xlu0 %2682
    %2684 = vrot.lane.b32.xlu0 %v2671, 64
    %v2685 = vpop.permute.xlu0 %2684
    %v2688 = vmul.f32 %v2667, %v2683
    %v2689 = vmul.f32 %v2669, %v2685
    %2692 = vrot.lane.b32.xlu0 %v2688, 32
    %v2693 = vpop.permute.xlu0 %2692
    %2694 = vrot.lane.b32.xlu0 %v2689, 32
    %v2695 = vpop.permute.xlu0 %2694
    %v2698 = vadd.f32 %v2678, %v2693
    %v2699 = vadd.f32 %v2679, %v2695
    %v2700 = vtanh.pop %v2698
    %v2701 = vtanh.pop %v2699
    %2704 = vrot.lane.b32.xlu0 %v2700, 64
    %v2705 = vpop.permute.xlu0 %2704
    %2706 = vrot.lane.b32.xlu0 %v2701, 64
    %v2707 = vpop.permute.xlu0 %2706
    %v2710 = vmul.f32 %v2667, %v2705
    %v2711 = vmul.f32 %v2669, %v2707
    %v2714 = vrot.slane %v2650, 7
    %v2715 = vsel %vm549, %v2714, %v2649
    %2716 = vrot.lane.b32.xlu0 %v2715, 32
    %v2717 = vpop.permute.xlu0 %2716
    %v2721 = vrot.slane %v2710, 5
    %v2722 = vrot.slane %v2711, 4
    %v2723 = vsel %vm549, %v2722, %v2721
    %2724 = vrot.lane.b32.xlu0 %v2723, 64
    %v2725 = vpop.permute.xlu0 %2724
    %v2727 = vsel %vm349, %v2717, %v2725
    %v2729 = vrot.slane %v2727, 1
    %v2730 = vsel %vm149, %v2729, 0
    %2732 = vmatprep.subr.mxu0 0.0
    %2733 = vmatpush1.msra.mxu0 0.0
    %2734 = vmatprep.subr.mxu0 0.0
    %2735 = vmatpush1.msra.mxu0 0.0
    %2736 = vmatprep.subr.mxu0 0.0
    %2737 = vmatpush1.msra.mxu0 0.0
    %2738 = vmatprep.subr.mxu0 0.0
    %2739 = vmatpush1.msra.mxu0 0.0
    %2740 = vmatprep.subr.mxu0 0.0
    %2741 = vmatpush1.msra.mxu0 0.0
    %2742 = vmatprep.subr.mxu0 0.0
    %2743 = vmatpush1.msra.mxu0 0.0
    %2744 = vmatprep.subr.mxu0 0.0
    %2745 = vmatpush1.msra.mxu0 0.0
    %2746 = vmatprep.subr.mxu0 0.0
    %2747 = vmatpush1.msra.mxu0 0.0
    %2748 = vmatprep.subr.mxu0 %v2320
    %2749 = vmatpush1.msra.mxu0 %v2319
    %2750 = vmatprep.subr.mxu0 %v2318
    %2751 = vmatpush1.msra.mxu0 %v2317
    %2752 = vmatprep.subr.mxu0 %v2316
    %2753 = vmatpush1.msra.mxu0 %v2315
    %2754 = vmatprep.subr.mxu0 %v2314
    %2755 = vmatpush1.msra.mxu0 %v2313
    %2756 = vmatprep.subr.mxu0 %v2312
    %2757 = vmatpush1.msra.mxu0 %v2311
    %2758 = vmatprep.subr.mxu0 %v2310
    %2759 = vmatpush1.msra.mxu0 %v2309
    %2760 = vmatprep.subr.mxu0 %v2308
    %2761 = vmatpush1.msra.mxu0 %v2307
    %2762 = vmatprep.subr.mxu0 %v2306
    %2763 = vmatpush1.msra.mxu0 %v2305
    %2764 = vmatprep.subr.mxu0 0.0
    %2765 = vmatpush2.msra.mxu0 0.0
    %2766 = vmatprep.subr.mxu0 0.0
    %2767 = vmatpush2.msra.mxu0 0.0
    %2768 = vmatprep.subr.mxu0 0.0
    %2769 = vmatpush2.msra.mxu0 0.0
    %2770 = vmatprep.subr.mxu0 0.0
    %2771 = vmatpush2.msra.mxu0 0.0
    %2772 = vmatprep.subr.mxu0 0.0
    %2773 = vmatpush2.msra.mxu0 0.0
    %2774 = vmatprep.subr.mxu0 0.0
    %2775 = vmatpush2.msra.mxu0 0.0
    %2776 = vmatprep.subr.mxu0 0.0
    %2777 = vmatpush2.msra.mxu0 0.0
    %2778 = vmatprep.subr.mxu0 0.0
    %2779 = vmatpush2.msra.mxu0 0.0
    %2780 = vmatprep.subr.mxu0 0.0
    %2781 = vmatpush2.msra.mxu0 0.0
    %2782 = vmatprep.subr.mxu0 0.0
    %2783 = vmatpush2.msra.mxu0 0.0
    %2784 = vmatprep.subr.mxu0 0.0
    %2785 = vmatpush2.msra.mxu0 0.0
    %2786 = vmatprep.subr.mxu0 0.0
    %2787 = vmatpush2.msra.mxu0 0.0
    %2788 = vmatprep.subr.mxu0 0.0
    %2789 = vmatpush2.msra.mxu0 0.0
    %2790 = vmatprep.subr.mxu0 0.0
    %2791 = vmatpush2.msra.mxu0 0.0
    %2792 = vmatprep.subr.mxu0 0.0
    %2793 = vmatpush2.msra.mxu0 0.0
    %2794 = vmatprep.subr.mxu0 0.0
    %2795 = vmatpush2.msra.mxu0 0.0
    %2796 = vmatprep.mubr.f32.mxu0 0.0
    %2797 = vmatmul.mubr.f32.gmra.mxu0 %v2730
    %v2798 = vpop.f32.mrf.mxu0
    %v2799 = vadd.f32 0.0, %v2798
    %v2800 = vpop.f32.mrf.mxu0
    %v2801 = vadd.f32 0.0, %v2800
    %2802 = vdwg.mxu0
    %v2804 = vrot.slane %v2799, 6
    %v2805 = vrot.slane %v2799, 7
    %v2808 = vadd.f32 %v2295, %v2804
    %v2809 = vadd.f32 %v2301, %v2805
    %v2810 = vxor.u32 %v2808, 2147483648
    %v2811 = vxor.u32 %v2809, 2147483648
    %v2812 = vmul.f32 %v2810, 1.442695
    %v2813 = vpow.pop %v2812
    %v2814 = vmul.f32 %v2811, 1.442695
    %v2815 = vpow.pop %v2814
    %v2816 = vadd.f32 %v2813, 1.0
    %v2817 = vadd.f32 %v2815, 1.0
    %v2818 = vrcp.pop %v2816
    %v2819 = vmul.f32 1.0, %v2818
    %v2820 = vrcp.pop %v2817
    %v2821 = vmul.f32 1.0, %v2820
    %v2822 = vtanh.pop %v2808
    %v2823 = vtanh.pop %v2809
    %v2826 = vrot.slane %v2637, 7
    %v2827 = vrot.slane %v2638, 7
    %v2830 = vmul.f32 %v2819, %v2826
    %v2831 = vmul.f32 %v2821, %v2827
    %2834 = vrot.lane.b32.xlu0 %v2822, 64
    %v2835 = vpop.permute.xlu0 %2834
    %2836 = vrot.lane.b32.xlu0 %v2823, 64
    %v2837 = vpop.permute.xlu0 %2836
    %v2840 = vmul.f32 %v2819, %v2835
    %v2841 = vmul.f32 %v2821, %v2837
    %2844 = vrot.lane.b32.xlu0 %v2840, 32
    %v2845 = vpop.permute.xlu0 %2844
    %2846 = vrot.lane.b32.xlu0 %v2841, 32
    %v2847 = vpop.permute.xlu0 %2846
    %v2850 = vadd.f32 %v2830, %v2845
    %v2851 = vadd.f32 %v2831, %v2847
    %v2852 = vtanh.pop %v2850
    %v2853 = vtanh.pop %v2851
    %2856 = vrot.lane.b32.xlu0 %v2852, 64
    %v2857 = vpop.permute.xlu0 %2856
    %2858 = vrot.lane.b32.xlu0 %v2853, 64
    %v2859 = vpop.permute.xlu0 %2858
    %v2862 = vmul.f32 %v2819, %v2857
    %v2863 = vmul.f32 %v2821, %v2859
    %v2865 = vrot.slane %v2801, 3
    %v2866 = vrot.slane %v2801, 4
    %v2869 = vadd.f32 %v2297, %v2865
    %v2870 = vadd.f32 %v2303, %v2866
    %v2871 = vxor.u32 %v2869, 2147483648
    %v2872 = vxor.u32 %v2870, 2147483648
    %v2873 = vmul.f32 %v2871, 1.442695
    %v2874 = vpow.pop %v2873
    %v2875 = vmul.f32 %v2872, 1.442695
    %v2876 = vpow.pop %v2875
    %v2877 = vadd.f32 %v2874, 1.0
    %v2878 = vadd.f32 %v2876, 1.0
    %v2879 = vrcp.pop %v2877
    %v2880 = vmul.f32 1.0, %v2879
    %v2881 = vrcp.pop %v2878
    %v2882 = vmul.f32 1.0, %v2881
    %v2883 = vtanh.pop %v2869
    %v2884 = vtanh.pop %v2870
    %v2887 = vrot.slane %v2698, 1
    %v2888 = vrot.slane %v2699, 1
    %v2891 = vmul.f32 %v2880, %v2887
    %v2892 = vmul.f32 %v2882, %v2888
    %2895 = vrot.lane.b32.xlu0 %v2883, 64
    %v2896 = vpop.permute.xlu0 %2895
    %2897 = vrot.lane.b32.xlu0 %v2884, 64
    %v2898 = vpop.permute.xlu0 %2897
    %v2901 = vmul.f32 %v2880, %v2896
    %v2902 = vmul.f32 %v2882, %v2898
    %2905 = vrot.lane.b32.xlu0 %v2901, 32
    %v2906 = vpop.permute.xlu0 %2905
    %2907 = vrot.lane.b32.xlu0 %v2902, 32
    %v2908 = vpop.permute.xlu0 %2907
    %v2911 = vadd.f32 %v2891, %v2906
    %v2912 = vadd.f32 %v2892, %v2908
    %v2913 = vtanh.pop %v2911
    %v2914 = vtanh.pop %v2912
    %2917 = vrot.lane.b32.xlu0 %v2913, 64
    %v2918 = vpop.permute.xlu0 %2917
    %2919 = vrot.lane.b32.xlu0 %v2914, 64
    %v2920 = vpop.permute.xlu0 %2919
    %v2923 = vmul.f32 %v2880, %v2918
    %v2924 = vmul.f32 %v2882, %v2920
    %v2927 = vrot.slane %v2863, 7
    %v2928 = vsel %vm763, %v2927, %v2862
    %2929 = vrot.lane.b32.xlu0 %v2928, 32
    %v2930 = vpop.permute.xlu0 %2929
    %v2934 = vrot.slane %v2923, 3
    %v2935 = vrot.slane %v2924, 2
    %v2936 = vsel %vm763, %v2935, %v2934
    %2937 = vrot.lane.b32.xlu0 %v2936, 64
    %v2938 = vpop.permute.xlu0 %2937
    %v2940 = vsel %vm349, %v2930, %v2938
    %v2942 = vrot.slane %v2940, 2
    %v2943 = vsel %vm149, %v2942, 0
    %2945 = vmatprep.subr.mxu0 0.0
    %2946 = vmatpush1.msra.mxu0 0.0
    %2947 = vmatprep.subr.mxu0 0.0
    %2948 = vmatpush1.msra.mxu0 0.0
    %2949 = vmatprep.subr.mxu0 0.0
    %2950 = vmatpush1.msra.mxu0 0.0
    %2951 = vmatprep.subr.mxu0 0.0
    %2952 = vmatpush1.msra.mxu0 0.0
    %2953 = vmatprep.subr.mxu0 0.0
    %2954 = vmatpush1.msra.mxu0 0.0
    %2955 = vmatprep.subr.mxu0 0.0
    %2956 = vmatpush1.msra.mxu0 0.0
    %2957 = vmatprep.subr.mxu0 0.0
    %2958 = vmatpush1.msra.mxu0 0.0
    %2959 = vmatprep.subr.mxu0 0.0
    %2960 = vmatpush1.msra.mxu0 0.0
    %2961 = vmatprep.subr.mxu0 %v2320
    %2962 = vmatpush1.msra.mxu0 %v2319
    %2963 = vmatprep.subr.mxu0 %v2318
    %2964 = vmatpush1.msra.mxu0 %v2317
    %2965 = vmatprep.subr.mxu0 %v2316
    %2966 = vmatpush1.msra.mxu0 %v2315
    %2967 = vmatprep.subr.mxu0 %v2314
    %2968 = vmatpush1.msra.mxu0 %v2313
    %2969 = vmatprep.subr.mxu0 %v2312
    %2970 = vmatpush1.msra.mxu0 %v2311
    %2971 = vmatprep.subr.mxu0 %v2310
    %2972 = vmatpush1.msra.mxu0 %v2309
    %2973 = vmatprep.subr.mxu0 %v2308
    %2974 = vmatpush1.msra.mxu0 %v2307
    %2975 = vmatprep.subr.mxu0 %v2306
    %2976 = vmatpush1.msra.mxu0 %v2305
    %2977 = vmatprep.subr.mxu0 0.0
    %2978 = vmatpush2.msra.mxu0 0.0
    %2979 = vmatprep.subr.mxu0 0.0
    %2980 = vmatpush2.msra.mxu0 0.0
    %2981 = vmatprep.subr.mxu0 0.0
    %2982 = vmatpush2.msra.mxu0 0.0
    %2983 = vmatprep.subr.mxu0 0.0
    %2984 = vmatpush2.msra.mxu0 0.0
    %2985 = vmatprep.subr.mxu0 0.0
    %2986 = vmatpush2.msra.mxu0 0.0
    %2987 = vmatprep.subr.mxu0 0.0
    %2988 = vmatpush2.msra.mxu0 0.0
    %2989 = vmatprep.subr.mxu0 0.0
    %2990 = vmatpush2.msra.mxu0 0.0
    %2991 = vmatprep.subr.mxu0 0.0
    %2992 = vmatpush2.msra.mxu0 0.0
    %2993 = vmatprep.subr.mxu0 0.0
    %2994 = vmatpush2.msra.mxu0 0.0
    %2995 = vmatprep.subr.mxu0 0.0
    %2996 = vmatpush2.msra.mxu0 0.0
    %2997 = vmatprep.subr.mxu0 0.0
    %2998 = vmatpush2.msra.mxu0 0.0
    %2999 = vmatprep.subr.mxu0 0.0
    %3000 = vmatpush2.msra.mxu0 0.0
    %3001 = vmatprep.subr.mxu0 0.0
    %3002 = vmatpush2.msra.mxu0 0.0
    %3003 = vmatprep.subr.mxu0 0.0
    %3004 = vmatpush2.msra.mxu0 0.0
    %3005 = vmatprep.subr.mxu0 0.0
    %3006 = vmatpush2.msra.mxu0 0.0
    %3007 = vmatprep.subr.mxu0 0.0
    %3008 = vmatpush2.msra.mxu0 0.0
    %3009 = vmatprep.mubr.f32.mxu0 0.0
    %3010 = vmatmul.mubr.f32.gmra.mxu0 %v2943
    %v3011 = vpop.f32.mrf.mxu0
    %v3012 = vadd.f32 0.0, %v3011
    %v3013 = vpop.f32.mrf.mxu0
    %v3014 = vadd.f32 0.0, %v3013
    %3015 = vdwg.mxu0
    %v3017 = vrot.slane %v3012, 5
    %v3018 = vrot.slane %v3012, 6
    %v3021 = vadd.f32 %v2295, %v3017
    %v3022 = vadd.f32 %v2301, %v3018
    %v3023 = vxor.u32 %v3021, 2147483648
    %v3024 = vxor.u32 %v3022, 2147483648
    %v3025 = vmul.f32 %v3023, 1.442695
    %v3026 = vpow.pop %v3025
    %v3027 = vmul.f32 %v3024, 1.442695
    %v3028 = vpow.pop %v3027
    %v3029 = vadd.f32 %v3026, 1.0
    %v3030 = vadd.f32 %v3028, 1.0
    %v3031 = vrcp.pop %v3029
    %v3032 = vmul.f32 1.0, %v3031
    %v3033 = vrcp.pop %v3030
    %v3034 = vmul.f32 1.0, %v3033
    %v3035 = vtanh.pop %v3021
    %v3036 = vtanh.pop %v3022
    %v3039 = vrot.slane %v2850, 7
    %v3040 = vrot.slane %v2851, 7
    %v3043 = vmul.f32 %v3032, %v3039
    %v3044 = vmul.f32 %v3034, %v3040
    %3047 = vrot.lane.b32.xlu0 %v3035, 64
    %v3048 = vpop.permute.xlu0 %3047
    %3049 = vrot.lane.b32.xlu0 %v3036, 64
    %v3050 = vpop.permute.xlu0 %3049
    %v3053 = vmul.f32 %v3032, %v3048
    %v3054 = vmul.f32 %v3034, %v3050
    %3057 = vrot.lane.b32.xlu0 %v3053, 32
    %v3058 = vpop.permute.xlu0 %3057
    %3059 = vrot.lane.b32.xlu0 %v3054, 32
    %v3060 = vpop.permute.xlu0 %3059
    %v3063 = vadd.f32 %v3043, %v3058
    %v3064 = vadd.f32 %v3044, %v3060
    %v3065 = vtanh.pop %v3063
    %v3066 = vtanh.pop %v3064
    %3069 = vrot.lane.b32.xlu0 %v3065, 64
    %v3070 = vpop.permute.xlu0 %3069
    %3071 = vrot.lane.b32.xlu0 %v3066, 64
    %v3072 = vpop.permute.xlu0 %3071
    %v3075 = vmul.f32 %v3032, %v3070
    %v3076 = vmul.f32 %v3034, %v3072
    %v3078 = vrot.slane %v3014, 4
    %v3079 = vrot.slane %v3014, 5
    %v3082 = vadd.f32 %v2297, %v3078
    %v3083 = vadd.f32 %v2303, %v3079
    %v3084 = vxor.u32 %v3082, 2147483648
    %v3085 = vxor.u32 %v3083, 2147483648
    %v3086 = vmul.f32 %v3084, 1.442695
    %v3087 = vpow.pop %v3086
    %v3088 = vmul.f32 %v3085, 1.442695
    %v3089 = vpow.pop %v3088
    %v3090 = vadd.f32 %v3087, 1.0
    %v3091 = vadd.f32 %v3089, 1.0
    %v3092 = vrcp.pop %v3090
    %v3093 = vmul.f32 1.0, %v3092
    %v3094 = vrcp.pop %v3091
    %v3095 = vmul.f32 1.0, %v3094
    %v3096 = vtanh.pop %v3082
    %v3097 = vtanh.pop %v3083
    %v3100 = vrot.slane %v2911, 1
    %v3101 = vrot.slane %v2912, 1
    %v3104 = vmul.f32 %v3093, %v3100
    %v3105 = vmul.f32 %v3095, %v3101
    %3108 = vrot.lane.b32.xlu0 %v3096, 64
    %v3109 = vpop.permute.xlu0 %3108
    %3110 = vrot.lane.b32.xlu0 %v3097, 64
    %v3111 = vpop.permute.xlu0 %3110
    %v3114 = vmul.f32 %v3093, %v3109
    %v3115 = vmul.f32 %v3095, %v3111
    %3118 = vrot.lane.b32.xlu0 %v3114, 32
    %v3119 = vpop.permute.xlu0 %3118
    %3120 = vrot.lane.b32.xlu0 %v3115, 32
    %v3121 = vpop.permute.xlu0 %3120
    %v3124 = vadd.f32 %v3104, %v3119
    %v3125 = vadd.f32 %v3105, %v3121
    %v3126 = vtanh.pop %v3124
    %v3127 = vtanh.pop %v3125
    %3130 = vrot.lane.b32.xlu0 %v3126, 64
    %v3131 = vpop.permute.xlu0 %3130
    %3132 = vrot.lane.b32.xlu0 %v3127, 64
    %v3133 = vpop.permute.xlu0 %3132
    %v3136 = vmul.f32 %v3093, %v3131
    %v3137 = vmul.f32 %v3095, %v3133
    %v3140 = vrot.slane %v3076, 7
    %v3141 = vsel %vm977, %v3140, %v3075
    %3142 = vrot.lane.b32.xlu0 %v3141, 32
    %v3143 = vpop.permute.xlu0 %3142
    %v3147 = vrot.slane %v3136, 1
    %v3148 = vsel %vm977, %v3137, %v3147
    %3149 = vrot.lane.b32.xlu0 %v3148, 64
    %v3150 = vpop.permute.xlu0 %3149
    %v3152 = vsel %vm349, %v3143, %v3150
    %v3154 = vrot.slane %v3152, 3
    %v3155 = vsel %vm149, %v3154, 0
    %3157 = vmatprep.subr.mxu0 0.0
    %3158 = vmatpush1.msra.mxu0 0.0
    %3159 = vmatprep.subr.mxu0 0.0
    %3160 = vmatpush1.msra.mxu0 0.0
    %3161 = vmatprep.subr.mxu0 0.0
    %3162 = vmatpush1.msra.mxu0 0.0
    %3163 = vmatprep.subr.mxu0 0.0
    %3164 = vmatpush1.msra.mxu0 0.0
    %3165 = vmatprep.subr.mxu0 0.0
    %3166 = vmatpush1.msra.mxu0 0.0
    %3167 = vmatprep.subr.mxu0 0.0
    %3168 = vmatpush1.msra.mxu0 0.0
    %3169 = vmatprep.subr.mxu0 0.0
    %3170 = vmatpush1.msra.mxu0 0.0
    %3171 = vmatprep.subr.mxu0 0.0
    %3172 = vmatpush1.msra.mxu0 0.0
    %3173 = vmatprep.subr.mxu0 %v2320
    %3174 = vmatpush1.msra.mxu0 %v2319
    %3175 = vmatprep.subr.mxu0 %v2318
    %3176 = vmatpush1.msra.mxu0 %v2317
    %3177 = vmatprep.subr.mxu0 %v2316
    %3178 = vmatpush1.msra.mxu0 %v2315
    %3179 = vmatprep.subr.mxu0 %v2314
    %3180 = vmatpush1.msra.mxu0 %v2313
    %3181 = vmatprep.subr.mxu0 %v2312
    %3182 = vmatpush1.msra.mxu0 %v2311
    %3183 = vmatprep.subr.mxu0 %v2310
    %3184 = vmatpush1.msra.mxu0 %v2309
    %3185 = vmatprep.subr.mxu0 %v2308
    %3186 = vmatpush1.msra.mxu0 %v2307
    %3187 = vmatprep.subr.mxu0 %v2306
    %3188 = vmatpush1.msra.mxu0 %v2305
    %3189 = vmatprep.subr.mxu0 0.0
    %3190 = vmatpush2.msra.mxu0 0.0
    %3191 = vmatprep.subr.mxu0 0.0
    %3192 = vmatpush2.msra.mxu0 0.0
    %3193 = vmatprep.subr.mxu0 0.0
    %3194 = vmatpush2.msra.mxu0 0.0
    %3195 = vmatprep.subr.mxu0 0.0
    %3196 = vmatpush2.msra.mxu0 0.0
    %3197 = vmatprep.subr.mxu0 0.0
    %3198 = vmatpush2.msra.mxu0 0.0
    %3199 = vmatprep.subr.mxu0 0.0
    %3200 = vmatpush2.msra.mxu0 0.0
    %3201 = vmatprep.subr.mxu0 0.0
    %3202 = vmatpush2.msra.mxu0 0.0
    %3203 = vmatprep.subr.mxu0 0.0
    %3204 = vmatpush2.msra.mxu0 0.0
    %3205 = vmatprep.subr.mxu0 0.0
    %3206 = vmatpush2.msra.mxu0 0.0
    %3207 = vmatprep.subr.mxu0 0.0
    %3208 = vmatpush2.msra.mxu0 0.0
    %3209 = vmatprep.subr.mxu0 0.0
    %3210 = vmatpush2.msra.mxu0 0.0
    %3211 = vmatprep.subr.mxu0 0.0
    %3212 = vmatpush2.msra.mxu0 0.0
    %3213 = vmatprep.subr.mxu0 0.0
    %3214 = vmatpush2.msra.mxu0 0.0
    %3215 = vmatprep.subr.mxu0 0.0
    %3216 = vmatpush2.msra.mxu0 0.0
    %3217 = vmatprep.subr.mxu0 0.0
    %3218 = vmatpush2.msra.mxu0 0.0
    %3219 = vmatprep.subr.mxu0 0.0
    %3220 = vmatpush2.msra.mxu0 0.0
    %3221 = vmatprep.mubr.f32.mxu0 0.0
    %3222 = vmatmul.mubr.f32.gmra.mxu0 %v3155
    %v3223 = vpop.f32.mrf.mxu0
    %v3224 = vadd.f32 0.0, %v3223
    %v3225 = vpop.f32.mrf.mxu0
    %v3226 = vadd.f32 0.0, %v3225
    %3227 = vdwg.mxu0
    %v3229 = vrot.slane %v3224, 4
    %v3230 = vrot.slane %v3224, 5
    %v3233 = vadd.f32 %v2295, %v3229
    %v3234 = vadd.f32 %v2301, %v3230
    %v3235 = vxor.u32 %v3233, 2147483648
    %v3236 = vxor.u32 %v3234, 2147483648
    %v3237 = vmul.f32 %v3235, 1.442695
    %v3238 = vpow.pop %v3237
    %v3239 = vmul.f32 %v3236, 1.442695
    %v3240 = vpow.pop %v3239
    %v3241 = vadd.f32 %v3238, 1.0
    %v3242 = vadd.f32 %v3240, 1.0
    %v3243 = vrcp.pop %v3241
    %v3244 = vmul.f32 1.0, %v3243
    %v3245 = vrcp.pop %v3242
    %v3246 = vmul.f32 1.0, %v3245
    %v3247 = vtanh.pop %v3233
    %v3248 = vtanh.pop %v3234
    %v3251 = vrot.slane %v3063, 7
    %v3252 = vrot.slane %v3064, 7
    %v3255 = vmul.f32 %v3244, %v3251
    %v3256 = vmul.f32 %v3246, %v3252
    %3259 = vrot.lane.b32.xlu0 %v3247, 64
    %v3260 = vpop.permute.xlu0 %3259
    %3261 = vrot.lane.b32.xlu0 %v3248, 64
    %v3262 = vpop.permute.xlu0 %3261
    %v3265 = vmul.f32 %v3244, %v3260
    %v3266 = vmul.f32 %v3246, %v3262
    %3269 = vrot.lane.b32.xlu0 %v3265, 32
    %v3270 = vpop.permute.xlu0 %3269
    %3271 = vrot.lane.b32.xlu0 %v3266, 32
    %v3272 = vpop.permute.xlu0 %3271
    %v3275 = vadd.f32 %v3255, %v3270
    %v3276 = vadd.f32 %v3256, %v3272
    %v3277 = vtanh.pop %v3275
    %v3278 = vtanh.pop %v3276
    %3281 = vrot.lane.b32.xlu0 %v3277, 64
    %v3282 = vpop.permute.xlu0 %3281
    %3283 = vrot.lane.b32.xlu0 %v3278, 64
    %v3284 = vpop.permute.xlu0 %3283
    %v3287 = vmul.f32 %v3244, %v3282
    %v3288 = vmul.f32 %v3246, %v3284
    %v3290 = vrot.slane %v3226, 5
    %v3291 = vrot.slane %v3226, 6
    %v3294 = vadd.f32 %v2297, %v3290
    %v3295 = vadd.f32 %v2303, %v3291
    %v3296 = vxor.u32 %v3294, 2147483648
    %v3297 = vxor.u32 %v3295, 2147483648
    %v3298 = vmul.f32 %v3296, 1.442695
    %v3299 = vpow.pop %v3298
    %v3300 = vmul.f32 %v3297, 1.442695
    %v3301 = vpow.pop %v3300
    %v3302 = vadd.f32 %v3299, 1.0
    %v3303 = vadd.f32 %v3301, 1.0
    %v3304 = vrcp.pop %v3302
    %v3305 = vmul.f32 1.0, %v3304
    %v3306 = vrcp.pop %v3303
    %v3307 = vmul.f32 1.0, %v3306
    %v3308 = vtanh.pop %v3294
    %v3309 = vtanh.pop %v3295
    %v3312 = vrot.slane %v3124, 1
    %v3313 = vrot.slane %v3125, 1
    %v3316 = vmul.f32 %v3305, %v3312
    %v3317 = vmul.f32 %v3307, %v3313
    %3320 = vrot.lane.b32.xlu0 %v3308, 64
    %v3321 = vpop.permute.xlu0 %3320
    %3322 = vrot.lane.b32.xlu0 %v3309, 64
    %v3323 = vpop.permute.xlu0 %3322
    %v3326 = vmul.f32 %v3305, %v3321
    %v3327 = vmul.f32 %v3307, %v3323
    %3330 = vrot.lane.b32.xlu0 %v3326, 32
    %v3331 = vpop.permute.xlu0 %3330
    %3332 = vrot.lane.b32.xlu0 %v3327, 32
    %v3333 = vpop.permute.xlu0 %3332
    %v3336 = vadd.f32 %v3316, %v3331
    %v3337 = vadd.f32 %v3317, %v3333
    %v3338 = vtanh.pop %v3336
    %v3339 = vtanh.pop %v3337
    %3342 = vrot.lane.b32.xlu0 %v3338, 64
    %v3343 = vpop.permute.xlu0 %3342
    %3344 = vrot.lane.b32.xlu0 %v3339, 64
    %v3345 = vpop.permute.xlu0 %3344
    %v3348 = vmul.f32 %v3305, %v3343
    %v3349 = vmul.f32 %v3307, %v3345
    %v3352 = vrot.slane %v3288, 7
    %v3353 = vsel %vm1190, %v3352, %v3287
    %3354 = vrot.lane.b32.xlu0 %v3353, 32
    %v3355 = vpop.permute.xlu0 %3354
    %v3359 = vrot.slane %v3348, 7
    %v3360 = vrot.slane %v3349, 6
    %v3361 = vsel %vm1190, %v3360, %v3359
    %3362 = vrot.lane.b32.xlu0 %v3361, 64
    %v3363 = vpop.permute.xlu0 %3362
    %v3365 = vsel %vm349, %v3355, %v3363
    %v3367 = vrot.slane %v3365, 4
    %v3368 = vsel %vm149, %v3367, 0
    %3370 = vmatprep.subr.mxu0 0.0
    %3371 = vmatpush1.msra.mxu0 0.0
    %3372 = vmatprep.subr.mxu0 0.0
    %3373 = vmatpush1.msra.mxu0 0.0
    %3374 = vmatprep.subr.mxu0 0.0
    %3375 = vmatpush1.msra.mxu0 0.0
    %3376 = vmatprep.subr.mxu0 0.0
    %3377 = vmatpush1.msra.mxu0 0.0
    %3378 = vmatprep.subr.mxu0 0.0
    %3379 = vmatpush1.msra.mxu0 0.0
    %3380 = vmatprep.subr.mxu0 0.0
    %3381 = vmatpush1.msra.mxu0 0.0
    %3382 = vmatprep.subr.mxu0 0.0
    %3383 = vmatpush1.msra.mxu0 0.0
    %3384 = vmatprep.subr.mxu0 0.0
    %3385 = vmatpush1.msra.mxu0 0.0
    %3386 = vmatprep.subr.mxu0 %v2320
    %3387 = vmatpush1.msra.mxu0 %v2319
    %3388 = vmatprep.subr.mxu0 %v2318
    %3389 = vmatpush1.msra.mxu0 %v2317
    %3390 = vmatprep.subr.mxu0 %v2316
    %3391 = vmatpush1.msra.mxu0 %v2315
    %3392 = vmatprep.subr.mxu0 %v2314
    %3393 = vmatpush1.msra.mxu0 %v2313
    %3394 = vmatprep.subr.mxu0 %v2312
    %3395 = vmatpush1.msra.mxu0 %v2311
    %3396 = vmatprep.subr.mxu0 %v2310
    %3397 = vmatpush1.msra.mxu0 %v2309
    %3398 = vmatprep.subr.mxu0 %v2308
    %3399 = vmatpush1.msra.mxu0 %v2307
    %3400 = vmatprep.subr.mxu0 %v2306
    %3401 = vmatpush1.msra.mxu0 %v2305
    %3402 = vmatprep.subr.mxu0 0.0
    %3403 = vmatpush2.msra.mxu0 0.0
    %3404 = vmatprep.subr.mxu0 0.0
    %3405 = vmatpush2.msra.mxu0 0.0
    %3406 = vmatprep.subr.mxu0 0.0
    %3407 = vmatpush2.msra.mxu0 0.0
    %3408 = vmatprep.subr.mxu0 0.0
    %3409 = vmatpush2.msra.mxu0 0.0
    %3410 = vmatprep.subr.mxu0 0.0
    %3411 = vmatpush2.msra.mxu0 0.0
    %3412 = vmatprep.subr.mxu0 0.0
    %3413 = vmatpush2.msra.mxu0 0.0
    %3414 = vmatprep.subr.mxu0 0.0
    %3415 = vmatpush2.msra.mxu0 0.0
    %3416 = vmatprep.subr.mxu0 0.0
    %3417 = vmatpush2.msra.mxu0 0.0
    %3418 = vmatprep.subr.mxu0 0.0
    %3419 = vmatpush2.msra.mxu0 0.0
    %3420 = vmatprep.subr.mxu0 0.0
    %3421 = vmatpush2.msra.mxu0 0.0
    %3422 = vmatprep.subr.mxu0 0.0
    %3423 = vmatpush2.msra.mxu0 0.0
    %3424 = vmatprep.subr.mxu0 0.0
    %3425 = vmatpush2.msra.mxu0 0.0
    %3426 = vmatprep.subr.mxu0 0.0
    %3427 = vmatpush2.msra.mxu0 0.0
    %3428 = vmatprep.subr.mxu0 0.0
    %3429 = vmatpush2.msra.mxu0 0.0
    %3430 = vmatprep.subr.mxu0 0.0
    %3431 = vmatpush2.msra.mxu0 0.0
    %3432 = vmatprep.subr.mxu0 0.0
    %3433 = vmatpush2.msra.mxu0 0.0
    %3434 = vmatprep.mubr.f32.mxu0 0.0
    %3435 = vmatmul.mubr.f32.gmra.mxu0 %v3368
    %v3436 = vpop.f32.mrf.mxu0
    %v3437 = vadd.f32 0.0, %v3436
    %v3438 = vpop.f32.mrf.mxu0
    %v3439 = vadd.f32 0.0, %v3438
    %3440 = vdwg.mxu0
    %v3442 = vrot.slane %v3437, 3
    %v3443 = vrot.slane %v3437, 4
    %v3446 = vadd.f32 %v2295, %v3442
    %v3447 = vadd.f32 %v2301, %v3443
    %v3448 = vxor.u32 %v3446, 2147483648
    %v3449 = vxor.u32 %v3447, 2147483648
    %v3450 = vmul.f32 %v3448, 1.442695
    %v3451 = vpow.pop %v3450
    %v3452 = vmul.f32 %v3449, 1.442695
    %v3453 = vpow.pop %v3452
    %v3454 = vadd.f32 %v3451, 1.0
    %v3455 = vadd.f32 %v3453, 1.0
    %v3456 = vrcp.pop %v3454
    %v3457 = vmul.f32 1.0, %v3456
    %v3458 = vrcp.pop %v3455
    %v3459 = vmul.f32 1.0, %v3458
    %v3460 = vtanh.pop %v3446
    %v3461 = vtanh.pop %v3447
    %v3464 = vrot.slane %v3275, 7
    %v3465 = vrot.slane %v3276, 7
    %v3468 = vmul.f32 %v3457, %v3464
    %v3469 = vmul.f32 %v3459, %v3465
    %3472 = vrot.lane.b32.xlu0 %v3460, 64
    %v3473 = vpop.permute.xlu0 %3472
    %3474 = vrot.lane.b32.xlu0 %v3461, 64
    %v3475 = vpop.permute.xlu0 %3474
    %v3478 = vmul.f32 %v3457, %v3473
    %v3479 = vmul.f32 %v3459, %v3475
    %3482 = vrot.lane.b32.xlu0 %v3478, 32
    %v3483 = vpop.permute.xlu0 %3482
    %3484 = vrot.lane.b32.xlu0 %v3479, 32
    %v3485 = vpop.permute.xlu0 %3484
    %v3488 = vadd.f32 %v3468, %v3483
    %v3489 = vadd.f32 %v3469, %v3485
    %v3490 = vtanh.pop %v3488
    %v3491 = vtanh.pop %v3489
    %3494 = vrot.lane.b32.xlu0 %v3490, 64
    %v3495 = vpop.permute.xlu0 %3494
    %3496 = vrot.lane.b32.xlu0 %v3491, 64
    %v3497 = vpop.permute.xlu0 %3496
    %v3500 = vmul.f32 %v3457, %v3495
    %v3501 = vmul.f32 %v3459, %v3497
    %v3503 = vrot.slane %v3439, 6
    %v3504 = vrot.slane %v3439, 7
    %v3507 = vadd.f32 %v2297, %v3503
    %v3508 = vadd.f32 %v2303, %v3504
    %v3509 = vxor.u32 %v3507, 2147483648
    %v3510 = vxor.u32 %v3508, 2147483648
    %v3511 = vmul.f32 %v3509, 1.442695
    %v3512 = vpow.pop %v3511
    %v3513 = vmul.f32 %v3510, 1.442695
    %v3514 = vpow.pop %v3513
    %v3515 = vadd.f32 %v3512, 1.0
    %v3516 = vadd.f32 %v3514, 1.0
    %v3517 = vrcp.pop %v3515
    %v3518 = vmul.f32 1.0, %v3517
    %v3519 = vrcp.pop %v3516
    %v3520 = vmul.f32 1.0, %v3519
    %v3521 = vtanh.pop %v3507
    %v3522 = vtanh.pop %v3508
    %v3525 = vrot.slane %v3336, 1
    %v3526 = vrot.slane %v3337, 1
    %v3529 = vmul.f32 %v3518, %v3525
    %v3530 = vmul.f32 %v3520, %v3526
    %3533 = vrot.lane.b32.xlu0 %v3521, 64
    %v3534 = vpop.permute.xlu0 %3533
    %3535 = vrot.lane.b32.xlu0 %v3522, 64
    %v3536 = vpop.permute.xlu0 %3535
    %v3539 = vmul.f32 %v3518, %v3534
    %v3540 = vmul.f32 %v3520, %v3536
    %3543 = vrot.lane.b32.xlu0 %v3539, 32
    %v3544 = vpop.permute.xlu0 %3543
    %3545 = vrot.lane.b32.xlu0 %v3540, 32
    %v3546 = vpop.permute.xlu0 %3545
    %v3549 = vadd.f32 %v3529, %v3544
    %v3550 = vadd.f32 %v3530, %v3546
    %v3551 = vtanh.pop %v3549
    %v3552 = vtanh.pop %v3550
    %3555 = vrot.lane.b32.xlu0 %v3551, 64
    %v3556 = vpop.permute.xlu0 %3555
    %3557 = vrot.lane.b32.xlu0 %v3552, 64
    %v3558 = vpop.permute.xlu0 %3557
    %v3561 = vmul.f32 %v3518, %v3556
    %v3562 = vmul.f32 %v3520, %v3558
    %v3565 = vrot.slane %v3501, 7
    %v3566 = vsel %vm1404, %v3565, %v3500
    %3567 = vrot.lane.b32.xlu0 %v3566, 32
    %v3568 = vpop.permute.xlu0 %3567
    %v3572 = vrot.slane %v3561, 5
    %v3573 = vrot.slane %v3562, 4
    %v3574 = vsel %vm1404, %v3573, %v3572
    %3575 = vrot.lane.b32.xlu0 %v3574, 64
    %v3576 = vpop.permute.xlu0 %3575
    %v3578 = vsel %vm349, %v3568, %v3576
    %v3580 = vrot.slane %v3578, 5
    %v3581 = vsel %vm149, %v3580, 0
    %3583 = vmatprep.subr.mxu0 0.0
    %3584 = vmatpush1.msra.mxu0 0.0
    %3585 = vmatprep.subr.mxu0 0.0
    %3586 = vmatpush1.msra.mxu0 0.0
    %3587 = vmatprep.subr.mxu0 0.0
    %3588 = vmatpush1.msra.mxu0 0.0
    %3589 = vmatprep.subr.mxu0 0.0
    %3590 = vmatpush1.msra.mxu0 0.0
    %3591 = vmatprep.subr.mxu0 0.0
    %3592 = vmatpush1.msra.mxu0 0.0
    %3593 = vmatprep.subr.mxu0 0.0
    %3594 = vmatpush1.msra.mxu0 0.0
    %3595 = vmatprep.subr.mxu0 0.0
    %3596 = vmatpush1.msra.mxu0 0.0
    %3597 = vmatprep.subr.mxu0 0.0
    %3598 = vmatpush1.msra.mxu0 0.0
    %3599 = vmatprep.subr.mxu0 %v2320
    %3600 = vmatpush1.msra.mxu0 %v2319
    %3601 = vmatprep.subr.mxu0 %v2318
    %3602 = vmatpush1.msra.mxu0 %v2317
    %3603 = vmatprep.subr.mxu0 %v2316
    %3604 = vmatpush1.msra.mxu0 %v2315
    %3605 = vmatprep.subr.mxu0 %v2314
    %3606 = vmatpush1.msra.mxu0 %v2313
    %3607 = vmatprep.subr.mxu0 %v2312
    %3608 = vmatpush1.msra.mxu0 %v2311
    %3609 = vmatprep.subr.mxu0 %v2310
    %3610 = vmatpush1.msra.mxu0 %v2309
    %3611 = vmatprep.subr.mxu0 %v2308
    %3612 = vmatpush1.msra.mxu0 %v2307
    %3613 = vmatprep.subr.mxu0 %v2306
    %3614 = vmatpush1.msra.mxu0 %v2305
    %3615 = vmatprep.subr.mxu0 0.0
    %3616 = vmatpush2.msra.mxu0 0.0
    %3617 = vmatprep.subr.mxu0 0.0
    %3618 = vmatpush2.msra.mxu0 0.0
    %3619 = vmatprep.subr.mxu0 0.0
    %3620 = vmatpush2.msra.mxu0 0.0
    %3621 = vmatprep.subr.mxu0 0.0
    %3622 = vmatpush2.msra.mxu0 0.0
    %3623 = vmatprep.subr.mxu0 0.0
    %3624 = vmatpush2.msra.mxu0 0.0
    %3625 = vmatprep.subr.mxu0 0.0
    %3626 = vmatpush2.msra.mxu0 0.0
    %3627 = vmatprep.subr.mxu0 0.0
    %3628 = vmatpush2.msra.mxu0 0.0
    %3629 = vmatprep.subr.mxu0 0.0
    %3630 = vmatpush2.msra.mxu0 0.0
    %3631 = vmatprep.subr.mxu0 0.0
    %3632 = vmatpush2.msra.mxu0 0.0
    %3633 = vmatprep.subr.mxu0 0.0
    %3634 = vmatpush2.msra.mxu0 0.0
    %3635 = vmatprep.subr.mxu0 0.0
    %3636 = vmatpush2.msra.mxu0 0.0
    %3637 = vmatprep.subr.mxu0 0.0
    %3638 = vmatpush2.msra.mxu0 0.0
    %3639 = vmatprep.subr.mxu0 0.0
    %3640 = vmatpush2.msra.mxu0 0.0
    %3641 = vmatprep.subr.mxu0 0.0
    %3642 = vmatpush2.msra.mxu0 0.0
    %3643 = vmatprep.subr.mxu0 0.0
    %3644 = vmatpush2.msra.mxu0 0.0
    %3645 = vmatprep.subr.mxu0 0.0
    %3646 = vmatpush2.msra.mxu0 0.0
    %3647 = vmatprep.mubr.f32.mxu0 0.0
    %3648 = vmatmul.mubr.f32.gmra.mxu0 %v3581
    %v3649 = vpop.f32.mrf.mxu0
    %v3650 = vadd.f32 0.0, %v3649
    %v3651 = vpop.f32.mrf.mxu0
    %v3652 = vadd.f32 0.0, %v3651
    %3653 = vdwg.mxu0
    %v3655 = vrot.slane %v3650, 2
    %v3656 = vrot.slane %v3650, 3
    %v3659 = vadd.f32 %v2295, %v3655
    %v3660 = vadd.f32 %v2301, %v3656
    %v3661 = vxor.u32 %v3659, 2147483648
    %v3662 = vxor.u32 %v3660, 2147483648
    %v3663 = vmul.f32 %v3661, 1.442695
    %v3664 = vpow.pop %v3663
    %v3665 = vmul.f32 %v3662, 1.442695
    %v3666 = vpow.pop %v3665
    %v3667 = vadd.f32 %v3664, 1.0
    %v3668 = vadd.f32 %v3666, 1.0
    %v3669 = vrcp.pop %v3667
    %v3670 = vmul.f32 1.0, %v3669
    %v3671 = vrcp.pop %v3668
    %v3672 = vmul.f32 1.0, %v3671
    %v3673 = vtanh.pop %v3659
    %v3674 = vtanh.pop %v3660
    %v3677 = vrot.slane %v3488, 7
    %v3678 = vrot.slane %v3489, 7
    %v3681 = vmul.f32 %v3670, %v3677
    %v3682 = vmul.f32 %v3672, %v3678
    %3685 = vrot.lane.b32.xlu0 %v3673, 64
    %v3686 = vpop.permute.xlu0 %3685
    %3687 = vrot.lane.b32.xlu0 %v3674, 64
    %v3688 = vpop.permute.xlu0 %3687
    %v3691 = vmul.f32 %v3670, %v3686
    %v3692 = vmul.f32 %v3672, %v3688
    %3695 = vrot.lane.b32.xlu0 %v3691, 32
    %v3696 = vpop.permute.xlu0 %3695
    %3697 = vrot.lane.b32.xlu0 %v3692, 32
    %v3698 = vpop.permute.xlu0 %3697
    %v3701 = vadd.f32 %v3681, %v3696
    %v3702 = vadd.f32 %v3682, %v3698
    %v3703 = vtanh.pop %v3701
    %v3704 = vtanh.pop %v3702
    %3707 = vrot.lane.b32.xlu0 %v3703, 64
    %v3708 = vpop.permute.xlu0 %3707
    %3709 = vrot.lane.b32.xlu0 %v3704, 64
    %v3710 = vpop.permute.xlu0 %3709
    %v3713 = vmul.f32 %v3670, %v3708
    %v3714 = vmul.f32 %v3672, %v3710
    %v3716 = vrot.slane %v3652, 7
    %v3719 = vadd.f32 %v2297, %v3716
    %v3720 = vadd.f32 %v2303, %v3652
    %v3721 = vxor.u32 %v3719, 2147483648
    %v3722 = vxor.u32 %v3720, 2147483648
    %v3723 = vmul.f32 %v3721, 1.442695
    %v3724 = vpow.pop %v3723
    %v3725 = vmul.f32 %v3722, 1.442695
    %v3726 = vpow.pop %v3725
    %v3727 = vadd.f32 %v3724, 1.0
    %v3728 = vadd.f32 %v3726, 1.0
    %v3729 = vrcp.pop %v3727
    %v3730 = vmul.f32 1.0, %v3729
    %v3731 = vrcp.pop %v3728
    %v3732 = vmul.f32 1.0, %v3731
    %v3733 = vtanh.pop %v3719
    %v3734 = vtanh.pop %v3720
    %v3737 = vrot.slane %v3549, 1
    %v3738 = vrot.slane %v3550, 1
    %v3741 = vmul.f32 %v3730, %v3737
    %v3742 = vmul.f32 %v3732, %v3738
    %3745 = vrot.lane.b32.xlu0 %v3733, 64
    %v3746 = vpop.permute.xlu0 %3745
    %3747 = vrot.lane.b32.xlu0 %v3734, 64
    %v3748 = vpop.permute.xlu0 %3747
    %v3751 = vmul.f32 %v3730, %v3746
    %v3752 = vmul.f32 %v3732, %v3748
    %3755 = vrot.lane.b32.xlu0 %v3751, 32
    %v3756 = vpop.permute.xlu0 %3755
    %3757 = vrot.lane.b32.xlu0 %v3752, 32
    %v3758 = vpop.permute.xlu0 %3757
    %v3761 = vadd.f32 %v3741, %v3756
    %v3762 = vadd.f32 %v3742, %v3758
    %v3763 = vtanh.pop %v3761
    %v3764 = vtanh.pop %v3762
    %3767 = vrot.lane.b32.xlu0 %v3763, 64
    %v3768 = vpop.permute.xlu0 %3767
    %3769 = vrot.lane.b32.xlu0 %v3764, 64
    %v3770 = vpop.permute.xlu0 %3769
    %v3773 = vmul.f32 %v3730, %v3768
    %v3774 = vmul.f32 %v3732, %v3770
    %v3777 = vrot.slane %v3714, 7
    %v3778 = vsel %vm1617, %v3777, %v3713
    %3779 = vrot.lane.b32.xlu0 %v3778, 32
    %v3780 = vpop.permute.xlu0 %3779
    %v3784 = vrot.slane %v3773, 3
    %v3785 = vrot.slane %v3774, 2
    %v3786 = vsel %vm1617, %v3785, %v3784
    %3787 = vrot.lane.b32.xlu0 %v3786, 64
    %v3788 = vpop.permute.xlu0 %3787
    %v3790 = vsel %vm349, %v3780, %v3788
    %v3792 = vrot.slane %v3790, 6
    %v3793 = vsel %vm149, %v3792, 0
    %3795 = vmatprep.subr.mxu0 0.0
    %3796 = vmatpush1.msra.mxu0 0.0
    %3797 = vmatprep.subr.mxu0 0.0
    %3798 = vmatpush1.msra.mxu0 0.0
    %3799 = vmatprep.subr.mxu0 0.0
    %3800 = vmatpush1.msra.mxu0 0.0
    %3801 = vmatprep.subr.mxu0 0.0
    %3802 = vmatpush1.msra.mxu0 0.0
    %3803 = vmatprep.subr.mxu0 0.0
    %3804 = vmatpush1.msra.mxu0 0.0
    %3805 = vmatprep.subr.mxu0 0.0
    %3806 = vmatpush1.msra.mxu0 0.0
    %3807 = vmatprep.subr.mxu0 0.0
    %3808 = vmatpush1.msra.mxu0 0.0
    %3809 = vmatprep.subr.mxu0 0.0
    %3810 = vmatpush1.msra.mxu0 0.0
    %3811 = vmatprep.subr.mxu0 %v2320
    %3812 = vmatpush1.msra.mxu0 %v2319
    %3813 = vmatprep.subr.mxu0 %v2318
    %3814 = vmatpush1.msra.mxu0 %v2317
    %3815 = vmatprep.subr.mxu0 %v2316
    %3816 = vmatpush1.msra.mxu0 %v2315
    %3817 = vmatprep.subr.mxu0 %v2314
    %3818 = vmatpush1.msra.mxu0 %v2313
    %3819 = vmatprep.subr.mxu0 %v2312
    %3820 = vmatpush1.msra.mxu0 %v2311
    %3821 = vmatprep.subr.mxu0 %v2310
    %3822 = vmatpush1.msra.mxu0 %v2309
    %3823 = vmatprep.subr.mxu0 %v2308
    %3824 = vmatpush1.msra.mxu0 %v2307
    %3825 = vmatprep.subr.mxu0 %v2306
    %3826 = vmatpush1.msra.mxu0 %v2305
    %3827 = vmatprep.subr.mxu0 0.0
    %3828 = vmatpush2.msra.mxu0 0.0
    %3829 = vmatprep.subr.mxu0 0.0
    %3830 = vmatpush2.msra.mxu0 0.0
    %3831 = vmatprep.subr.mxu0 0.0
    %3832 = vmatpush2.msra.mxu0 0.0
    %3833 = vmatprep.subr.mxu0 0.0
    %3834 = vmatpush2.msra.mxu0 0.0
    %3835 = vmatprep.subr.mxu0 0.0
    %3836 = vmatpush2.msra.mxu0 0.0
    %3837 = vmatprep.subr.mxu0 0.0
    %3838 = vmatpush2.msra.mxu0 0.0
    %3839 = vmatprep.subr.mxu0 0.0
    %3840 = vmatpush2.msra.mxu0 0.0
    %3841 = vmatprep.subr.mxu0 0.0
    %3842 = vmatpush2.msra.mxu0 0.0
    %3843 = vmatprep.subr.mxu0 0.0
    %3844 = vmatpush2.msra.mxu0 0.0
    %3845 = vmatprep.subr.mxu0 0.0
    %3846 = vmatpush2.msra.mxu0 0.0
    %3847 = vmatprep.subr.mxu0 0.0
    %3848 = vmatpush2.msra.mxu0 0.0
    %3849 = vmatprep.subr.mxu0 0.0
    %3850 = vmatpush2.msra.mxu0 0.0
    %3851 = vmatprep.subr.mxu0 0.0
    %3852 = vmatpush2.msra.mxu0 0.0
    %3853 = vmatprep.subr.mxu0 0.0
    %3854 = vmatpush2.msra.mxu0 0.0
    %3855 = vmatprep.subr.mxu0 0.0
    %3856 = vmatpush2.msra.mxu0 0.0
    %3857 = vmatprep.subr.mxu0 0.0
    %3858 = vmatpush2.msra.mxu0 0.0
    %3859 = vmatprep.mubr.f32.mxu0 0.0
    %3860 = vmatmul.mubr.f32.gmra.mxu0 %v3793
    %v3861 = vpop.f32.mrf.mxu0
    %v3862 = vadd.f32 0.0, %v3861
    %v3863 = vpop.f32.mrf.mxu0
    %v3864 = vadd.f32 0.0, %v3863
    %3865 = vdwg.mxu0
    %v3867 = vrot.slane %v3862, 1
    %v3868 = vrot.slane %v3862, 2
    %v3871 = vadd.f32 %v2295, %v3867
    %v3872 = vadd.f32 %v2301, %v3868
    %v3873 = vxor.u32 %v3871, 2147483648
    %v3874 = vxor.u32 %v3872, 2147483648
    %v3875 = vmul.f32 %v3873, 1.442695
    %v3876 = vpow.pop %v3875
    %v3877 = vmul.f32 %v3874, 1.442695
    %v3878 = vpow.pop %v3877
    %v3879 = vadd.f32 %v3876, 1.0
    %v3880 = vadd.f32 %v3878, 1.0
    %v3881 = vrcp.pop %v3879
    %v3882 = vmul.f32 1.0, %v3881
    %v3883 = vrcp.pop %v3880
    %v3884 = vmul.f32 1.0, %v3883
    %v3885 = vtanh.pop %v3871
    %v3886 = vtanh.pop %v3872
    %v3889 = vrot.slane %v3701, 7
    %v3890 = vrot.slane %v3702, 7
    %v3893 = vmul.f32 %v3882, %v3889
    %v3894 = vmul.f32 %v3884, %v3890
    %3897 = vrot.lane.b32.xlu0 %v3885, 64
    %v3898 = vpop.permute.xlu0 %3897
    %3899 = vrot.lane.b32.xlu0 %v3886, 64
    %v3900 = vpop.permute.xlu0 %3899
    %v3903 = vmul.f32 %v3882, %v3898
    %v3904 = vmul.f32 %v3884, %v3900
    %3907 = vrot.lane.b32.xlu0 %v3903, 32
    %v3908 = vpop.permute.xlu0 %3907
    %3909 = vrot.lane.b32.xlu0 %v3904, 32
    %v3910 = vpop.permute.xlu0 %3909
    %v3913 = vadd.f32 %v3893, %v3908
    %v3914 = vadd.f32 %v3894, %v3910
    %v3915 = vtanh.pop %v3913
    %v3916 = vtanh.pop %v3914
    %3919 = vrot.lane.b32.xlu0 %v3915, 64
    %v3920 = vpop.permute.xlu0 %3919
    %3921 = vrot.lane.b32.xlu0 %v3916, 64
    %v3922 = vpop.permute.xlu0 %3921
    %v3925 = vmul.f32 %v3882, %v3920
    %v3926 = vmul.f32 %v3884, %v3922
    %v3928 = vrot.slane %v3864, 1
    %v3931 = vadd.f32 %v2297, %v3864
    %v3932 = vadd.f32 %v2303, %v3928
    %v3933 = vxor.u32 %v3931, 2147483648
    %v3934 = vxor.u32 %v3932, 2147483648
    %v3935 = vmul.f32 %v3933, 1.442695
    %v3936 = vpow.pop %v3935
    %v3937 = vmul.f32 %v3934, 1.442695
    %v3938 = vpow.pop %v3937
    %v3939 = vadd.f32 %v3936, 1.0
    %v3940 = vadd.f32 %v3938, 1.0
    %v3941 = vrcp.pop %v3939
    %v3942 = vmul.f32 1.0, %v3941
    %v3943 = vrcp.pop %v3940
    %v3944 = vmul.f32 1.0, %v3943
    %v3945 = vtanh.pop %v3931
    %v3946 = vtanh.pop %v3932
    %v3949 = vrot.slane %v3761, 1
    %v3950 = vrot.slane %v3762, 1
    %v3953 = vmul.f32 %v3942, %v3949
    %v3954 = vmul.f32 %v3944, %v3950
    %3957 = vrot.lane.b32.xlu0 %v3945, 64
    %v3958 = vpop.permute.xlu0 %3957
    %3959 = vrot.lane.b32.xlu0 %v3946, 64
    %v3960 = vpop.permute.xlu0 %3959
    %v3963 = vmul.f32 %v3942, %v3958
    %v3964 = vmul.f32 %v3944, %v3960
    %3967 = vrot.lane.b32.xlu0 %v3963, 32
    %v3968 = vpop.permute.xlu0 %3967
    %3969 = vrot.lane.b32.xlu0 %v3964, 32
    %v3970 = vpop.permute.xlu0 %3969
    %v3973 = vadd.f32 %v3953, %v3968
    %v3974 = vadd.f32 %v3954, %v3970
    %v3975 = vtanh.pop %v3973
    %v3976 = vtanh.pop %v3974
    %3979 = vrot.lane.b32.xlu0 %v3975, 64
    %v3980 = vpop.permute.xlu0 %3979
    %3981 = vrot.lane.b32.xlu0 %v3976, 64
    %v3982 = vpop.permute.xlu0 %3981
    %v3985 = vmul.f32 %v3942, %v3980
    %v3986 = vmul.f32 %v3944, %v3982
    %v3989 = vrot.slane %v3926, 7
    %3990 = vrot.lane.b32.xlu0 %v3925, 32
    %v3991 = vpop.permute.xlu0 %3990
    %3992 = vrot.lane.b32.xlu0 %v3989, 32
    %v3993 = vpop.permute.xlu0 %3992
    %v3998 = vrot.slane %v3985, 1
    %3999 = vrot.lane.b32.xlu0 %v3998, 64
    %v4000 = vpop.permute.xlu0 %3999
    %4001 = vrot.lane.b32.xlu0 %v3986, 64
    %v4002 = vpop.permute.xlu0 %4001
    %v4005 = vsel %vm349, %v3991, %v4000
    %v4006 = vsel %vm349, %v3993, %v4002
    %v4007 = vld [vmem:[%s7] sm:$0xff]
    %v4008 = vld [vmem:[%s7 + $0x8] sm:$0xff]
    %v4009 = vld [vmem:[%s7 + $0x10] sm:$0xff]
    %v4010 = vld [vmem:[%s7 + $0x18] sm:$0xff]
    %v4011 = vld [vmem:[%s7 + $0x20] sm:$0xff]
    %v4012 = vld [vmem:[%s7 + $0x28] sm:$0xff]
    %v4013 = vld [vmem:[%s7 + $0x30] sm:$0xff]
    %v4014 = vld [vmem:[%s7 + $0x38] sm:$0xff]
    %v4015 = vld [vmem:[%s8] sm:$0x1]
    %v4017 = vlaneseq
    %v4018 = vshrl.u32 %v4017, 7
    %v4019 = vsub.s32 0, %v4018
    %v4020 = vrot.slane %v4015, %v4019
    %v4024 = vrot.slane %v4005, 7
    %v4025 = vrot.slane %v4006, 7
    %v4026 = vsel %vm2173, %v4024, %v4025
    %v4027 = vsel %vm149, %v4026, 0
    %4029 = vmatprep.subr.mxu0 0.0
    %4030 = vmatpush1.msra.mxu0 0.0
    %4031 = vmatprep.subr.mxu0 0.0
    %4032 = vmatpush1.msra.mxu0 0.0
    %4033 = vmatprep.subr.mxu0 0.0
    %4034 = vmatpush1.msra.mxu0 0.0
    %4035 = vmatprep.subr.mxu0 0.0
    %4036 = vmatpush1.msra.mxu0 0.0
    %4037 = vmatprep.subr.mxu0 0.0
    %4038 = vmatpush1.msra.mxu0 0.0
    %4039 = vmatprep.subr.mxu0 0.0
    %4040 = vmatpush1.msra.mxu0 0.0
    %4041 = vmatprep.subr.mxu0 0.0
    %4042 = vmatpush1.msra.mxu0 0.0
    %4043 = vmatprep.subr.mxu0 0.0
    %4044 = vmatpush1.msra.mxu0 0.0
    %4045 = vmatprep.subr.mxu0 0.0
    %4046 = vmatpush1.msra.mxu0 %v4014
    %4047 = vmatprep.subr.mxu0 0.0
    %4048 = vmatpush1.msra.mxu0 %v4013
    %4049 = vmatprep.subr.mxu0 0.0
    %4050 = vmatpush1.msra.mxu0 %v4012
    %4051 = vmatprep.subr.mxu0 0.0
    %4052 = vmatpush1.msra.mxu0 %v4011
    %4053 = vmatprep.subr.mxu0 0.0
    %4054 = vmatpush1.msra.mxu0 %v4010
    %4055 = vmatprep.subr.mxu0 0.0
    %4056 = vmatpush1.msra.mxu0 %v4009
    %4057 = vmatprep.subr.mxu0 0.0
    %4058 = vmatpush1.msra.mxu0 %v4008
    %4059 = vmatprep.subr.mxu0 0.0
    %4060 = vmatpush1.msra.mxu0 %v4007
    %4061 = vmatprep.subr.mxu0 0.0
    %4062 = vmatpush2.msra.mxu0 0.0
    %4063 = vmatprep.subr.mxu0 0.0
    %4064 = vmatpush2.msra.mxu0 0.0
    %4065 = vmatprep.subr.mxu0 0.0
    %4066 = vmatpush2.msra.mxu0 0.0
    %4067 = vmatprep.subr.mxu0 0.0
    %4068 = vmatpush2.msra.mxu0 0.0
    %4069 = vmatprep.subr.mxu0 0.0
    %4070 = vmatpush2.msra.mxu0 0.0
    %4071 = vmatprep.subr.mxu0 0.0
    %4072 = vmatpush2.msra.mxu0 0.0
    %4073 = vmatprep.subr.mxu0 0.0
    %4074 = vmatpush2.msra.mxu0 0.0
    %4075 = vmatprep.subr.mxu0 0.0
    %4076 = vmatpush2.msra.mxu0 0.0
    %4077 = vmatprep.subr.mxu0 0.0
    %4078 = vmatpush2.msra.mxu0 0.0
    %4079 = vmatprep.subr.mxu0 0.0
    %4080 = vmatpush2.msra.mxu0 0.0
    %4081 = vmatprep.subr.mxu0 0.0
    %4082 = vmatpush2.msra.mxu0 0.0
    %4083 = vmatprep.subr.mxu0 0.0
    %4084 = vmatpush2.msra.mxu0 0.0
    %4085 = vmatprep.subr.mxu0 0.0
    %4086 = vmatpush2.msra.mxu0 0.0
    %4087 = vmatprep.subr.mxu0 0.0
    %4088 = vmatpush2.msra.mxu0 0.0
    %4089 = vmatprep.subr.mxu0 0.0
    %4090 = vmatpush2.msra.mxu0 0.0
    %4091 = vmatprep.subr.mxu0 0.0
    %4092 = vmatpush2.msra.mxu0 0.0
    %4093 = vmatprep.mubr.f32.mxu0 0.0
    %4094 = vmatmul.mubr.f32.gmra.mxu0 %v4027
    %v4095 = vpop.f32.mrf.mxu0
    %v4096 = vadd.f32 %v4020, %v4095
    %v4097 = vpop.f32.mrf.mxu0
    %4098 = vdwg.mxu0
    %vm4099 = vcmask 33792
    %4100 = vst.msk [vmem:[#allocation2] sm:$0x3] %vm4099, %v4096
    // Predicated region
    $region38: #{lstm_classifier_forward.1} parent=1 // pred_check
      _
    $region39: #{lstm_classifier_forward.1} parent=1 // pred_check_branch
      %4102 = sbr.rel (0) target = $region41
    $region40: #{lstm_classifier_forward.1} parent=1 // pred_region
      %s4104 = ssub.s32 32, 32
      %4105 = vsyncadd [#allocation3], %s4104
      %s4107 = sshll.u32 [#allocation2], 4
      %s4108 = int_to_ptr.vmem [resolvable:$true] %s4107
      %4110 = dma.vmem_to_hbm [thread:$0]  %s4108, 32, %s9, [#allocation3]
    $region41: #{lstm_classifier_forward.1} parent=1 // pred_fallthru
      _
    // Predicated region
    $region42: #{lstm_classifier_forward.1} parent=1 // pred_check
      _
    $region43: #{lstm_classifier_forward.1} parent=1 // pred_check_branch
      %4112 = sbr.rel (0) target = $region45
    $region44: #{lstm_classifier_forward.1} parent=1 // pred_region
      %4113 = dma.done [#allocation3], 32
    $region45: #{lstm_classifier_forward.1} parent=1 // pred_fallthru
      _
    %4114 = vsyncpa [#allocation3], 1

</llo_original>
